<compile_context>
chip_gen: v7x
topology: tpu7x:2x2x1
jax: 0.10.0
libtpu: 0.0.40
codegen_flags: <defaults>
</compile_context>

<pallas_src>
import functools

import jax
import jax.numpy as jnp
from jax.experimental import pallas as pl
from jax.experimental.pallas import tpu as pltpu


def _round_up(x: int, m: int) -> int:
    return ((x + m - 1) // m) * m


def _cdiv(a: int, b: int) -> int:
    return (a + b - 1) // b


def _choose_tile(n: int, pref: int, gran: int, min_blocks: int = 1) -> int:
    """Tile size: multiple of `gran`, close to `pref`, >= min_blocks blocks if N allows."""
    n_g = _round_up(n, gran)
    t = max(gran, min((pref // gran) * gran, n_g))
    # v7x megacore: keep >= min_blocks blocks along this (parallel) axis when possible.
    while t > gran and _cdiv(n, t) < min_blocks:
        t = max(gran, _round_up(t // 2, gran))
    # Shrink to the smallest gran-multiple that still covers N with the same
    # number of blocks (minimizes wasted compute on the padded edge block).
    t = max(gran, _round_up(_cdiv(n, _cdiv(n, t)), gran))
    return t


def _pairwise_l1_kernel(hi_ref, hjt_ref, o_ref, *, apply_sigmoid: bool,
                        feat_dim: int, strip_m: int, compute_dtype):
    # hi_ref:  (TM, D)   row ("i") tile of h
    # hjt_ref: (D, TN)   column ("j") tile of h^T (lane axis carries j)
    # o_ref:   (TM, TN)  output tile (lane-dense)
    tm, tn = o_ref.shape

    # Process the output tile in sublane strips so the f32 accumulator stays in
    # vregs: one store per output vreg total, instead of one VMEM load + store
    # per output vreg *per feature* (the old scratch-accumulator pattern).
    for s0 in range(0, tm, strip_m):
        sm = min(strip_m, tm - s0)          # static; multiple of 8
        acc = jnp.zeros((sm, tn), jnp.float32)

        # Fully-unrolled feature loop (feat_dim is small & static here).  Each
        # step is a lane-dense (sm, TN) VPU sub/abs/add with no (sm, TN, D)
        # intermediate and no cross-lane (XLU) reduce.  For very large
        # feat_dim this should become a chunked lax.fori_loop to bound vreg
        # live-ranges and compile time.
        for k in range(feat_dim):
            col = hi_ref[s0:s0 + sm, k:k + 1].astype(compute_dtype)   # (sm, 1)
            row = hjt_ref[k:k + 1, :].astype(compute_dtype)           # (1, TN)
            acc = acc + jnp.abs(col - row).astype(jnp.float32)

        if apply_sigmoid:
            # sigmoid(x) = 1 / (1 + exp(-x)); x >= 0 so exp(-x) <= 1 (no
            # overflow).  exp and the approximate reciprocal both run on the
            # EUP, keeping the epilogue off the binding VALU slot.
            acc = pl.reciprocal(1.0 + jnp.exp(-acc), approx=True)

        o_ref[s0:s0 + sm, :] = acc.astype(o_ref.dtype)


def pairwise_distance_decoder(h: jax.Array, sigmoid: bool = True, *,
                              tile_m: int = 256, tile_n: int = 512,
                              out_dtype=None,
                              compute_dtype=jnp.float32) -> jax.Array:
    """Pallas equivalent of PairwiseDistanceDecoder.forward (p=1 cdist + sigmoid)."""
    n, d = h.shape
    out_dtype = h.dtype if out_dtype is None else out_dtype

    # Pick tiles first, then pad N up to tile multiples (edge blocks compute on
    # padding, sliced away below).  Row tile asks for >=2 blocks so both v7x
    # TensorCores get work; column tile stays lane-dense (multiple of 128).
    tm = _choose_tile(n, tile_m, 32, min_blocks=2)
    tn = _choose_tile(n, tile_n, 128, min_blocks=1)
    m_pad = _round_up(n, tm)
    n_pad = _round_up(n, tn)

    h_rows = h if m_pad == n else jnp.pad(h, ((0, m_pad - n), (0, 0)))
    h_cols = h if n_pad == n else jnp.pad(h, ((0, n_pad - n), (0, 0)))
    h_t = h_cols.T  # (D, n_pad): lane axis carries j on the column side.

    # Strip height such that the f32 accumulator strip is ~16 vregs.
    strip_m = max(8, min(tm, ((16 * 1024) // tn) // 8 * 8))

    kernel = functools.partial(_pairwise_l1_kernel,
                               apply_sigmoid=sigmoid, feat_dim=d,
                               strip_m=strip_m, compute_dtype=compute_dtype)

    out = pl.pallas_call(
        kernel,
        out_shape=jax.ShapeDtypeStruct((m_pad, n_pad), out_dtype),
        grid=(m_pad // tm, n_pad // tn),
        in_specs=[
            pl.BlockSpec((tm, d), lambda i, j: (i, 0)),   # row tile of h
            pl.BlockSpec((d, tn), lambda i, j: (0, j)),   # col tile of h^T
        ],
        out_specs=pl.BlockSpec((tm, tn), lambda i, j: (i, j)),
        compiler_params=pltpu.CompilerParams(
            dimension_semantics=("parallel", "parallel"),
        ),
    )(h_rows, h_t)

    if m_pad == n and n_pad == n:
        return out
    return out[:n, :n]


if __name__ == "__main__":
    # PairwiseDistanceDecoder has no learnable parameters; h is [N, D].
    key0, key1 = jax.random.split(jax.random.PRNGKey(0))

    def _ref(hh, sig):
        l1 = jnp.sum(jnp.abs(hh[:, None, :] - hh[None, :, :]), axis=-1)
        return jax.nn.sigmoid(l1) if sig else l1

    # Case 1: N not a multiple of any tile (exercises pad-to-tile + slice-back).
    N, D = 200, 32
    h = jax.random.normal(key0, (N, D), dtype=jnp.float32)

    out = jax.block_until_ready(pairwise_distance_decoder(h, sigmoid=True))
    assert out.shape == (N, N)
    # approx reciprocal in the sigmoid epilogue -> ~1e-4 abs error budget.
    assert jnp.allclose(out, _ref(h, True), atol=1e-3, rtol=1e-3)

    out_raw = jax.block_until_ready(pairwise_distance_decoder(h, sigmoid=False))
    assert jnp.allclose(out_raw, _ref(h, False), atol=1e-4, rtol=1e-5)

    # Case 2: multi-block grid with exact-fit tiles (N = 384 -> 192x384 tiles).
    N2 = 384
    h2 = jax.random.normal(key1, (N2, D), dtype=jnp.float32)
    out2 = jax.block_until_ready(pairwise_distance_decoder(h2, sigmoid=True))
    assert out2.shape == (N2, N2)
    assert jnp.allclose(out2, _ref(h2, True), atol=1e-3, rtol=1e-3)

    print("KERNEL_OK")
</pallas_src>

<mosaic_0001>
module attributes {stable_mosaic.version = 11 : i64} {
  func.func @_pairwise_l1_kernel(%arg0: i32, %arg1: i32, %arg2: memref<128x32xf32, #tpu.memory_space<vmem>>, %arg3: memref<32x256xf32, #tpu.memory_space<vmem>>, %arg4: memref<128x256xf32, #tpu.memory_space<vmem>>) attributes {dimension_semantics = [#tpu.dimension_semantics<parallel>, #tpu.dimension_semantics<parallel>], iteration_bounds = array<i64: 2, 1>, scalar_prefetch = 0 : i64, scratch_operands = 0 : i64, tpu.core_type = #tpu.core_type<tc>, window_params = [{transform_indices = @transform_0, window_bounds = array<i64: 128, 32>}, {transform_indices = @transform_1, window_bounds = array<i64: 32, 256>}, {transform_indices = @transform_2, window_bounds = array<i64: 128, 256>}]} {
    %cst = arith.constant 0.000000e+00 : f32
    %0 = vector.broadcast %cst : f32 to vector<64x256xf32>
    %c0 = arith.constant 0 : index
    %c0_0 = arith.constant 0 : index
    %1 = vector.load %arg2[%c0, %c0_0] : memref<128x32xf32, #tpu.memory_space<vmem>>, vector<64x1xf32>
    %c0_1 = arith.constant 0 : index
    %c0_2 = arith.constant 0 : index
    %2 = vector.load %arg3[%c0_1, %c0_2] : memref<32x256xf32, #tpu.memory_space<vmem>>, vector<1x256xf32>
    %3 = vector.broadcast %1 : vector<64x1xf32> to vector<64x256xf32>
    %4 = vector.broadcast %2 : vector<1x256xf32> to vector<64x256xf32>
    %5 = arith.subf %3, %4 : vector<64x256xf32>
    %6 = math.absf %5 : vector<64x256xf32>
    %7 = arith.addf %0, %6 : vector<64x256xf32>
    %c0_3 = arith.constant 0 : index
    %c1 = arith.constant 1 : index
    %8 = vector.load %arg2[%c0_3, %c1] : memref<128x32xf32, #tpu.memory_space<vmem>>, vector<64x1xf32>
    %c1_4 = arith.constant 1 : index
    %c0_5 = arith.constant 0 : index
    %9 = vector.load %arg3[%c1_4, %c0_5] : memref<32x256xf32, #tpu.memory_space<vmem>>, vector<1x256xf32>
    %10 = vector.broadcast %8 : vector<64x1xf32> to vector<64x256xf32>
    %11 = vector.broadcast %9 : vector<1x256xf32> to vector<64x256xf32>
    %12 = arith.subf %10, %11 : vector<64x256xf32>
    %13 = math.absf %12 : vector<64x256xf32>
    %14 = arith.addf %7, %13 : vector<64x256xf32>
    %c0_6 = arith.constant 0 : index
    %c2 = arith.constant 2 : index
    %15 = vector.load %arg2[%c0_6, %c2] : memref<128x32xf32, #tpu.memory_space<vmem>>, vector<64x1xf32>
    %c2_7 = arith.constant 2 : index
    %c0_8 = arith.constant 0 : index
    %16 = vector.load %arg3[%c2_7, %c0_8] : memref<32x256xf32, #tpu.memory_space<vmem>>, vector<1x256xf32>
    %17 = vector.broadcast %15 : vector<64x1xf32> to vector<64x256xf32>
    %18 = vector.broadcast %16 : vector<1x256xf32> to vector<64x256xf32>
    %19 = arith.subf %17, %18 : vector<64x256xf32>
    %20 = math.absf %19 : vector<64x256xf32>
    %21 = arith.addf %14, %20 : vector<64x256xf32>
    %c0_9 = arith.constant 0 : index
    %c3 = arith.constant 3 : index
    %22 = vector.load %arg2[%c0_9, %c3] : memref<128x32xf32, #tpu.memory_space<vmem>>, vector<64x1xf32>
    %c3_10 = arith.constant 3 : index
    %c0_11 = arith.constant 0 : index
    %23 = vector.load %arg3[%c3_10, %c0_11] : memref<32x256xf32, #tpu.memory_space<vmem>>, vector<1x256xf32>
    %24 = vector.broadcast %22 : vector<64x1xf32> to vector<64x256xf32>
    %25 = vector.broadcast %23 : vector<1x256xf32> to vector<64x256xf32>
    %26 = arith.subf %24, %25 : vector<64x256xf32>
    %27 = math.absf %26 : vector<64x256xf32>
    %28 = arith.addf %21, %27 : vector<64x256xf32>
    %c0_12 = arith.constant 0 : index
    %c4 = arith.constant 4 : index
    %29 = vector.load %arg2[%c0_12, %c4] : memref<128x32xf32, #tpu.memory_space<vmem>>, vector<64x1xf32>
    %c4_13 = arith.constant 4 : index
    %c0_14 = arith.constant 0 : index
    %30 = vector.load %arg3[%c4_13, %c0_14] : memref<32x256xf32, #tpu.memory_space<vmem>>, vector<1x256xf32>
    %31 = vector.broadcast %29 : vector<64x1xf32> to vector<64x256xf32>
    %32 = vector.broadcast %30 : vector<1x256xf32> to vector<64x256xf32>
    %33 = arith.subf %31, %32 : vector<64x256xf32>
    %34 = math.absf %33 : vector<64x256xf32>
    %35 = arith.addf %28, %34 : vector<64x256xf32>
    %c0_15 = arith.constant 0 : index
    %c5 = arith.constant 5 : index
    %36 = vector.load %arg2[%c0_15, %c5] : memref<128x32xf32, #tpu.memory_space<vmem>>, vector<64x1xf32>
    %c5_16 = arith.constant 5 : index
    %c0_17 = arith.constant 0 : index
    %37 = vector.load %arg3[%c5_16, %c0_17] : memref<32x256xf32, #tpu.memory_space<vmem>>, vector<1x256xf32>
    %38 = vector.broadcast %36 : vector<64x1xf32> to vector<64x256xf32>
    %39 = vector.broadcast %37 : vector<1x256xf32> to vector<64x256xf32>
    %40 = arith.subf %38, %39 : vector<64x256xf32>
    %41 = math.absf %40 : vector<64x256xf32>
    %42 = arith.addf %35, %41 : vector<64x256xf32>
    %c0_18 = arith.constant 0 : index
    %c6 = arith.constant 6 : index
    %43 = vector.load %arg2[%c0_18, %c6] : memref<128x32xf32, #tpu.memory_space<vmem>>, vector<64x1xf32>
    %c6_19 = arith.constant 6 : index
    %c0_20 = arith.constant 0 : index
    %44 = vector.load %arg3[%c6_19, %c0_20] : memref<32x256xf32, #tpu.memory_space<vmem>>, vector<1x256xf32>
    %45 = vector.broadcast %43 : vector<64x1xf32> to vector<64x256xf32>
    %46 = vector.broadcast %44 : vector<1x256xf32> to vector<64x256xf32>
    %47 = arith.subf %45, %46 : vector<64x256xf32>
    %48 = math.absf %47 : vector<64x256xf32>
    %49 = arith.addf %42, %48 : vector<64x256xf32>
    %c0_21 = arith.constant 0 : index
    %c7 = arith.constant 7 : index
    %50 = vector.load %arg2[%c0_21, %c7] : memref<128x32xf32, #tpu.memory_space<vmem>>, vector<64x1xf32>
    %c7_22 = arith.constant 7 : index
    %c0_23 = arith.constant 0 : index
    %51 = vector.load %arg3[%c7_22, %c0_23] : memref<32x256xf32, #tpu.memory_space<vmem>>, vector<1x256xf32>
    %52 = vector.broadcast %50 : vector<64x1xf32> to vector<64x256xf32>
    %53 = vector.broadcast %51 : vector<1x256xf32> to vector<64x256xf32>
    %54 = arith.subf %52, %53 : vector<64x256xf32>
    %55 = math.absf %54 : vector<64x256xf32>
    %56 = arith.addf %49, %55 : vector<64x256xf32>
    %c0_24 = arith.constant 0 : index
    %c8 = arith.constant 8 : index
    %57 = vector.load %arg2[%c0_24, %c8] : memref<128x32xf32, #tpu.memory_space<vmem>>, vector<64x1xf32>
    %c8_25 = arith.constant 8 : index
    %c0_26 = arith.constant 0 : index
    %58 = vector.load %arg3[%c8_25, %c0_26] : memref<32x256xf32, #tpu.memory_space<vmem>>, vector<1x256xf32>
    %59 = vector.broadcast %57 : vector<64x1xf32> to vector<64x256xf32>
    %60 = vector.broadcast %58 : vector<1x256xf32> to vector<64x256xf32>
    %61 = arith.subf %59, %60 : vector<64x256xf32>
    %62 = math.absf %61 : vector<64x256xf32>
    %63 = arith.addf %56, %62 : vector<64x256xf32>
    %c0_27 = arith.constant 0 : index
    %c9 = arith.constant 9 : index
    %64 = vector.load %arg2[%c0_27, %c9] : memref<128x32xf32, #tpu.memory_space<vmem>>, vector<64x1xf32>
    %c9_28 = arith.constant 9 : index
    %c0_29 = arith.constant 0 : index
    %65 = vector.load %arg3[%c9_28, %c0_29] : memref<32x256xf32, #tpu.memory_space<vmem>>, vector<1x256xf32>
    %66 = vector.broadcast %64 : vector<64x1xf32> to vector<64x256xf32>
    %67 = vector.broadcast %65 : vector<1x256xf32> to vector<64x256xf32>
    %68 = arith.subf %66, %67 : vector<64x256xf32>
    %69 = math.absf %68 : vector<64x256xf32>
    %70 = arith.addf %63, %69 : vector<64x256xf32>
    %c0_30 = arith.constant 0 : index
    %c10 = arith.constant 10 : index
    %71 = vector.load %arg2[%c0_30, %c10] : memref<128x32xf32, #tpu.memory_space<vmem>>, vector<64x1xf32>
    %c10_31 = arith.constant 10 : index
    %c0_32 = arith.constant 0 : index
    %72 = vector.load %arg3[%c10_31, %c0_32] : memref<32x256xf32, #tpu.memory_space<vmem>>, vector<1x256xf32>
    %73 = vector.broadcast %71 : vector<64x1xf32> to vector<64x256xf32>
    %74 = vector.broadcast %72 : vector<1x256xf32> to vector<64x256xf32>
    %75 = arith.subf %73, %74 : vector<64x256xf32>
    %76 = math.absf %75 : vector<64x256xf32>
    %77 = arith.addf %70, %76 : vector<64x256xf32>
    %c0_33 = arith.constant 0 : index
    %c11 = arith.constant 11 : index
    %78 = vector.load %arg2[%c0_33, %c11] : memref<128x32xf32, #tpu.memory_space<vmem>>, vector<64x1xf32>
    %c11_34 = arith.constant 11 : index
    %c0_35 = arith.constant 0 : index
    %79 = vector.load %arg3[%c11_34, %c0_35] : memref<32x256xf32, #tpu.memory_space<vmem>>, vector<1x256xf32>
    %80 = vector.broadcast %78 : vector<64x1xf32> to vector<64x256xf32>
    %81 = vector.broadcast %79 : vector<1x256xf32> to vector<64x256xf32>
    %82 = arith.subf %80, %81 : vector<64x256xf32>
    %83 = math.absf %82 : vector<64x256xf32>
    %84 = arith.addf %77, %83 : vector<64x256xf32>
    %c0_36 = arith.constant 0 : index
    %c12 = arith.constant 12 : index
    %85 = vector.load %arg2[%c0_36, %c12] : memref<128x32xf32, #tpu.memory_space<vmem>>, vector<64x1xf32>
    %c12_37 = arith.constant 12 : index
    %c0_38 = arith.constant 0 : index
    %86 = vector.load %arg3[%c12_37, %c0_38] : memref<32x256xf32, #tpu.memory_space<vmem>>, vector<1x256xf32>
    %87 = vector.broadcast %85 : vector<64x1xf32> to vector<64x256xf32>
    %88 = vector.broadcast %86 : vector<1x256xf32> to vector<64x256xf32>
    %89 = arith.subf %87, %88 : vector<64x256xf32>
    %90 = math.absf %89 : vector<64x256xf32>
    %91 = arith.addf %84, %90 : vector<64x256xf32>
    %c0_39 = arith.constant 0 : index
    %c13 = arith.constant 13 : index
    %92 = vector.load %arg2[%c0_39, %c13] : memref<128x32xf32, #tpu.memory_space<vmem>>, vector<64x1xf32>
    %c13_40 = arith.constant 13 : index
    %c0_41 = arith.constant 0 : index
    %93 = vector.load %arg3[%c13_40, %c0_41] : memref<32x256xf32, #tpu.memory_space<vmem>>, vector<1x256xf32>
    %94 = vector.broadcast %92 : vector<64x1xf32> to vector<64x256xf32>
    %95 = vector.broadcast %93 : vector<1x256xf32> to vector<64x256xf32>
    %96 = arith.subf %94, %95 : vector<64x256xf32>
    %97 = math.absf %96 : vector<64x256xf32>
    %98 = arith.addf %91, %97 : vector<64x256xf32>
    %c0_42 = arith.constant 0 : index
    %c14 = arith.constant 14 : index
    %99 = vector.load %arg2[%c0_42, %c14] : memref<128x32xf32, #tpu.memory_space<vmem>>, vector<64x1xf32>
    %c14_43 = arith.constant 14 : index
    %c0_44 = arith.constant 0 : index
    %100 = vector.load %arg3[%c14_43, %c0_44] : memref<32x256xf32, #tpu.memory_space<vmem>>, vector<1x256xf32>
    %101 = vector.broadcast %99 : vector<64x1xf32> to vector<64x256xf32>
    %102 = vector.broadcast %100 : vector<1x256xf32> to vector<64x256xf32>
    %103 = arith.subf %101, %102 : vector<64x256xf32>
    %104 = math.absf %103 : vector<64x256xf32>
    %105 = arith.addf %98, %104 : vector<64x256xf32>
    %c0_45 = arith.constant 0 : index
    %c15 = arith.constant 15 : index
    %106 = vector.load %arg2[%c0_45, %c15] : memref<128x32xf32, #tpu.memory_space<vmem>>, vector<64x1xf32>
    %c15_46 = arith.constant 15 : index
    %c0_47 = arith.constant 0 : index
    %107 = vector.load %arg3[%c15_46, %c0_47] : memref<32x256xf32, #tpu.memory_space<vmem>>, vector<1x256xf32>
    %108 = vector.broadcast %106 : vector<64x1xf32> to vector<64x256xf32>
    %109 = vector.broadcast %107 : vector<1x256xf32> to vector<64x256xf32>
    %110 = arith.subf %108, %109 : vector<64x256xf32>
    %111 = math.absf %110 : vector<64x256xf32>
    %112 = arith.addf %105, %111 : vector<64x256xf32>
    %c0_48 = arith.constant 0 : index
    %c16 = arith.constant 16 : index
    %113 = vector.load %arg2[%c0_48, %c16] : memref<128x32xf32, #tpu.memory_space<vmem>>, vector<64x1xf32>
    %c16_49 = arith.constant 16 : index
    %c0_50 = arith.constant 0 : index
    %114 = vector.load %arg3[%c16_49, %c0_50] : memref<32x256xf32, #tpu.memory_space<vmem>>, vector<1x256xf32>
    %115 = vector.broadcast %113 : vector<64x1xf32> to vector<64x256xf32>
    %116 = vector.broadcast %114 : vector<1x256xf32> to vector<64x256xf32>
    %117 = arith.subf %115, %116 : vector<64x256xf32>
    %118 = math.absf %117 : vector<64x256xf32>
    %119 = arith.addf %112, %118 : vector<64x256xf32>
    %c0_51 = arith.constant 0 : index
    %c17 = arith.constant 17 : index
    %120 = vector.load %arg2[%c0_51, %c17] : memref<128x32xf32, #tpu.memory_space<vmem>>, vector<64x1xf32>
    %c17_52 = arith.constant 17 : index
    %c0_53 = arith.constant 0 : index
    %121 = vector.load %arg3[%c17_52, %c0_53] : memref<32x256xf32, #tpu.memory_space<vmem>>, vector<1x256xf32>
    %122 = vector.broadcast %120 : vector<64x1xf32> to vector<64x256xf32>
    %123 = vector.broadcast %121 : vector<1x256xf32> to vector<64x256xf32>
    %124 = arith.subf %122, %123 : vector<64x256xf32>
    %125 = math.absf %124 : vector<64x256xf32>
    %126 = arith.addf %119, %125 : vector<64x256xf32>
    %c0_54 = arith.constant 0 : index
    %c18 = arith.constant 18 : index
    %127 = vector.load %arg2[%c0_54, %c18] : memref<128x32xf32, #tpu.memory_space<vmem>>, vector<64x1xf32>
    %c18_55 = arith.constant 18 : index
    %c0_56 = arith.constant 0 : index
    %128 = vector.load %arg3[%c18_55, %c0_56] : memref<32x256xf32, #tpu.memory_space<vmem>>, vector<1x256xf32>
    %129 = vector.broadcast %127 : vector<64x1xf32> to vector<64x256xf32>
    %130 = vector.broadcast %128 : vector<1x256xf32> to vector<64x256xf32>
    %131 = arith.subf %129, %130 : vector<64x256xf32>
    %132 = math.absf %131 : vector<64x256xf32>
    %133 = arith.addf %126, %132 : vector<64x256xf32>
    %c0_57 = arith.constant 0 : index
    %c19 = arith.constant 19 : index
    %134 = vector.load %arg2[%c0_57, %c19] : memref<128x32xf32, #tpu.memory_space<vmem>>, vector<64x1xf32>
    %c19_58 = arith.constant 19 : index
    %c0_59 = arith.constant 0 : index
    %135 = vector.load %arg3[%c19_58, %c0_59] : memref<32x256xf32, #tpu.memory_space<vmem>>, vector<1x256xf32>
    %136 = vector.broadcast %134 : vector<64x1xf32> to vector<64x256xf32>
    %137 = vector.broadcast %135 : vector<1x256xf32> to vector<64x256xf32>
    %138 = arith.subf %136, %137 : vector<64x256xf32>
    %139 = math.absf %138 : vector<64x256xf32>
    %140 = arith.addf %133, %139 : vector<64x256xf32>
    %c0_60 = arith.constant 0 : index
    %c20 = arith.constant 20 : index
    %141 = vector.load %arg2[%c0_60, %c20] : memref<128x32xf32, #tpu.memory_space<vmem>>, vector<64x1xf32>
    %c20_61 = arith.constant 20 : index
    %c0_62 = arith.constant 0 : index
    %142 = vector.load %arg3[%c20_61, %c0_62] : memref<32x256xf32, #tpu.memory_space<vmem>>, vector<1x256xf32>
    %143 = vector.broadcast %141 : vector<64x1xf32> to vector<64x256xf32>
    %144 = vector.broadcast %142 : vector<1x256xf32> to vector<64x256xf32>
    %145 = arith.subf %143, %144 : vector<64x256xf32>
    %146 = math.absf %145 : vector<64x256xf32>
    %147 = arith.addf %140, %146 : vector<64x256xf32>
    %c0_63 = arith.constant 0 : index
    %c21 = arith.constant 21 : index
    %148 = vector.load %arg2[%c0_63, %c21] : memref<128x32xf32, #tpu.memory_space<vmem>>, vector<64x1xf32>
    %c21_64 = arith.constant 21 : index
    %c0_65 = arith.constant 0 : index
    %149 = vector.load %arg3[%c21_64, %c0_65] : memref<32x256xf32, #tpu.memory_space<vmem>>, vector<1x256xf32>
    %150 = vector.broadcast %148 : vector<64x1xf32> to vector<64x256xf32>
    %151 = vector.broadcast %149 : vector<1x256xf32> to vector<64x256xf32>
    %152 = arith.subf %150, %151 : vector<64x256xf32>
    %153 = math.absf %152 : vector<64x256xf32>
    %154 = arith.addf %147, %153 : vector<64x256xf32>
    %c0_66 = arith.constant 0 : index
    %c22 = arith.constant 22 : index
    %155 = vector.load %arg2[%c0_66, %c22] : memref<128x32xf32, #tpu.memory_space<vmem>>, vector<64x1xf32>
    %c22_67 = arith.constant 22 : index
    %c0_68 = arith.constant 0 : index
    %156 = vector.load %arg3[%c22_67, %c0_68] : memref<32x256xf32, #tpu.memory_space<vmem>>, vector<1x256xf32>
    %157 = vector.broadcast %155 : vector<64x1xf32> to vector<64x256xf32>
    %158 = vector.broadcast %156 : vector<1x256xf32> to vector<64x256xf32>
    %159 = arith.subf %157, %158 : vector<64x256xf32>
    %160 = math.absf %159 : vector<64x256xf32>
    %161 = arith.addf %154, %160 : vector<64x256xf32>
    %c0_69 = arith.constant 0 : index
    %c23 = arith.constant 23 : index
    %162 = vector.load %arg2[%c0_69, %c23] : memref<128x32xf32, #tpu.memory_space<vmem>>, vector<64x1xf32>
    %c23_70 = arith.constant 23 : index
    %c0_71 = arith.constant 0 : index
    %163 = vector.load %arg3[%c23_70, %c0_71] : memref<32x256xf32, #tpu.memory_space<vmem>>, vector<1x256xf32>
    %164 = vector.broadcast %162 : vector<64x1xf32> to vector<64x256xf32>
    %165 = vector.broadcast %163 : vector<1x256xf32> to vector<64x256xf32>
    %166 = arith.subf %164, %165 : vector<64x256xf32>
    %167 = math.absf %166 : vector<64x256xf32>
    %168 = arith.addf %161, %167 : vector<64x256xf32>
    %c0_72 = arith.constant 0 : index
    %c24 = arith.constant 24 : index
    %169 = vector.load %arg2[%c0_72, %c24] : memref<128x32xf32, #tpu.memory_space<vmem>>, vector<64x1xf32>
    %c24_73 = arith.constant 24 : index
    %c0_74 = arith.constant 0 : index
    %170 = vector.load %arg3[%c24_73, %c0_74] : memref<32x256xf32, #tpu.memory_space<vmem>>, vector<1x256xf32>
    %171 = vector.broadcast %169 : vector<64x1xf32> to vector<64x256xf32>
    %172 = vector.broadcast %170 : vector<1x256xf32> to vector<64x256xf32>
    %173 = arith.subf %171, %172 : vector<64x256xf32>
    %174 = math.absf %173 : vector<64x256xf32>
    %175 = arith.addf %168, %174 : vector<64x256xf32>
    %c0_75 = arith.constant 0 : index
    %c25 = arith.constant 25 : index
    %176 = vector.load %arg2[%c0_75, %c25] : memref<128x32xf32, #tpu.memory_space<vmem>>, vector<64x1xf32>
    %c25_76 = arith.constant 25 : index
    %c0_77 = arith.constant 0 : index
    %177 = vector.load %arg3[%c25_76, %c0_77] : memref<32x256xf32, #tpu.memory_space<vmem>>, vector<1x256xf32>
    %178 = vector.broadcast %176 : vector<64x1xf32> to vector<64x256xf32>
    %179 = vector.broadcast %177 : vector<1x256xf32> to vector<64x256xf32>
    %180 = arith.subf %178, %179 : vector<64x256xf32>
    %181 = math.absf %180 : vector<64x256xf32>
    %182 = arith.addf %175, %181 : vector<64x256xf32>
    %c0_78 = arith.constant 0 : index
    %c26 = arith.constant 26 : index
    %183 = vector.load %arg2[%c0_78, %c26] : memref<128x32xf32, #tpu.memory_space<vmem>>, vector<64x1xf32>
    %c26_79 = arith.constant 26 : index
    %c0_80 = arith.constant 0 : index
    %184 = vector.load %arg3[%c26_79, %c0_80] : memref<32x256xf32, #tpu.memory_space<vmem>>, vector<1x256xf32>
    %185 = vector.broadcast %183 : vector<64x1xf32> to vector<64x256xf32>
    %186 = vector.broadcast %184 : vector<1x256xf32> to vector<64x256xf32>
    %187 = arith.subf %185, %186 : vector<64x256xf32>
    %188 = math.absf %187 : vector<64x256xf32>
    %189 = arith.addf %182, %188 : vector<64x256xf32>
    %c0_81 = arith.constant 0 : index
    %c27 = arith.constant 27 : index
    %190 = vector.load %arg2[%c0_81, %c27] : memref<128x32xf32, #tpu.memory_space<vmem>>, vector<64x1xf32>
    %c27_82 = arith.constant 27 : index
    %c0_83 = arith.constant 0 : index
    %191 = vector.load %arg3[%c27_82, %c0_83] : memref<32x256xf32, #tpu.memory_space<vmem>>, vector<1x256xf32>
    %192 = vector.broadcast %190 : vector<64x1xf32> to vector<64x256xf32>
    %193 = vector.broadcast %191 : vector<1x256xf32> to vector<64x256xf32>
    %194 = arith.subf %192, %193 : vector<64x256xf32>
    %195 = math.absf %194 : vector<64x256xf32>
    %196 = arith.addf %189, %195 : vector<64x256xf32>
    %c0_84 = arith.constant 0 : index
    %c28 = arith.constant 28 : index
    %197 = vector.load %arg2[%c0_84, %c28] : memref<128x32xf32, #tpu.memory_space<vmem>>, vector<64x1xf32>
    %c28_85 = arith.constant 28 : index
    %c0_86 = arith.constant 0 : index
    %198 = vector.load %arg3[%c28_85, %c0_86] : memref<32x256xf32, #tpu.memory_space<vmem>>, vector<1x256xf32>
    %199 = vector.broadcast %197 : vector<64x1xf32> to vector<64x256xf32>
    %200 = vector.broadcast %198 : vector<1x256xf32> to vector<64x256xf32>
    %201 = arith.subf %199, %200 : vector<64x256xf32>
    %202 = math.absf %201 : vector<64x256xf32>
    %203 = arith.addf %196, %202 : vector<64x256xf32>
    %c0_87 = arith.constant 0 : index
    %c29 = arith.constant 29 : index
    %204 = vector.load %arg2[%c0_87, %c29] : memref<128x32xf32, #tpu.memory_space<vmem>>, vector<64x1xf32>
    %c29_88 = arith.constant 29 : index
    %c0_89 = arith.constant 0 : index
    %205 = vector.load %arg3[%c29_88, %c0_89] : memref<32x256xf32, #tpu.memory_space<vmem>>, vector<1x256xf32>
    %206 = vector.broadcast %204 : vector<64x1xf32> to vector<64x256xf32>
    %207 = vector.broadcast %205 : vector<1x256xf32> to vector<64x256xf32>
    %208 = arith.subf %206, %207 : vector<64x256xf32>
    %209 = math.absf %208 : vector<64x256xf32>
    %210 = arith.addf %203, %209 : vector<64x256xf32>
    %c0_90 = arith.constant 0 : index
    %c30 = arith.constant 30 : index
    %211 = vector.load %arg2[%c0_90, %c30] : memref<128x32xf32, #tpu.memory_space<vmem>>, vector<64x1xf32>
    %c30_91 = arith.constant 30 : index
    %c0_92 = arith.constant 0 : index
    %212 = vector.load %arg3[%c30_91, %c0_92] : memref<32x256xf32, #tpu.memory_space<vmem>>, vector<1x256xf32>
    %213 = vector.broadcast %211 : vector<64x1xf32> to vector<64x256xf32>
    %214 = vector.broadcast %212 : vector<1x256xf32> to vector<64x256xf32>
    %215 = arith.subf %213, %214 : vector<64x256xf32>
    %216 = math.absf %215 : vector<64x256xf32>
    %217 = arith.addf %210, %216 : vector<64x256xf32>
    %c0_93 = arith.constant 0 : index
    %c31 = arith.constant 31 : index
    %218 = vector.load %arg2[%c0_93, %c31] : memref<128x32xf32, #tpu.memory_space<vmem>>, vector<64x1xf32>
    %c31_94 = arith.constant 31 : index
    %c0_95 = arith.constant 0 : index
    %219 = vector.load %arg3[%c31_94, %c0_95] : memref<32x256xf32, #tpu.memory_space<vmem>>, vector<1x256xf32>
    %220 = vector.broadcast %218 : vector<64x1xf32> to vector<64x256xf32>
    %221 = vector.broadcast %219 : vector<1x256xf32> to vector<64x256xf32>
    %222 = arith.subf %220, %221 : vector<64x256xf32>
    %223 = math.absf %222 : vector<64x256xf32>
    %224 = arith.addf %217, %223 : vector<64x256xf32>
    %cst_96 = arith.constant 0.000000e+00 : f32
    %225 = vector.broadcast %cst_96 : f32 to vector<64x256xf32>
    %226 = arith.subf %225, %224 : vector<64x256xf32>
    %227 = math.exp %226 : vector<64x256xf32>
    %cst_97 = arith.constant 1.000000e+00 : f32
    %228 = vector.broadcast %cst_97 : f32 to vector<64x256xf32>
    %229 = arith.addf %228, %227 : vector<64x256xf32>
    %230 = tpu.reciprocal %229 {approx = true} : vector<64x256xf32> -> vector<64x256xf32>
    %c0_98 = arith.constant 0 : index
    %c0_99 = arith.constant 0 : index
    %231 = vector.load %arg4[%c0_98, %c0_99] : memref<128x256xf32, #tpu.memory_space<vmem>>, vector<64x256xf32>
    tpu.vector_store %arg4[%c0_98, %c0_99], %230 {strides = array<i32>} : memref<128x256xf32, #tpu.memory_space<vmem>>, vector<64x256xf32>,
    %cst_100 = arith.constant 0.000000e+00 : f32
    %232 = vector.broadcast %cst_100 : f32 to vector<64x256xf32>
    %c64 = arith.constant 64 : index
    %c0_101 = arith.constant 0 : index
    %233 = vector.load %arg2[%c64, %c0_101] : memref<128x32xf32, #tpu.memory_space<vmem>>, vector<64x1xf32>
    %c0_102 = arith.constant 0 : index
    %c0_103 = arith.constant 0 : index
    %234 = vector.load %arg3[%c0_102, %c0_103] : memref<32x256xf32, #tpu.memory_space<vmem>>, vector<1x256xf32>
    %235 = vector.broadcast %233 : vector<64x1xf32> to vector<64x256xf32>
    %236 = vector.broadcast %234 : vector<1x256xf32> to vector<64x256xf32>
    %237 = arith.subf %235, %236 : vector<64x256xf32>
    %238 = math.absf %237 : vector<64x256xf32>
    %239 = arith.addf %232, %238 : vector<64x256xf32>
    %c64_104 = arith.constant 64 : index
    %c1_105 = arith.constant 1 : index
    %240 = vector.load %arg2[%c64_104, %c1_105] : memref<128x32xf32, #tpu.memory_space<vmem>>, vector<64x1xf32>
    %c1_106 = arith.constant 1 : index
    %c0_107 = arith.constant 0 : index
    %241 = vector.load %arg3[%c1_106, %c0_107] : memref<32x256xf32, #tpu.memory_space<vmem>>, vector<1x256xf32>
    %242 = vector.broadcast %240 : vector<64x1xf32> to vector<64x256xf32>
    %243 = vector.broadcast %241 : vector<1x256xf32> to vector<64x256xf32>
    %244 = arith.subf %242, %243 : vector<64x256xf32>
    %245 = math.absf %244 : vector<64x256xf32>
    %246 = arith.addf %239, %245 : vector<64x256xf32>
    %c64_108 = arith.constant 64 : index
    %c2_109 = arith.constant 2 : index
    %247 = vector.load %arg2[%c64_108, %c2_109] : memref<128x32xf32, #tpu.memory_space<vmem>>, vector<64x1xf32>
    %c2_110 = arith.constant 2 : index
    %c0_111 = arith.constant 0 : index
    %248 = vector.load %arg3[%c2_110, %c0_111] : memref<32x256xf32, #tpu.memory_space<vmem>>, vector<1x256xf32>
    %249 = vector.broadcast %247 : vector<64x1xf32> to vector<64x256xf32>
    %250 = vector.broadcast %248 : vector<1x256xf32> to vector<64x256xf32>
    %251 = arith.subf %249, %250 : vector<64x256xf32>
    %252 = math.absf %251 : vector<64x256xf32>
    %253 = arith.addf %246, %252 : vector<64x256xf32>
    %c64_112 = arith.constant 64 : index
    %c3_113 = arith.constant 3 : index
    %254 = vector.load %arg2[%c64_112, %c3_113] : memref<128x32xf32, #tpu.memory_space<vmem>>, vector<64x1xf32>
    %c3_114 = arith.constant 3 : index
    %c0_115 = arith.constant 0 : index
    %255 = vector.load %arg3[%c3_114, %c0_115] : memref<32x256xf32, #tpu.memory_space<vmem>>, vector<1x256xf32>
    %256 = vector.broadcast %254 : vector<64x1xf32> to vector<64x256xf32>
    %257 = vector.broadcast %255 : vector<1x256xf32> to vector<64x256xf32>
    %258 = arith.subf %256, %257 : vector<64x256xf32>
    %259 = math.absf %258 : vector<64x256xf32>
    %260 = arith.addf %253, %259 : vector<64x256xf32>
    %c64_116 = arith.constant 64 : index
    %c4_117 = arith.constant 4 : index
    %261 = vector.load %arg2[%c64_116, %c4_117] : memref<128x32xf32, #tpu.memory_space<vmem>>, vector<64x1xf32>
    %c4_118 = arith.constant 4 : index
    %c0_119 = arith.constant 0 : index
    %262 = vector.load %arg3[%c4_118, %c0_119] : memref<32x256xf32, #tpu.memory_space<vmem>>, vector<1x256xf32>
    %263 = vector.broadcast %261 : vector<64x1xf32> to vector<64x256xf32>
    %264 = vector.broadcast %262 : vector<1x256xf32> to vector<64x256xf32>
    %265 = arith.subf %263, %264 : vector<64x256xf32>
    %266 = math.absf %265 : vector<64x256xf32>
    %267 = arith.addf %260, %266 : vector<64x256xf32>
    %c64_120 = arith.constant 64 : index
    %c5_121 = arith.constant 5 : index
    %268 = vector.load %arg2[%c64_120, %c5_121] : memref<128x32xf32, #tpu.memory_space<vmem>>, vector<64x1xf32>
    %c5_122 = arith.constant 5 : index
    %c0_123 = arith.constant 0 : index
    %269 = vector.load %arg3[%c5_122, %c0_123] : memref<32x256xf32, #tpu.memory_space<vmem>>, vector<1x256xf32>
    %270 = vector.broadcast %268 : vector<64x1xf32> to vector<64x256xf32>
    %271 = vector.broadcast %269 : vector<1x256xf32> to vector<64x256xf32>
    %272 = arith.subf %270, %271 : vector<64x256xf32>
    %273 = math.absf %272 : vector<64x256xf32>
    %274 = arith.addf %267, %273 : vector<64x256xf32>
    %c64_124 = arith.constant 64 : index
    %c6_125 = arith.constant 6 : index
    %275 = vector.load %arg2[%c64_124, %c6_125] : memref<128x32xf32, #tpu.memory_space<vmem>>, vector<64x1xf32>
    %c6_126 = arith.constant 6 : index
    %c0_127 = arith.constant 0 : index
    %276 = vector.load %arg3[%c6_126, %c0_127] : memref<32x256xf32, #tpu.memory_space<vmem>>, vector<1x256xf32>
    %277 = vector.broadcast %275 : vector<64x1xf32> to vector<64x256xf32>
    %278 = vector.broadcast %276 : vector<1x256xf32> to vector<64x256xf32>
    %279 = arith.subf %277, %278 : vector<64x256xf32>
    %280 = math.absf %279 : vector<64x256xf32>
    %281 = arith.addf %274, %280 : vector<64x256xf32>
    %c64_128 = arith.constant 64 : index
    %c7_129 = arith.constant 7 : index
    %282 = vector.load %arg2[%c64_128, %c7_129] : memref<128x32xf32, #tpu.memory_space<vmem>>, vector<64x1xf32>
    %c7_130 = arith.constant 7 : index
    %c0_131 = arith.constant 0 : index
    %283 = vector.load %arg3[%c7_130, %c0_131] : memref<32x256xf32, #tpu.memory_space<vmem>>, vector<1x256xf32>
    %284 = vector.broadcast %282 : vector<64x1xf32> to vector<64x256xf32>
    %285 = vector.broadcast %283 : vector<1x256xf32> to vector<64x256xf32>
    %286 = arith.subf %284, %285 : vector<64x256xf32>
    %287 = math.absf %286 : vector<64x256xf32>
    %288 = arith.addf %281, %287 : vector<64x256xf32>
    %c64_132 = arith.constant 64 : index
    %c8_133 = arith.constant 8 : index
    %289 = vector.load %arg2[%c64_132, %c8_133] : memref<128x32xf32, #tpu.memory_space<vmem>>, vector<64x1xf32>
    %c8_134 = arith.constant 8 : index
    %c0_135 = arith.constant 0 : index
    %290 = vector.load %arg3[%c8_134, %c0_135] : memref<32x256xf32, #tpu.memory_space<vmem>>, vector<1x256xf32>
    %291 = vector.broadcast %289 : vector<64x1xf32> to vector<64x256xf32>
    %292 = vector.broadcast %290 : vector<1x256xf32> to vector<64x256xf32>
    %293 = arith.subf %291, %292 : vector<64x256xf32>
    %294 = math.absf %293 : vector<64x256xf32>
    %295 = arith.addf %288, %294 : vector<64x256xf32>
    %c64_136 = arith.constant 64 : index
    %c9_137 = arith.constant 9 : index
    %296 = vector.load %arg2[%c64_136, %c9_137] : memref<128x32xf32, #tpu.memory_space<vmem>>, vector<64x1xf32>
    %c9_138 = arith.constant 9 : index
    %c0_139 = arith.constant 0 : index
    %297 = vector.load %arg3[%c9_138, %c0_139] : memref<32x256xf32, #tpu.memory_space<vmem>>, vector<1x256xf32>
    %298 = vector.broadcast %296 : vector<64x1xf32> to vector<64x256xf32>
    %299 = vector.broadcast %297 : vector<1x256xf32> to vector<64x256xf32>
    %300 = arith.subf %298, %299 : vector<64x256xf32>
    %301 = math.absf %300 : vector<64x256xf32>
    %302 = arith.addf %295, %301 : vector<64x256xf32>
    %c64_140 = arith.constant 64 : index
    %c10_141 = arith.constant 10 : index
    %303 = vector.load %arg2[%c64_140, %c10_141] : memref<128x32xf32, #tpu.memory_space<vmem>>, vector<64x1xf32>
    %c10_142 = arith.constant 10 : index
    %c0_143 = arith.constant 0 : index
    %304 = vector.load %arg3[%c10_142, %c0_143] : memref<32x256xf32, #tpu.memory_space<vmem>>, vector<1x256xf32>
    %305 = vector.broadcast %303 : vector<64x1xf32> to vector<64x256xf32>
    %306 = vector.broadcast %304 : vector<1x256xf32> to vector<64x256xf32>
    %307 = arith.subf %305, %306 : vector<64x256xf32>
    %308 = math.absf %307 : vector<64x256xf32>
    %309 = arith.addf %302, %308 : vector<64x256xf32>
    %c64_144 = arith.constant 64 : index
    %c11_145 = arith.constant 11 : index
    %310 = vector.load %arg2[%c64_144, %c11_145] : memref<128x32xf32, #tpu.memory_space<vmem>>, vector<64x1xf32>
    %c11_146 = arith.constant 11 : index
    %c0_147 = arith.constant 0 : index
    %311 = vector.load %arg3[%c11_146, %c0_147] : memref<32x256xf32, #tpu.memory_space<vmem>>, vector<1x256xf32>
    %312 = vector.broadcast %310 : vector<64x1xf32> to vector<64x256xf32>
    %313 = vector.broadcast %311 : vector<1x256xf32> to vector<64x256xf32>
    %314 = arith.subf %312, %313 : vector<64x256xf32>
    %315 = math.absf %314 : vector<64x256xf32>
    %316 = arith.addf %309, %315 : vector<64x256xf32>
    %c64_148 = arith.constant 64 : index
    %c12_149 = arith.constant 12 : index
    %317 = vector.load %arg2[%c64_148, %c12_149] : memref<128x32xf32, #tpu.memory_space<vmem>>, vector<64x1xf32>
    %c12_150 = arith.constant 12 : index
    %c0_151 = arith.constant 0 : index
    %318 = vector.load %arg3[%c12_150, %c0_151] : memref<32x256xf32, #tpu.memory_space<vmem>>, vector<1x256xf32>
    %319 = vector.broadcast %317 : vector<64x1xf32> to vector<64x256xf32>
    %320 = vector.broadcast %318 : vector<1x256xf32> to vector<64x256xf32>
    %321 = arith.subf %319, %320 : vector<64x256xf32>
    %322 = math.absf %321 : vector<64x256xf32>
    %323 = arith.addf %316, %322 : vector<64x256xf32>
    %c64_152 = arith.constant 64 : index
    %c13_153 = arith.constant 13 : index
    %324 = vector.load %arg2[%c64_152, %c13_153] : memref<128x32xf32, #tpu.memory_space<vmem>>, vector<64x1xf32>
    %c13_154 = arith.constant 13 : index
    %c0_155 = arith.constant 0 : index
    %325 = vector.load %arg3[%c13_154, %c0_155] : memref<32x256xf32, #tpu.memory_space<vmem>>, vector<1x256xf32>
    %326 = vector.broadcast %324 : vector<64x1xf32> to vector<64x256xf32>
    %327 = vector.broadcast %325 : vector<1x256xf32> to vector<64x256xf32>
    %328 = arith.subf %326, %327 : vector<64x256xf32>
    %329 = math.absf %328 : vector<64x256xf32>
    %330 = arith.addf %323, %329 : vector<64x256xf32>
    %c64_156 = arith.constant 64 : index
    %c14_157 = arith.constant 14 : index
    %331 = vector.load %arg2[%c64_156, %c14_157] : memref<128x32xf32, #tpu.memory_space<vmem>>, vector<64x1xf32>
    %c14_158 = arith.constant 14 : index
    %c0_159 = arith.constant 0 : index
    %332 = vector.load %arg3[%c14_158, %c0_159] : memref<32x256xf32, #tpu.memory_space<vmem>>, vector<1x256xf32>
    %333 = vector.broadcast %331 : vector<64x1xf32> to vector<64x256xf32>
    %334 = vector.broadcast %332 : vector<1x256xf32> to vector<64x256xf32>
    %335 = arith.subf %333, %334 : vector<64x256xf32>
    %336 = math.absf %335 : vector<64x256xf32>
    %337 = arith.addf %330, %336 : vector<64x256xf32>
    %c64_160 = arith.constant 64 : index
    %c15_161 = arith.constant 15 : index
    %338 = vector.load %arg2[%c64_160, %c15_161] : memref<128x32xf32, #tpu.memory_space<vmem>>, vector<64x1xf32>
    %c15_162 = arith.constant 15 : index
    %c0_163 = arith.constant 0 : index
    %339 = vector.load %arg3[%c15_162, %c0_163] : memref<32x256xf32, #tpu.memory_space<vmem>>, vector<1x256xf32>
    %340 = vector.broadcast %338 : vector<64x1xf32> to vector<64x256xf32>
    %341 = vector.broadcast %339 : vector<1x256xf32> to vector<64x256xf32>
    %342 = arith.subf %340, %341 : vector<64x256xf32>
    %343 = math.absf %342 : vector<64x256xf32>
    %344 = arith.addf %337, %343 : vector<64x256xf32>
    %c64_164 = arith.constant 64 : index
    %c16_165 = arith.constant 16 : index
    %345 = vector.load %arg2[%c64_164, %c16_165] : memref<128x32xf32, #tpu.memory_space<vmem>>, vector<64x1xf32>
    %c16_166 = arith.constant 16 : index
    %c0_167 = arith.constant 0 : index
    %346 = vector.load %arg3[%c16_166, %c0_167] : memref<32x256xf32, #tpu.memory_space<vmem>>, vector<1x256xf32>
    %347 = vector.broadcast %345 : vector<64x1xf32> to vector<64x256xf32>
    %348 = vector.broadcast %346 : vector<1x256xf32> to vector<64x256xf32>
    %349 = arith.subf %347, %348 : vector<64x256xf32>
    %350 = math.absf %349 : vector<64x256xf32>
    %351 = arith.addf %344, %350 : vector<64x256xf32>
    %c64_168 = arith.constant 64 : index
    %c17_169 = arith.constant 17 : index
    %352 = vector.load %arg2[%c64_168, %c17_169] : memref<128x32xf32, #tpu.memory_space<vmem>>, vector<64x1xf32>
    %c17_170 = arith.constant 17 : index
    %c0_171 = arith.constant 0 : index
    %353 = vector.load %arg3[%c17_170, %c0_171] : memref<32x256xf32, #tpu.memory_space<vmem>>, vector<1x256xf32>
    %354 = vector.broadcast %352 : vector<64x1xf32> to vector<64x256xf32>
    %355 = vector.broadcast %353 : vector<1x256xf32> to vector<64x256xf32>
    %356 = arith.subf %354, %355 : vector<64x256xf32>
    %357 = math.absf %356 : vector<64x256xf32>
    %358 = arith.addf %351, %357 : vector<64x256xf32>
    %c64_172 = arith.constant 64 : index
    %c18_173 = arith.constant 18 : index
    %359 = vector.load %arg2[%c64_172, %c18_173] : memref<128x32xf32, #tpu.memory_space<vmem>>, vector<64x1xf32>
    %c18_174 = arith.constant 18 : index
    %c0_175 = arith.constant 0 : index
    %360 = vector.load %arg3[%c18_174, %c0_175] : memref<32x256xf32, #tpu.memory_space<vmem>>, vector<1x256xf32>
    %361 = vector.broadcast %359 : vector<64x1xf32> to vector<64x256xf32>
    %362 = vector.broadcast %360 : vector<1x256xf32> to vector<64x256xf32>
    %363 = arith.subf %361, %362 : vector<64x256xf32>
    %364 = math.absf %363 : vector<64x256xf32>
    %365 = arith.addf %358, %364 : vector<64x256xf32>
    %c64_176 = arith.constant 64 : index
    %c19_177 = arith.constant 19 : index
    %366 = vector.load %arg2[%c64_176, %c19_177] : memref<128x32xf32, #tpu.memory_space<vmem>>, vector<64x1xf32>
    %c19_178 = arith.constant 19 : index
    %c0_179 = arith.constant 0 : index
    %367 = vector.load %arg3[%c19_178, %c0_179] : memref<32x256xf32, #tpu.memory_space<vmem>>, vector<1x256xf32>
    %368 = vector.broadcast %366 : vector<64x1xf32> to vector<64x256xf32>
    %369 = vector.broadcast %367 : vector<1x256xf32> to vector<64x256xf32>
    %370 = arith.subf %368, %369 : vector<64x256xf32>
    %371 = math.absf %370 : vector<64x256xf32>
    %372 = arith.addf %365, %371 : vector<64x256xf32>
    %c64_180 = arith.constant 64 : index
    %c20_181 = arith.constant 20 : index
    %373 = vector.load %arg2[%c64_180, %c20_181] : memref<128x32xf32, #tpu.memory_space<vmem>>, vector<64x1xf32>
    %c20_182 = arith.constant 20 : index
    %c0_183 = arith.constant 0 : index
    %374 = vector.load %arg3[%c20_182, %c0_183] : memref<32x256xf32, #tpu.memory_space<vmem>>, vector<1x256xf32>
    %375 = vector.broadcast %373 : vector<64x1xf32> to vector<64x256xf32>
    %376 = vector.broadcast %374 : vector<1x256xf32> to vector<64x256xf32>
    %377 = arith.subf %375, %376 : vector<64x256xf32>
    %378 = math.absf %377 : vector<64x256xf32>
    %379 = arith.addf %372, %378 : vector<64x256xf32>
    %c64_184 = arith.constant 64 : index
    %c21_185 = arith.constant 21 : index
    %380 = vector.load %arg2[%c64_184, %c21_185] : memref<128x32xf32, #tpu.memory_space<vmem>>, vector<64x1xf32>
    %c21_186 = arith.constant 21 : index
    %c0_187 = arith.constant 0 : index
    %381 = vector.load %arg3[%c21_186, %c0_187] : memref<32x256xf32, #tpu.memory_space<vmem>>, vector<1x256xf32>
    %382 = vector.broadcast %380 : vector<64x1xf32> to vector<64x256xf32>
    %383 = vector.broadcast %381 : vector<1x256xf32> to vector<64x256xf32>
    %384 = arith.subf %382, %383 : vector<64x256xf32>
    %385 = math.absf %384 : vector<64x256xf32>
    %386 = arith.addf %379, %385 : vector<64x256xf32>
    %c64_188 = arith.constant 64 : index
    %c22_189 = arith.constant 22 : index
    %387 = vector.load %arg2[%c64_188, %c22_189] : memref<128x32xf32, #tpu.memory_space<vmem>>, vector<64x1xf32>
    %c22_190 = arith.constant 22 : index
    %c0_191 = arith.constant 0 : index
    %388 = vector.load %arg3[%c22_190, %c0_191] : memref<32x256xf32, #tpu.memory_space<vmem>>, vector<1x256xf32>
    %389 = vector.broadcast %387 : vector<64x1xf32> to vector<64x256xf32>
    %390 = vector.broadcast %388 : vector<1x256xf32> to vector<64x256xf32>
    %391 = arith.subf %389, %390 : vector<64x256xf32>
    %392 = math.absf %391 : vector<64x256xf32>
    %393 = arith.addf %386, %392 : vector<64x256xf32>
    %c64_192 = arith.constant 64 : index
    %c23_193 = arith.constant 23 : index
    %394 = vector.load %arg2[%c64_192, %c23_193] : memref<128x32xf32, #tpu.memory_space<vmem>>, vector<64x1xf32>
    %c23_194 = arith.constant 23 : index
    %c0_195 = arith.constant 0 : index
    %395 = vector.load %arg3[%c23_194, %c0_195] : memref<32x256xf32, #tpu.memory_space<vmem>>, vector<1x256xf32>
    %396 = vector.broadcast %394 : vector<64x1xf32> to vector<64x256xf32>
    %397 = vector.broadcast %395 : vector<1x256xf32> to vector<64x256xf32>
    %398 = arith.subf %396, %397 : vector<64x256xf32>
    %399 = math.absf %398 : vector<64x256xf32>
    %400 = arith.addf %393, %399 : vector<64x256xf32>
    %c64_196 = arith.constant 64 : index
    %c24_197 = arith.constant 24 : index
    %401 = vector.load %arg2[%c64_196, %c24_197] : memref<128x32xf32, #tpu.memory_space<vmem>>, vector<64x1xf32>
    %c24_198 = arith.constant 24 : index
    %c0_199 = arith.constant 0 : index
    %402 = vector.load %arg3[%c24_198, %c0_199] : memref<32x256xf32, #tpu.memory_space<vmem>>, vector<1x256xf32>
    %403 = vector.broadcast %401 : vector<64x1xf32> to vector<64x256xf32>
    %404 = vector.broadcast %402 : vector<1x256xf32> to vector<64x256xf32>
    %405 = arith.subf %403, %404 : vector<64x256xf32>
    %406 = math.absf %405 : vector<64x256xf32>
    %407 = arith.addf %400, %406 : vector<64x256xf32>
    %c64_200 = arith.constant 64 : index
    %c25_201 = arith.constant 25 : index
    %408 = vector.load %arg2[%c64_200, %c25_201] : memref<128x32xf32, #tpu.memory_space<vmem>>, vector<64x1xf32>
    %c25_202 = arith.constant 25 : index
    %c0_203 = arith.constant 0 : index
    %409 = vector.load %arg3[%c25_202, %c0_203] : memref<32x256xf32, #tpu.memory_space<vmem>>, vector<1x256xf32>
    %410 = vector.broadcast %408 : vector<64x1xf32> to vector<64x256xf32>
    %411 = vector.broadcast %409 : vector<1x256xf32> to vector<64x256xf32>
    %412 = arith.subf %410, %411 : vector<64x256xf32>
    %413 = math.absf %412 : vector<64x256xf32>
    %414 = arith.addf %407, %413 : vector<64x256xf32>
    %c64_204 = arith.constant 64 : index
    %c26_205 = arith.constant 26 : index
    %415 = vector.load %arg2[%c64_204, %c26_205] : memref<128x32xf32, #tpu.memory_space<vmem>>, vector<64x1xf32>
    %c26_206 = arith.constant 26 : index
    %c0_207 = arith.constant 0 : index
    %416 = vector.load %arg3[%c26_206, %c0_207] : memref<32x256xf32, #tpu.memory_space<vmem>>, vector<1x256xf32>
    %417 = vector.broadcast %415 : vector<64x1xf32> to vector<64x256xf32>
    %418 = vector.broadcast %416 : vector<1x256xf32> to vector<64x256xf32>
    %419 = arith.subf %417, %418 : vector<64x256xf32>
    %420 = math.absf %419 : vector<64x256xf32>
    %421 = arith.addf %414, %420 : vector<64x256xf32>
    %c64_208 = arith.constant 64 : index
    %c27_209 = arith.constant 27 : index
    %422 = vector.load %arg2[%c64_208, %c27_209] : memref<128x32xf32, #tpu.memory_space<vmem>>, vector<64x1xf32>
    %c27_210 = arith.constant 27 : index
    %c0_211 = arith.constant 0 : index
    %423 = vector.load %arg3[%c27_210, %c0_211] : memref<32x256xf32, #tpu.memory_space<vmem>>, vector<1x256xf32>
    %424 = vector.broadcast %422 : vector<64x1xf32> to vector<64x256xf32>
    %425 = vector.broadcast %423 : vector<1x256xf32> to vector<64x256xf32>
    %426 = arith.subf %424, %425 : vector<64x256xf32>
    %427 = math.absf %426 : vector<64x256xf32>
    %428 = arith.addf %421, %427 : vector<64x256xf32>
    %c64_212 = arith.constant 64 : index
    %c28_213 = arith.constant 28 : index
    %429 = vector.load %arg2[%c64_212, %c28_213] : memref<128x32xf32, #tpu.memory_space<vmem>>, vector<64x1xf32>
    %c28_214 = arith.constant 28 : index
    %c0_215 = arith.constant 0 : index
    %430 = vector.load %arg3[%c28_214, %c0_215] : memref<32x256xf32, #tpu.memory_space<vmem>>, vector<1x256xf32>
    %431 = vector.broadcast %429 : vector<64x1xf32> to vector<64x256xf32>
    %432 = vector.broadcast %430 : vector<1x256xf32> to vector<64x256xf32>
    %433 = arith.subf %431, %432 : vector<64x256xf32>
    %434 = math.absf %433 : vector<64x256xf32>
    %435 = arith.addf %428, %434 : vector<64x256xf32>
    %c64_216 = arith.constant 64 : index
    %c29_217 = arith.constant 29 : index
    %436 = vector.load %arg2[%c64_216, %c29_217] : memref<128x32xf32, #tpu.memory_space<vmem>>, vector<64x1xf32>
    %c29_218 = arith.constant 29 : index
    %c0_219 = arith.constant 0 : index
    %437 = vector.load %arg3[%c29_218, %c0_219] : memref<32x256xf32, #tpu.memory_space<vmem>>, vector<1x256xf32>
    %438 = vector.broadcast %436 : vector<64x1xf32> to vector<64x256xf32>
    %439 = vector.broadcast %437 : vector<1x256xf32> to vector<64x256xf32>
    %440 = arith.subf %438, %439 : vector<64x256xf32>
    %441 = math.absf %440 : vector<64x256xf32>
    %442 = arith.addf %435, %441 : vector<64x256xf32>
    %c64_220 = arith.constant 64 : index
    %c30_221 = arith.constant 30 : index
    %443 = vector.load %arg2[%c64_220, %c30_221] : memref<128x32xf32, #tpu.memory_space<vmem>>, vector<64x1xf32>
    %c30_222 = arith.constant 30 : index
    %c0_223 = arith.constant 0 : index
    %444 = vector.load %arg3[%c30_222, %c0_223] : memref<32x256xf32, #tpu.memory_space<vmem>>, vector<1x256xf32>
    %445 = vector.broadcast %443 : vector<64x1xf32> to vector<64x256xf32>
    %446 = vector.broadcast %444 : vector<1x256xf32> to vector<64x256xf32>
    %447 = arith.subf %445, %446 : vector<64x256xf32>
    %448 = math.absf %447 : vector<64x256xf32>
    %449 = arith.addf %442, %448 : vector<64x256xf32>
    %c64_224 = arith.constant 64 : index
    %c31_225 = arith.constant 31 : index
    %450 = vector.load %arg2[%c64_224, %c31_225] : memref<128x32xf32, #tpu.memory_space<vmem>>, vector<64x1xf32>
    %c31_226 = arith.constant 31 : index
    %c0_227 = arith.constant 0 : index
    %451 = vector.load %arg3[%c31_226, %c0_227] : memref<32x256xf32, #tpu.memory_space<vmem>>, vector<1x256xf32>
    %452 = vector.broadcast %450 : vector<64x1xf32> to vector<64x256xf32>
    %453 = vector.broadcast %451 : vector<1x256xf32> to vector<64x256xf32>
    %454 = arith.subf %452, %453 : vector<64x256xf32>
    %455 = math.absf %454 : vector<64x256xf32>
    %456 = arith.addf %449, %455 : vector<64x256xf32>
    %cst_228 = arith.constant 0.000000e+00 : f32
    %457 = vector.broadcast %cst_228 : f32 to vector<64x256xf32>
    %458 = arith.subf %457, %456 : vector<64x256xf32>
    %459 = math.exp %458 : vector<64x256xf32>
    %cst_229 = arith.constant 1.000000e+00 : f32
    %460 = vector.broadcast %cst_229 : f32 to vector<64x256xf32>
    %461 = arith.addf %460, %459 : vector<64x256xf32>
    %462 = tpu.reciprocal %461 {approx = true} : vector<64x256xf32> -> vector<64x256xf32>
    %c64_230 = arith.constant 64 : index
    %c0_231 = arith.constant 0 : index
    %463 = vector.load %arg4[%c64_230, %c0_231] : memref<128x256xf32, #tpu.memory_space<vmem>>, vector<64x256xf32>
    tpu.vector_store %arg4[%c64_230, %c0_231], %462 {strides = array<i32>} : memref<128x256xf32, #tpu.memory_space<vmem>>, vector<64x256xf32>,
    return
  }
  func.func @transform_0(%arg0: i32, %arg1: i32) -> (i32, i32) {
    %c0_i32 = arith.constant 0 : i32
    %c0_i32_0 = arith.constant 0 : i32
    return %arg0, %c0_i32 : i32, i32
  }
  func.func @transform_1(%arg0: i32, %arg1: i32) -> (i32, i32) {
    %c0_i32 = arith.constant 0 : i32
    %c0_i32_0 = arith.constant 0 : i32
    return %c0_i32, %arg1 : i32, i32
  }
  func.func @transform_2(%arg0: i32, %arg1: i32) -> (i32, i32) {
    %c0_i32 = arith.constant 0 : i32
    return %arg0, %arg1 : i32, i32
  }
}

</mosaic_0001>

<llo_original>
// kernel: tpu_custom_call.1
$region0: #{tpu_custom_call.1}
  #allocation0 [shape = 'u32[]', space=smem, size = 0x4, offset = 0x4, fixed_abs, tag = 'smem constant byte address 0x4 - core index']
  #allocation1 [shape = 'u32[144,128]{1,0:T(1,128)}', space=vmem, size = 0x12000, scoped, tag = 'internal scratch']
  %s0 = inlined_call_operand.vmem [shape: f32[256,32], index: 0, kind: input, shape index: {}]
  %s1 = inlined_call_operand.vmem [shape: f32[32,256], index: 1, kind: input, shape index: {}]
  %s2 = inlined_call_operand.hbm [shape: f32[256,256], index: 2, kind: output, shape index: {}]
  %s3 = sld [smem:[#allocation0]]
  $region41: #{tpu_custom_call.1} parent=0
    _
  %s5 = ssub.s32 1, %s3
  %s6 = scalar_select 0, %s5, %s3
  $region1: #{tpu_custom_call.1} parent=0
    #allocation2 [shape = 'u8[262144]{0}', space=vmem, size = 0x40000, scoped, tag = 'output window, operand 0']
    #allocation3 [shape = 's32[2]{0}', space=sflag, size = 0x8, scoped, tag = 'scoped memory for tpu_custom_call.1']
    %7 = vsyncpa [#allocation3], 0
    %s8 = scalar_lea.sflag [#allocation3], 1
    %9 = vsyncpa %s8, 0
    loop: start=0, step=1, limit=4
    $region2: #{tpu_custom_call.1} parent=1 // loop_pre_header
      _
    $region3: #{tpu_custom_call.1} parent=1 // loop_header
      %s11 = sphi 0, %s15
      %p12 = scmp.ge.s32.totalorder %s11, 4
      %s18 = sphi 0, %s30
      %s19 = sphi 0, %s26
      %s20 = sphi 0, %s18
      %s21 = sphi 0, %s19
      %s22 = sphi 0, %s20
      %s23 = sphi 0, %s21
      %s33 = sphi 0, %s35
      %s36 = sphi 0, %s33
      %s37 = sphi 0, %s36
      %s53 = sphi 0, %s37
      %s59 = sphi 0, %s61
      %s62 = sphi 0, %s59
      %s63 = sphi 0, %s62
      %s79 = sphi 0, %s63
      %s87 = sphi 0, %s89
      %s90 = sphi 0, %s87
      %s91 = sphi 0, %s90
      %s107 = sphi 0, %s91
    $region4: #{tpu_custom_call.1} parent=1 // loop_header_branch
      %14 = sbr.rel (%p12) target = $region8
    $region5: #{tpu_custom_call.1} parent=1 // loop_body
      %s16 = ssub.s32 %s11, 1
      %s17 = ssub.s32 %s11, 2
      %s24 = sadd.s32 1, %s19
      %p25 = scmp.ge.s32.totalorder %s24, 1
      %s26 = scalar_select %p25, 0, %s24
      %s27 = sadd.s32 1, %s18
      %s28 = scalar_select %p25, %s27, %s18
      %p29 = scmp.ge.s32.totalorder %s28, 2
      %s30 = scalar_select %p29, 0, %s28
      %s31 = ssub.s32 %s18, %s30
      %p32 = scmp.eq.s32.totalorder %s31, 0
      %s34 = sadd.s32 %s33, 1
      %s35 = scalar_select %p32, %s33, %s34
      %p38 = pneg %p32
      %p39 = scmp.eq.s32.totalorder %s11, 1
      %p40 = por %p38, %p39
      %p41 = scmp.ne.s32.totalorder %s33, %s36
      %p42 = scmp.eq.s32.totalorder %s11, 0
      %p43 = por %p41, %p42
      %p44 = scmp.ne.s32.totalorder %s33, %s36
      %p45 = scmp.eq.s32.totalorder %s16, 1
      %p46 = por %p44, %p45
      %p47 = scmp.ne.s32.totalorder %s36, %s37
      %p48 = scmp.eq.s32.totalorder %s16, 0
      %p49 = por %p47, %p48
      %p50 = scmp.ne.s32.totalorder %s36, %s37
      %p51 = scmp.eq.s32.totalorder %s17, 1
      %p52 = por %p50, %p51
      %p54 = scmp.ne.s32.totalorder %s37, %s53
      %p55 = scmp.eq.s32.totalorder %s17, 0
      %p56 = por %p54, %p55
      %s57 = ssub.s32 %s19, %s26
      %p58 = scmp.eq.s32.totalorder %s57, 0
      %s60 = sadd.s32 %s59, 1
      %s61 = scalar_select %p58, %s59, %s60
      %p64 = pneg %p58
      %p65 = scmp.eq.s32.totalorder %s11, 1
      %p66 = por %p64, %p65
      %p67 = scmp.ne.s32.totalorder %s59, %s62
      %p68 = scmp.eq.s32.totalorder %s11, 0
      %p69 = por %p67, %p68
      %p70 = scmp.ne.s32.totalorder %s59, %s62
      %p71 = scmp.eq.s32.totalorder %s16, 1
      %p72 = por %p70, %p71
      %p73 = scmp.ne.s32.totalorder %s62, %s63
      %p74 = scmp.eq.s32.totalorder %s16, 0
      %p75 = por %p73, %p74
      %p76 = scmp.ne.s32.totalorder %s62, %s63
      %p77 = scmp.eq.s32.totalorder %s17, 1
      %p78 = por %p76, %p77
      %p80 = scmp.ne.s32.totalorder %s63, %s79
      %p81 = scmp.eq.s32.totalorder %s17, 0
      %p82 = por %p80, %p81
      %s83 = ssub.s32 %s18, %s30
      %s84 = ssub.s32 %s19, %s26
      %s85 = sor.u32 %s83, %s84
      %p86 = scmp.eq.s32.totalorder %s85, 0
      %s88 = sadd.s32 %s87, 1
      %s89 = scalar_select %p86, %s87, %s88
      %p92 = pneg %p86
      %p93 = scmp.eq.s32.totalorder %s11, 1
      %p94 = por %p92, %p93
      %p95 = scmp.ne.s32.totalorder %s87, %s90
      %p96 = scmp.eq.s32.totalorder %s11, 0
      %p97 = por %p95, %p96
      %p98 = scmp.ne.s32.totalorder %s87, %s90
      %p99 = scmp.eq.s32.totalorder %s16, 1
      %p100 = por %p98, %p99
      %p101 = scmp.ne.s32.totalorder %s90, %s91
      %p102 = scmp.eq.s32.totalorder %s16, 0
      %p103 = por %p101, %p102
      %p104 = scmp.ne.s32.totalorder %s90, %s91
      %p105 = scmp.eq.s32.totalorder %s17, 1
      %p106 = por %p104, %p105
      %p108 = scmp.ne.s32.totalorder %s91, %s107
      %p109 = scmp.eq.s32.totalorder %s17, 0
      %p110 = por %p108, %p109
      %p111 = scmp.le.s32.totalorder 1, %s11
      %p112 = scmp.lt.s32.totalorder %s11, 3
      %p113 = pnand %p111, %p112
      %p114 = pneg %p113
      // Predicated region
      $region9: #{tpu_custom_call.1} parent=5 // pred_check
        _
      $region10: #{tpu_custom_call.1} parent=5 // pred_check_branch
        %116 = sbr.rel (%p113) target = $region12
      $region11: #{tpu_custom_call.1} parent=5 // pred_region
        %s117 = ssub.s32 %s11, 1
        // Predicated region
        $region13: #{tpu_custom_call.1} parent=11 // pred_check
          %p118 = pneg %p75
        $region14: #{tpu_custom_call.1} parent=11 // pred_check_branch
          %120 = sbr.rel (%p118) target = $region16
        $region15: #{tpu_custom_call.1} parent=11 // pred_region
          %s121 = smul.u32 2, %s21
          %p122 = scmp.lt.s32.totalorder %s121, 1
          %s123 = scalar_select %p122, %s121, 1
          %s124 = smul.addr %s123, 8
          %s125 = scalar_lea.vmem %s1, %s124
          %s126 = smul.u32 2, %s21
        $region16: #{tpu_custom_call.1} parent=11 // pred_fallthru
          _
      $region12: #{tpu_custom_call.1} parent=5 // pred_fallthru
        _
      %p127 = scmp.lt.s32.totalorder %s11, 2
      // Predicated region
      $region17: #{tpu_custom_call.1} parent=5 // pred_check
        %p128 = pneg %p127
      $region18: #{tpu_custom_call.1} parent=5 // pred_check_branch
        %130 = sbr.rel (%p128) target = $region20
      $region19: #{tpu_custom_call.1} parent=5 // pred_region
        // Predicated region
        $region21: #{tpu_custom_call.1} parent=19 // pred_check
          %p131 = pneg %p43
        $region22: #{tpu_custom_call.1} parent=19 // pred_check_branch
          %133 = sbr.rel (%p131) target = $region24
        $region23: #{tpu_custom_call.1} parent=19 // pred_region
          %s134 = smul.u32 16, %s18
          %p135 = scmp.lt.s32.totalorder %s134, 31
          %s136 = scalar_select %p135, %s134, 31
          %s137 = smul.addr %s136, 8
          %s138 = scalar_lea.vmem %s0, %s137
          %s139 = smul.u32 16, %s18
        $region24: #{tpu_custom_call.1} parent=19 // pred_fallthru
          _
      $region20: #{tpu_custom_call.1} parent=5 // pred_fallthru
        _
      %p140 = scmp.le.s32.totalorder 1, %s11
      %p141 = scmp.lt.s32.totalorder %s11, 3
      %p142 = pnand %p140, %p141
      %p143 = pneg %p142
      // Predicated region
      $region25: #{tpu_custom_call.1} parent=5 // pred_check
        _
      $region26: #{tpu_custom_call.1} parent=5 // pred_check_branch
        %145 = sbr.rel (%p142) target = $region28
      $region27: #{tpu_custom_call.1} parent=5 // pred_region
        %s146 = ssub.s32 %s11, 1
        %s147 = smul.u32 16, %s20
        %p148 = scmp.lt.s32.totalorder %s147, 31
        %s149 = scalar_select %p148, %s147, 31
        %s150 = smul.addr %s149, 8
        %s151 = scalar_lea.vmem %s0, %s150
        %p152 = pneg %p49
        %p153 = pneg %p46
        %s154 = smul.u32 2, %s21
        %p155 = scmp.lt.s32.totalorder %s154, 1
        %s156 = scalar_select %p155, %s154, 1
        %s157 = smul.addr %s156, 8
        %s158 = scalar_lea.vmem %s1, %s157
        %p159 = pneg %p75
        %p160 = pneg %p72
        %p161 = pneg %p103
        %p162 = pneg %p100
        %s163 = sand.u32 %s90, 1
        %s164 = scalar_lea.sflag [#allocation3], %s163
        %s165 = sand.u32 %s90, 1
        %s166 = smul.addr %s165, 256
        %s167 = scalar_lea.vmem [#allocation2], %s166
        %s168 = smul.u32 16, %s20
        %p169 = scmp.lt.s32.totalorder %s168, 31
        %s170 = scalar_select %p169, %s168, 31
        %s171 = smul.addr %s170, 8
        %s172 = scalar_lea.vmem %s0, %s171
        %s173 = smul.u32 16, %s20
        %s174 = smul.u32 2, %s21
        %p175 = scmp.lt.s32.totalorder %s174, 1
        %s176 = scalar_select %p175, %s174, 1
        %s177 = smul.addr %s176, 8
        %s178 = scalar_lea.vmem %s1, %s177
        %s179 = smul.u32 2, %s21
        %s180 = smul.u32 16, %s20
        %s181 = smul.u32 2, %s21
        %v182 = vld [vmem:[%s172] sm:$0xff]
        %v183 = vld [vmem:[%s172 + $0x8] sm:$0xff]
        %v184 = vld [vmem:[%s172 + $0x10] sm:$0xff]
        %v185 = vld [vmem:[%s172 + $0x18] sm:$0xff]
        %v186 = vld [vmem:[%s172 + $0x20] sm:$0xff]
        %v187 = vld [vmem:[%s172 + $0x28] sm:$0xff]
        %v188 = vld [vmem:[%s172 + $0x30] sm:$0xff]
        %v189 = vld [vmem:[%s172 + $0x38] sm:$0xff]
        %v190 = vld [vmem:[%s178] ss:$8 sm:$0x3]
        %192 = vset.pattern.permute.xlu0 0
        %193 = vperm.xlu0 %192, %v182
        %v194 = vpop.permute.xlu0 %193
        %197 = vset.pattern.permute.xlu0 0
        %198 = vperm.xlu0 %197, %v183
        %v199 = vpop.permute.xlu0 %198
        %202 = vset.pattern.permute.xlu0 0
        %203 = vperm.xlu0 %202, %v184
        %v204 = vpop.permute.xlu0 %203
        %207 = vset.pattern.permute.xlu0 0
        %208 = vperm.xlu0 %207, %v185
        %v209 = vpop.permute.xlu0 %208
        %212 = vset.pattern.permute.xlu0 0
        %213 = vperm.xlu0 %212, %v186
        %v214 = vpop.permute.xlu0 %213
        %217 = vset.pattern.permute.xlu0 0
        %218 = vperm.xlu0 %217, %v187
        %v219 = vpop.permute.xlu0 %218
        %222 = vset.pattern.permute.xlu0 0
        %223 = vperm.xlu0 %222, %v188
        %v224 = vpop.permute.xlu0 %223
        %227 = vset.pattern.permute.xlu0 0
        %228 = vperm.xlu0 %227, %v189
        %v229 = vpop.permute.xlu0 %228
        %v232 = vlaneseq
        %v233 = vshrl.u32 %v232, 7
        %v234 = vsub.s32 0, %v233
        %v235 = vrot.slane %v190, %v234
        %v236 = vlaneseq
        %v237 = vshrl.u32 %v236, 7
        %v238 = vsub.s32 1, %v237
        %v239 = vrot.slane %v190, %v238
        %v242 = vsub.f32 %v194, %v235
        %v243 = vsub.f32 %v194, %v239
        %v244 = vsub.f32 %v199, %v235
        %v245 = vsub.f32 %v199, %v239
        %v246 = vsub.f32 %v204, %v235
        %v247 = vsub.f32 %v204, %v239
        %v248 = vsub.f32 %v209, %v235
        %v249 = vsub.f32 %v209, %v239
        %v250 = vsub.f32 %v214, %v235
        %v251 = vsub.f32 %v214, %v239
        %v252 = vsub.f32 %v219, %v235
        %v253 = vsub.f32 %v219, %v239
        %v254 = vsub.f32 %v224, %v235
        %v255 = vsub.f32 %v224, %v239
        %v256 = vsub.f32 %v229, %v235
        %v257 = vsub.f32 %v229, %v239
        %v258 = vand.u32 2147483647, %v242
        %v259 = vand.u32 2147483647, %v243
        %v260 = vand.u32 2147483647, %v244
        %v261 = vand.u32 2147483647, %v245
        %v262 = vand.u32 2147483647, %v246
        %v263 = vand.u32 2147483647, %v247
        %v264 = vand.u32 2147483647, %v248
        %v265 = vand.u32 2147483647, %v249
        %v266 = vand.u32 2147483647, %v250
        %v267 = vand.u32 2147483647, %v251
        %v268 = vand.u32 2147483647, %v252
        %v269 = vand.u32 2147483647, %v253
        %v270 = vand.u32 2147483647, %v254
        %v271 = vand.u32 2147483647, %v255
        %v272 = vand.u32 2147483647, %v256
        %v273 = vand.u32 2147483647, %v257
        %v274 = vadd.f32 %v258, 0.0
        %v275 = vadd.f32 %v259, 0.0
        %v276 = vadd.f32 %v260, 0.0
        %v277 = vadd.f32 %v261, 0.0
        %v278 = vadd.f32 %v262, 0.0
        %v279 = vadd.f32 %v263, 0.0
        %v280 = vadd.f32 %v264, 0.0
        %v281 = vadd.f32 %v265, 0.0
        %v282 = vadd.f32 %v266, 0.0
        %v283 = vadd.f32 %v267, 0.0
        %v284 = vadd.f32 %v268, 0.0
        %v285 = vadd.f32 %v269, 0.0
        %v286 = vadd.f32 %v270, 0.0
        %v287 = vadd.f32 %v271, 0.0
        %v288 = vadd.f32 %v272, 0.0
        %v289 = vadd.f32 %v273, 0.0
        %s290 = scalar_lea.vmem %s178, 1
        %v291 = vld [vmem:[%s290] ss:$8 sm:$0x3]
        %292 = vset.pattern.permute.xlu0 1
        %293 = vperm.xlu0 %292, %v182
        %v294 = vpop.permute.xlu0 %293
        %296 = vset.pattern.permute.xlu0 1
        %297 = vperm.xlu0 %296, %v183
        %v298 = vpop.permute.xlu0 %297
        %300 = vset.pattern.permute.xlu0 1
        %301 = vperm.xlu0 %300, %v184
        %v302 = vpop.permute.xlu0 %301
        %304 = vset.pattern.permute.xlu0 1
        %305 = vperm.xlu0 %304, %v185
        %v306 = vpop.permute.xlu0 %305
        %308 = vset.pattern.permute.xlu0 1
        %309 = vperm.xlu0 %308, %v186
        %v310 = vpop.permute.xlu0 %309
        %312 = vset.pattern.permute.xlu0 1
        %313 = vperm.xlu0 %312, %v187
        %v314 = vpop.permute.xlu0 %313
        %316 = vset.pattern.permute.xlu0 1
        %317 = vperm.xlu0 %316, %v188
        %v318 = vpop.permute.xlu0 %317
        %320 = vset.pattern.permute.xlu0 1
        %321 = vperm.xlu0 %320, %v189
        %v322 = vpop.permute.xlu0 %321
        %v325 = vlaneseq
        %v326 = vshrl.u32 %v325, 7
        %v327 = vsub.s32 0, %v326
        %v328 = vrot.slane %v291, %v327
        %v329 = vlaneseq
        %v330 = vshrl.u32 %v329, 7
        %v331 = vsub.s32 1, %v330
        %v332 = vrot.slane %v291, %v331
        %v335 = vsub.f32 %v294, %v328
        %v336 = vsub.f32 %v294, %v332
        %v337 = vsub.f32 %v298, %v328
        %v338 = vsub.f32 %v298, %v332
        %v339 = vsub.f32 %v302, %v328
        %v340 = vsub.f32 %v302, %v332
        %v341 = vsub.f32 %v306, %v328
        %v342 = vsub.f32 %v306, %v332
        %v343 = vsub.f32 %v310, %v328
        %v344 = vsub.f32 %v310, %v332
        %v345 = vsub.f32 %v314, %v328
        %v346 = vsub.f32 %v314, %v332
        %v347 = vsub.f32 %v318, %v328
        %v348 = vsub.f32 %v318, %v332
        %v349 = vsub.f32 %v322, %v328
        %v350 = vsub.f32 %v322, %v332
        %v351 = vand.u32 2147483647, %v335
        %v352 = vand.u32 2147483647, %v336
        %v353 = vand.u32 2147483647, %v337
        %v354 = vand.u32 2147483647, %v338
        %v355 = vand.u32 2147483647, %v339
        %v356 = vand.u32 2147483647, %v340
        %v357 = vand.u32 2147483647, %v341
        %v358 = vand.u32 2147483647, %v342
        %v359 = vand.u32 2147483647, %v343
        %v360 = vand.u32 2147483647, %v344
        %v361 = vand.u32 2147483647, %v345
        %v362 = vand.u32 2147483647, %v346
        %v363 = vand.u32 2147483647, %v347
        %v364 = vand.u32 2147483647, %v348
        %v365 = vand.u32 2147483647, %v349
        %v366 = vand.u32 2147483647, %v350
        %v367 = vadd.f32 %v274, %v351
        %v368 = vadd.f32 %v275, %v352
        %v369 = vadd.f32 %v276, %v353
        %v370 = vadd.f32 %v277, %v354
        %v371 = vadd.f32 %v278, %v355
        %v372 = vadd.f32 %v279, %v356
        %v373 = vadd.f32 %v280, %v357
        %v374 = vadd.f32 %v281, %v358
        %v375 = vadd.f32 %v282, %v359
        %v376 = vadd.f32 %v283, %v360
        %v377 = vadd.f32 %v284, %v361
        %v378 = vadd.f32 %v285, %v362
        %v379 = vadd.f32 %v286, %v363
        %v380 = vadd.f32 %v287, %v364
        %v381 = vadd.f32 %v288, %v365
        %v382 = vadd.f32 %v289, %v366
        %s383 = scalar_lea.vmem %s178, 2
        %v384 = vld [vmem:[%s383] ss:$8 sm:$0x3]
        %385 = vset.pattern.permute.xlu0 2
        %386 = vperm.xlu0 %385, %v182
        %v387 = vpop.permute.xlu0 %386
        %389 = vset.pattern.permute.xlu0 2
        %390 = vperm.xlu0 %389, %v183
        %v391 = vpop.permute.xlu0 %390
        %393 = vset.pattern.permute.xlu0 2
        %394 = vperm.xlu0 %393, %v184
        %v395 = vpop.permute.xlu0 %394
        %397 = vset.pattern.permute.xlu0 2
        %398 = vperm.xlu0 %397, %v185
        %v399 = vpop.permute.xlu0 %398
        %401 = vset.pattern.permute.xlu0 2
        %402 = vperm.xlu0 %401, %v186
        %v403 = vpop.permute.xlu0 %402
        %405 = vset.pattern.permute.xlu0 2
        %406 = vperm.xlu0 %405, %v187
        %v407 = vpop.permute.xlu0 %406
        %409 = vset.pattern.permute.xlu0 2
        %410 = vperm.xlu0 %409, %v188
        %v411 = vpop.permute.xlu0 %410
        %413 = vset.pattern.permute.xlu0 2
        %414 = vperm.xlu0 %413, %v189
        %v415 = vpop.permute.xlu0 %414
        %v418 = vlaneseq
        %v419 = vshrl.u32 %v418, 7
        %v420 = vsub.s32 0, %v419
        %v421 = vrot.slane %v384, %v420
        %v422 = vlaneseq
        %v423 = vshrl.u32 %v422, 7
        %v424 = vsub.s32 1, %v423
        %v425 = vrot.slane %v384, %v424
        %v428 = vsub.f32 %v387, %v421
        %v429 = vsub.f32 %v387, %v425
        %v430 = vsub.f32 %v391, %v421
        %v431 = vsub.f32 %v391, %v425
        %v432 = vsub.f32 %v395, %v421
        %v433 = vsub.f32 %v395, %v425
        %v434 = vsub.f32 %v399, %v421
        %v435 = vsub.f32 %v399, %v425
        %v436 = vsub.f32 %v403, %v421
        %v437 = vsub.f32 %v403, %v425
        %v438 = vsub.f32 %v407, %v421
        %v439 = vsub.f32 %v407, %v425
        %v440 = vsub.f32 %v411, %v421
        %v441 = vsub.f32 %v411, %v425
        %v442 = vsub.f32 %v415, %v421
        %v443 = vsub.f32 %v415, %v425
        %v444 = vand.u32 2147483647, %v428
        %v445 = vand.u32 2147483647, %v429
        %v446 = vand.u32 2147483647, %v430
        %v447 = vand.u32 2147483647, %v431
        %v448 = vand.u32 2147483647, %v432
        %v449 = vand.u32 2147483647, %v433
        %v450 = vand.u32 2147483647, %v434
        %v451 = vand.u32 2147483647, %v435
        %v452 = vand.u32 2147483647, %v436
        %v453 = vand.u32 2147483647, %v437
        %v454 = vand.u32 2147483647, %v438
        %v455 = vand.u32 2147483647, %v439
        %v456 = vand.u32 2147483647, %v440
        %v457 = vand.u32 2147483647, %v441
        %v458 = vand.u32 2147483647, %v442
        %v459 = vand.u32 2147483647, %v443
        %v460 = vadd.f32 %v367, %v444
        %v461 = vadd.f32 %v368, %v445
        %v462 = vadd.f32 %v369, %v446
        %v463 = vadd.f32 %v370, %v447
        %v464 = vadd.f32 %v371, %v448
        %v465 = vadd.f32 %v372, %v449
        %v466 = vadd.f32 %v373, %v450
        %v467 = vadd.f32 %v374, %v451
        %v468 = vadd.f32 %v375, %v452
        %v469 = vadd.f32 %v376, %v453
        %v470 = vadd.f32 %v377, %v454
        %v471 = vadd.f32 %v378, %v455
        %v472 = vadd.f32 %v379, %v456
        %v473 = vadd.f32 %v380, %v457
        %v474 = vadd.f32 %v381, %v458
        %v475 = vadd.f32 %v382, %v459
        %s476 = scalar_lea.vmem %s178, 3
        %v477 = vld [vmem:[%s476] ss:$8 sm:$0x3]
        %478 = vset.pattern.permute.xlu0 3
        %479 = vperm.xlu0 %478, %v182
        %v480 = vpop.permute.xlu0 %479
        %482 = vset.pattern.permute.xlu0 3
        %483 = vperm.xlu0 %482, %v183
        %v484 = vpop.permute.xlu0 %483
        %486 = vset.pattern.permute.xlu0 3
        %487 = vperm.xlu0 %486, %v184
        %v488 = vpop.permute.xlu0 %487
        %490 = vset.pattern.permute.xlu0 3
        %491 = vperm.xlu0 %490, %v185
        %v492 = vpop.permute.xlu0 %491
        %494 = vset.pattern.permute.xlu0 3
        %495 = vperm.xlu0 %494, %v186
        %v496 = vpop.permute.xlu0 %495
        %498 = vset.pattern.permute.xlu0 3
        %499 = vperm.xlu0 %498, %v187
        %v500 = vpop.permute.xlu0 %499
        %502 = vset.pattern.permute.xlu0 3
        %503 = vperm.xlu0 %502, %v188
        %v504 = vpop.permute.xlu0 %503
        %506 = vset.pattern.permute.xlu0 3
        %507 = vperm.xlu0 %506, %v189
        %v508 = vpop.permute.xlu0 %507
        %v511 = vlaneseq
        %v512 = vshrl.u32 %v511, 7
        %v513 = vsub.s32 0, %v512
        %v514 = vrot.slane %v477, %v513
        %v515 = vlaneseq
        %v516 = vshrl.u32 %v515, 7
        %v517 = vsub.s32 1, %v516
        %v518 = vrot.slane %v477, %v517
        %v521 = vsub.f32 %v480, %v514
        %v522 = vsub.f32 %v480, %v518
        %v523 = vsub.f32 %v484, %v514
        %v524 = vsub.f32 %v484, %v518
        %v525 = vsub.f32 %v488, %v514
        %v526 = vsub.f32 %v488, %v518
        %v527 = vsub.f32 %v492, %v514
        %v528 = vsub.f32 %v492, %v518
        %v529 = vsub.f32 %v496, %v514
        %v530 = vsub.f32 %v496, %v518
        %v531 = vsub.f32 %v500, %v514
        %v532 = vsub.f32 %v500, %v518
        %v533 = vsub.f32 %v504, %v514
        %v534 = vsub.f32 %v504, %v518
        %v535 = vsub.f32 %v508, %v514
        %v536 = vsub.f32 %v508, %v518
        %v537 = vand.u32 2147483647, %v521
        %v538 = vand.u32 2147483647, %v522
        %v539 = vand.u32 2147483647, %v523
        %v540 = vand.u32 2147483647, %v524
        %v541 = vand.u32 2147483647, %v525
        %v542 = vand.u32 2147483647, %v526
        %v543 = vand.u32 2147483647, %v527
        %v544 = vand.u32 2147483647, %v528
        %v545 = vand.u32 2147483647, %v529
        %v546 = vand.u32 2147483647, %v530
        %v547 = vand.u32 2147483647, %v531
        %v548 = vand.u32 2147483647, %v532
        %v549 = vand.u32 2147483647, %v533
        %v550 = vand.u32 2147483647, %v534
        %v551 = vand.u32 2147483647, %v535
        %v552 = vand.u32 2147483647, %v536
        %v553 = vadd.f32 %v460, %v537
        %v554 = vadd.f32 %v461, %v538
        %v555 = vadd.f32 %v462, %v539
        %v556 = vadd.f32 %v463, %v540
        %v557 = vadd.f32 %v464, %v541
        %v558 = vadd.f32 %v465, %v542
        %v559 = vadd.f32 %v466, %v543
        %v560 = vadd.f32 %v467, %v544
        %v561 = vadd.f32 %v468, %v545
        %v562 = vadd.f32 %v469, %v546
        %v563 = vadd.f32 %v470, %v547
        %v564 = vadd.f32 %v471, %v548
        %v565 = vadd.f32 %v472, %v549
        %v566 = vadd.f32 %v473, %v550
        %v567 = vadd.f32 %v474, %v551
        %v568 = vadd.f32 %v475, %v552
        %s569 = scalar_lea.vmem %s178, 4
        %v570 = vld [vmem:[%s569] ss:$8 sm:$0x3]
        %571 = vset.pattern.permute.xlu0 4
        %572 = vperm.xlu0 %571, %v182
        %v573 = vpop.permute.xlu0 %572
        %575 = vset.pattern.permute.xlu0 4
        %576 = vperm.xlu0 %575, %v183
        %v577 = vpop.permute.xlu0 %576
        %579 = vset.pattern.permute.xlu0 4
        %580 = vperm.xlu0 %579, %v184
        %v581 = vpop.permute.xlu0 %580
        %583 = vset.pattern.permute.xlu0 4
        %584 = vperm.xlu0 %583, %v185
        %v585 = vpop.permute.xlu0 %584
        %587 = vset.pattern.permute.xlu0 4
        %588 = vperm.xlu0 %587, %v186
        %v589 = vpop.permute.xlu0 %588
        %591 = vset.pattern.permute.xlu0 4
        %592 = vperm.xlu0 %591, %v187
        %v593 = vpop.permute.xlu0 %592
        %595 = vset.pattern.permute.xlu0 4
        %596 = vperm.xlu0 %595, %v188
        %v597 = vpop.permute.xlu0 %596
        %599 = vset.pattern.permute.xlu0 4
        %600 = vperm.xlu0 %599, %v189
        %v601 = vpop.permute.xlu0 %600
        %v604 = vlaneseq
        %v605 = vshrl.u32 %v604, 7
        %v606 = vsub.s32 0, %v605
        %v607 = vrot.slane %v570, %v606
        %v608 = vlaneseq
        %v609 = vshrl.u32 %v608, 7
        %v610 = vsub.s32 1, %v609
        %v611 = vrot.slane %v570, %v610
        %v614 = vsub.f32 %v573, %v607
        %v615 = vsub.f32 %v573, %v611
        %v616 = vsub.f32 %v577, %v607
        %v617 = vsub.f32 %v577, %v611
        %v618 = vsub.f32 %v581, %v607
        %v619 = vsub.f32 %v581, %v611
        %v620 = vsub.f32 %v585, %v607
        %v621 = vsub.f32 %v585, %v611
        %v622 = vsub.f32 %v589, %v607
        %v623 = vsub.f32 %v589, %v611
        %v624 = vsub.f32 %v593, %v607
        %v625 = vsub.f32 %v593, %v611
        %v626 = vsub.f32 %v597, %v607
        %v627 = vsub.f32 %v597, %v611
        %v628 = vsub.f32 %v601, %v607
        %v629 = vsub.f32 %v601, %v611
        %v630 = vand.u32 2147483647, %v614
        %v631 = vand.u32 2147483647, %v615
        %v632 = vand.u32 2147483647, %v616
        %v633 = vand.u32 2147483647, %v617
        %v634 = vand.u32 2147483647, %v618
        %v635 = vand.u32 2147483647, %v619
        %v636 = vand.u32 2147483647, %v620
        %v637 = vand.u32 2147483647, %v621
        %v638 = vand.u32 2147483647, %v622
        %v639 = vand.u32 2147483647, %v623
        %v640 = vand.u32 2147483647, %v624
        %v641 = vand.u32 2147483647, %v625
        %v642 = vand.u32 2147483647, %v626
        %v643 = vand.u32 2147483647, %v627
        %v644 = vand.u32 2147483647, %v628
        %v645 = vand.u32 2147483647, %v629
        %v646 = vadd.f32 %v553, %v630
        %v647 = vadd.f32 %v554, %v631
        %v648 = vadd.f32 %v555, %v632
        %v649 = vadd.f32 %v556, %v633
        %v650 = vadd.f32 %v557, %v634
        %v651 = vadd.f32 %v558, %v635
        %v652 = vadd.f32 %v559, %v636
        %v653 = vadd.f32 %v560, %v637
        %v654 = vadd.f32 %v561, %v638
        %v655 = vadd.f32 %v562, %v639
        %v656 = vadd.f32 %v563, %v640
        %v657 = vadd.f32 %v564, %v641
        %v658 = vadd.f32 %v565, %v642
        %v659 = vadd.f32 %v566, %v643
        %v660 = vadd.f32 %v567, %v644
        %v661 = vadd.f32 %v568, %v645
        %s662 = scalar_lea.vmem %s178, 5
        %v663 = vld [vmem:[%s662] ss:$8 sm:$0x3]
        %664 = vset.pattern.permute.xlu0 5
        %665 = vperm.xlu0 %664, %v182
        %v666 = vpop.permute.xlu0 %665
        %668 = vset.pattern.permute.xlu0 5
        %669 = vperm.xlu0 %668, %v183
        %v670 = vpop.permute.xlu0 %669
        %672 = vset.pattern.permute.xlu0 5
        %673 = vperm.xlu0 %672, %v184
        %v674 = vpop.permute.xlu0 %673
        %676 = vset.pattern.permute.xlu0 5
        %677 = vperm.xlu0 %676, %v185
        %v678 = vpop.permute.xlu0 %677
        %680 = vset.pattern.permute.xlu0 5
        %681 = vperm.xlu0 %680, %v186
        %v682 = vpop.permute.xlu0 %681
        %684 = vset.pattern.permute.xlu0 5
        %685 = vperm.xlu0 %684, %v187
        %v686 = vpop.permute.xlu0 %685
        %688 = vset.pattern.permute.xlu0 5
        %689 = vperm.xlu0 %688, %v188
        %v690 = vpop.permute.xlu0 %689
        %692 = vset.pattern.permute.xlu0 5
        %693 = vperm.xlu0 %692, %v189
        %v694 = vpop.permute.xlu0 %693
        %v697 = vlaneseq
        %v698 = vshrl.u32 %v697, 7
        %v699 = vsub.s32 0, %v698
        %v700 = vrot.slane %v663, %v699
        %v701 = vlaneseq
        %v702 = vshrl.u32 %v701, 7
        %v703 = vsub.s32 1, %v702
        %v704 = vrot.slane %v663, %v703
        %v707 = vsub.f32 %v666, %v700
        %v708 = vsub.f32 %v666, %v704
        %v709 = vsub.f32 %v670, %v700
        %v710 = vsub.f32 %v670, %v704
        %v711 = vsub.f32 %v674, %v700
        %v712 = vsub.f32 %v674, %v704
        %v713 = vsub.f32 %v678, %v700
        %v714 = vsub.f32 %v678, %v704
        %v715 = vsub.f32 %v682, %v700
        %v716 = vsub.f32 %v682, %v704
        %v717 = vsub.f32 %v686, %v700
        %v718 = vsub.f32 %v686, %v704
        %v719 = vsub.f32 %v690, %v700
        %v720 = vsub.f32 %v690, %v704
        %v721 = vsub.f32 %v694, %v700
        %v722 = vsub.f32 %v694, %v704
        %v723 = vand.u32 2147483647, %v707
        %v724 = vand.u32 2147483647, %v708
        %v725 = vand.u32 2147483647, %v709
        %v726 = vand.u32 2147483647, %v710
        %v727 = vand.u32 2147483647, %v711
        %v728 = vand.u32 2147483647, %v712
        %v729 = vand.u32 2147483647, %v713
        %v730 = vand.u32 2147483647, %v714
        %v731 = vand.u32 2147483647, %v715
        %v732 = vand.u32 2147483647, %v716
        %v733 = vand.u32 2147483647, %v717
        %v734 = vand.u32 2147483647, %v718
        %v735 = vand.u32 2147483647, %v719
        %v736 = vand.u32 2147483647, %v720
        %v737 = vand.u32 2147483647, %v721
        %v738 = vand.u32 2147483647, %v722
        %v739 = vadd.f32 %v646, %v723
        %v740 = vadd.f32 %v647, %v724
        %v741 = vadd.f32 %v648, %v725
        %v742 = vadd.f32 %v649, %v726
        %v743 = vadd.f32 %v650, %v727
        %v744 = vadd.f32 %v651, %v728
        %v745 = vadd.f32 %v652, %v729
        %v746 = vadd.f32 %v653, %v730
        %v747 = vadd.f32 %v654, %v731
        %v748 = vadd.f32 %v655, %v732
        %v749 = vadd.f32 %v656, %v733
        %v750 = vadd.f32 %v657, %v734
        %v751 = vadd.f32 %v658, %v735
        %v752 = vadd.f32 %v659, %v736
        %v753 = vadd.f32 %v660, %v737
        %v754 = vadd.f32 %v661, %v738
        %s755 = scalar_lea.vmem %s178, 6
        %v756 = vld [vmem:[%s755] ss:$8 sm:$0x3]
        %757 = vset.pattern.permute.xlu0 6
        %758 = vperm.xlu0 %757, %v182
        %v759 = vpop.permute.xlu0 %758
        %761 = vset.pattern.permute.xlu0 6
        %762 = vperm.xlu0 %761, %v183
        %v763 = vpop.permute.xlu0 %762
        %765 = vset.pattern.permute.xlu0 6
        %766 = vperm.xlu0 %765, %v184
        %v767 = vpop.permute.xlu0 %766
        %769 = vset.pattern.permute.xlu0 6
        %770 = vperm.xlu0 %769, %v185
        %v771 = vpop.permute.xlu0 %770
        %773 = vset.pattern.permute.xlu0 6
        %774 = vperm.xlu0 %773, %v186
        %v775 = vpop.permute.xlu0 %774
        %777 = vset.pattern.permute.xlu0 6
        %778 = vperm.xlu0 %777, %v187
        %v779 = vpop.permute.xlu0 %778
        %781 = vset.pattern.permute.xlu0 6
        %782 = vperm.xlu0 %781, %v188
        %v783 = vpop.permute.xlu0 %782
        %785 = vset.pattern.permute.xlu0 6
        %786 = vperm.xlu0 %785, %v189
        %v787 = vpop.permute.xlu0 %786
        %v790 = vlaneseq
        %v791 = vshrl.u32 %v790, 7
        %v792 = vsub.s32 0, %v791
        %v793 = vrot.slane %v756, %v792
        %v794 = vlaneseq
        %v795 = vshrl.u32 %v794, 7
        %v796 = vsub.s32 1, %v795
        %v797 = vrot.slane %v756, %v796
        %v800 = vsub.f32 %v759, %v793
        %v801 = vsub.f32 %v759, %v797
        %v802 = vsub.f32 %v763, %v793
        %v803 = vsub.f32 %v763, %v797
        %v804 = vsub.f32 %v767, %v793
        %v805 = vsub.f32 %v767, %v797
        %v806 = vsub.f32 %v771, %v793
        %v807 = vsub.f32 %v771, %v797
        %v808 = vsub.f32 %v775, %v793
        %v809 = vsub.f32 %v775, %v797
        %v810 = vsub.f32 %v779, %v793
        %v811 = vsub.f32 %v779, %v797
        %v812 = vsub.f32 %v783, %v793
        %v813 = vsub.f32 %v783, %v797
        %v814 = vsub.f32 %v787, %v793
        %v815 = vsub.f32 %v787, %v797
        %v816 = vand.u32 2147483647, %v800
        %v817 = vand.u32 2147483647, %v801
        %v818 = vand.u32 2147483647, %v802
        %v819 = vand.u32 2147483647, %v803
        %v820 = vand.u32 2147483647, %v804
        %v821 = vand.u32 2147483647, %v805
        %v822 = vand.u32 2147483647, %v806
        %v823 = vand.u32 2147483647, %v807
        %v824 = vand.u32 2147483647, %v808
        %v825 = vand.u32 2147483647, %v809
        %v826 = vand.u32 2147483647, %v810
        %v827 = vand.u32 2147483647, %v811
        %v828 = vand.u32 2147483647, %v812
        %v829 = vand.u32 2147483647, %v813
        %v830 = vand.u32 2147483647, %v814
        %v831 = vand.u32 2147483647, %v815
        %v832 = vadd.f32 %v739, %v816
        %v833 = vadd.f32 %v740, %v817
        %v834 = vadd.f32 %v741, %v818
        %v835 = vadd.f32 %v742, %v819
        %v836 = vadd.f32 %v743, %v820
        %v837 = vadd.f32 %v744, %v821
        %v838 = vadd.f32 %v745, %v822
        %v839 = vadd.f32 %v746, %v823
        %v840 = vadd.f32 %v747, %v824
        %v841 = vadd.f32 %v748, %v825
        %v842 = vadd.f32 %v749, %v826
        %v843 = vadd.f32 %v750, %v827
        %v844 = vadd.f32 %v751, %v828
        %v845 = vadd.f32 %v752, %v829
        %v846 = vadd.f32 %v753, %v830
        %v847 = vadd.f32 %v754, %v831
        %s848 = scalar_lea.vmem %s178, 7
        %v849 = vld [vmem:[%s848] ss:$8 sm:$0x3]
        %850 = vset.pattern.permute.xlu0 7
        %851 = vperm.xlu0 %850, %v182
        %v852 = vpop.permute.xlu0 %851
        %854 = vset.pattern.permute.xlu0 7
        %855 = vperm.xlu0 %854, %v183
        %v856 = vpop.permute.xlu0 %855
        %858 = vset.pattern.permute.xlu0 7
        %859 = vperm.xlu0 %858, %v184
        %v860 = vpop.permute.xlu0 %859
        %862 = vset.pattern.permute.xlu0 7
        %863 = vperm.xlu0 %862, %v185
        %v864 = vpop.permute.xlu0 %863
        %866 = vset.pattern.permute.xlu0 7
        %867 = vperm.xlu0 %866, %v186
        %v868 = vpop.permute.xlu0 %867
        %870 = vset.pattern.permute.xlu0 7
        %871 = vperm.xlu0 %870, %v187
        %v872 = vpop.permute.xlu0 %871
        %874 = vset.pattern.permute.xlu0 7
        %875 = vperm.xlu0 %874, %v188
        %v876 = vpop.permute.xlu0 %875
        %878 = vset.pattern.permute.xlu0 7
        %879 = vperm.xlu0 %878, %v189
        %v880 = vpop.permute.xlu0 %879
        %v883 = vlaneseq
        %v884 = vshrl.u32 %v883, 7
        %v885 = vsub.s32 0, %v884
        %v886 = vrot.slane %v849, %v885
        %v887 = vlaneseq
        %v888 = vshrl.u32 %v887, 7
        %v889 = vsub.s32 1, %v888
        %v890 = vrot.slane %v849, %v889
        %v893 = vsub.f32 %v852, %v886
        %v894 = vsub.f32 %v852, %v890
        %v895 = vsub.f32 %v856, %v886
        %v896 = vsub.f32 %v856, %v890
        %v897 = vsub.f32 %v860, %v886
        %v898 = vsub.f32 %v860, %v890
        %v899 = vsub.f32 %v864, %v886
        %v900 = vsub.f32 %v864, %v890
        %v901 = vsub.f32 %v868, %v886
        %v902 = vsub.f32 %v868, %v890
        %v903 = vsub.f32 %v872, %v886
        %v904 = vsub.f32 %v872, %v890
        %v905 = vsub.f32 %v876, %v886
        %v906 = vsub.f32 %v876, %v890
        %v907 = vsub.f32 %v880, %v886
        %v908 = vsub.f32 %v880, %v890
        %v909 = vand.u32 2147483647, %v893
        %v910 = vand.u32 2147483647, %v894
        %v911 = vand.u32 2147483647, %v895
        %v912 = vand.u32 2147483647, %v896
        %v913 = vand.u32 2147483647, %v897
        %v914 = vand.u32 2147483647, %v898
        %v915 = vand.u32 2147483647, %v899
        %v916 = vand.u32 2147483647, %v900
        %v917 = vand.u32 2147483647, %v901
        %v918 = vand.u32 2147483647, %v902
        %v919 = vand.u32 2147483647, %v903
        %v920 = vand.u32 2147483647, %v904
        %v921 = vand.u32 2147483647, %v905
        %v922 = vand.u32 2147483647, %v906
        %v923 = vand.u32 2147483647, %v907
        %v924 = vand.u32 2147483647, %v908
        %v925 = vadd.f32 %v832, %v909
        %v926 = vadd.f32 %v833, %v910
        %v927 = vadd.f32 %v834, %v911
        %v928 = vadd.f32 %v835, %v912
        %v929 = vadd.f32 %v836, %v913
        %v930 = vadd.f32 %v837, %v914
        %v931 = vadd.f32 %v838, %v915
        %v932 = vadd.f32 %v839, %v916
        %v933 = vadd.f32 %v840, %v917
        %v934 = vadd.f32 %v841, %v918
        %v935 = vadd.f32 %v842, %v919
        %v936 = vadd.f32 %v843, %v920
        %v937 = vadd.f32 %v844, %v921
        %v938 = vadd.f32 %v845, %v922
        %v939 = vadd.f32 %v846, %v923
        %v940 = vadd.f32 %v847, %v924
        %s941 = scalar_lea.vmem %s178, 16
        %v942 = vld [vmem:[%s941] ss:$8 sm:$0x3]
        %943 = vset.pattern.permute.xlu0 8
        %944 = vperm.xlu0 %943, %v182
        %v945 = vpop.permute.xlu0 %944
        %947 = vset.pattern.permute.xlu0 8
        %948 = vperm.xlu0 %947, %v183
        %v949 = vpop.permute.xlu0 %948
        %951 = vset.pattern.permute.xlu0 8
        %952 = vperm.xlu0 %951, %v184
        %v953 = vpop.permute.xlu0 %952
        %955 = vset.pattern.permute.xlu0 8
        %956 = vperm.xlu0 %955, %v185
        %v957 = vpop.permute.xlu0 %956
        %959 = vset.pattern.permute.xlu0 8
        %960 = vperm.xlu0 %959, %v186
        %v961 = vpop.permute.xlu0 %960
        %963 = vset.pattern.permute.xlu0 8
        %964 = vperm.xlu0 %963, %v187
        %v965 = vpop.permute.xlu0 %964
        %967 = vset.pattern.permute.xlu0 8
        %968 = vperm.xlu0 %967, %v188
        %v969 = vpop.permute.xlu0 %968
        %971 = vset.pattern.permute.xlu0 8
        %972 = vperm.xlu0 %971, %v189
        %v973 = vpop.permute.xlu0 %972
        %v976 = vlaneseq
        %v977 = vshrl.u32 %v976, 7
        %v978 = vsub.s32 0, %v977
        %v979 = vrot.slane %v942, %v978
        %v980 = vlaneseq
        %v981 = vshrl.u32 %v980, 7
        %v982 = vsub.s32 1, %v981
        %v983 = vrot.slane %v942, %v982
        %v986 = vsub.f32 %v945, %v979
        %v987 = vsub.f32 %v945, %v983
        %v988 = vsub.f32 %v949, %v979
        %v989 = vsub.f32 %v949, %v983
        %v990 = vsub.f32 %v953, %v979
        %v991 = vsub.f32 %v953, %v983
        %v992 = vsub.f32 %v957, %v979
        %v993 = vsub.f32 %v957, %v983
        %v994 = vsub.f32 %v961, %v979
        %v995 = vsub.f32 %v961, %v983
        %v996 = vsub.f32 %v965, %v979
        %v997 = vsub.f32 %v965, %v983
        %v998 = vsub.f32 %v969, %v979
        %v999 = vsub.f32 %v969, %v983
        %v1000 = vsub.f32 %v973, %v979
        %v1001 = vsub.f32 %v973, %v983
        %v1002 = vand.u32 2147483647, %v986
        %v1003 = vand.u32 2147483647, %v987
        %v1004 = vand.u32 2147483647, %v988
        %v1005 = vand.u32 2147483647, %v989
        %v1006 = vand.u32 2147483647, %v990
        %v1007 = vand.u32 2147483647, %v991
        %v1008 = vand.u32 2147483647, %v992
        %v1009 = vand.u32 2147483647, %v993
        %v1010 = vand.u32 2147483647, %v994
        %v1011 = vand.u32 2147483647, %v995
        %v1012 = vand.u32 2147483647, %v996
        %v1013 = vand.u32 2147483647, %v997
        %v1014 = vand.u32 2147483647, %v998
        %v1015 = vand.u32 2147483647, %v999
        %v1016 = vand.u32 2147483647, %v1000
        %v1017 = vand.u32 2147483647, %v1001
        %v1018 = vadd.f32 %v925, %v1002
        %v1019 = vadd.f32 %v926, %v1003
        %v1020 = vadd.f32 %v927, %v1004
        %v1021 = vadd.f32 %v928, %v1005
        %v1022 = vadd.f32 %v929, %v1006
        %v1023 = vadd.f32 %v930, %v1007
        %v1024 = vadd.f32 %v931, %v1008
        %v1025 = vadd.f32 %v932, %v1009
        %v1026 = vadd.f32 %v933, %v1010
        %v1027 = vadd.f32 %v934, %v1011
        %v1028 = vadd.f32 %v935, %v1012
        %v1029 = vadd.f32 %v936, %v1013
        %v1030 = vadd.f32 %v937, %v1014
        %v1031 = vadd.f32 %v938, %v1015
        %v1032 = vadd.f32 %v939, %v1016
        %v1033 = vadd.f32 %v940, %v1017
        %s1034 = scalar_lea.vmem %s178, 17
        %v1035 = vld [vmem:[%s1034] ss:$8 sm:$0x3]
        %1036 = vset.pattern.permute.xlu0 9
        %1037 = vperm.xlu0 %1036, %v182
        %v1038 = vpop.permute.xlu0 %1037
        %1040 = vset.pattern.permute.xlu0 9
        %1041 = vperm.xlu0 %1040, %v183
        %v1042 = vpop.permute.xlu0 %1041
        %1044 = vset.pattern.permute.xlu0 9
        %1045 = vperm.xlu0 %1044, %v184
        %v1046 = vpop.permute.xlu0 %1045
        %1048 = vset.pattern.permute.xlu0 9
        %1049 = vperm.xlu0 %1048, %v185
        %v1050 = vpop.permute.xlu0 %1049
        %1052 = vset.pattern.permute.xlu0 9
        %1053 = vperm.xlu0 %1052, %v186
        %v1054 = vpop.permute.xlu0 %1053
        %1056 = vset.pattern.permute.xlu0 9
        %1057 = vperm.xlu0 %1056, %v187
        %v1058 = vpop.permute.xlu0 %1057
        %1060 = vset.pattern.permute.xlu0 9
        %1061 = vperm.xlu0 %1060, %v188
        %v1062 = vpop.permute.xlu0 %1061
        %1064 = vset.pattern.permute.xlu0 9
        %1065 = vperm.xlu0 %1064, %v189
        %v1066 = vpop.permute.xlu0 %1065
        %v1069 = vlaneseq
        %v1070 = vshrl.u32 %v1069, 7
        %v1071 = vsub.s32 0, %v1070
        %v1072 = vrot.slane %v1035, %v1071
        %v1073 = vlaneseq
        %v1074 = vshrl.u32 %v1073, 7
        %v1075 = vsub.s32 1, %v1074
        %v1076 = vrot.slane %v1035, %v1075
        %v1079 = vsub.f32 %v1038, %v1072
        %v1080 = vsub.f32 %v1038, %v1076
        %v1081 = vsub.f32 %v1042, %v1072
        %v1082 = vsub.f32 %v1042, %v1076
        %v1083 = vsub.f32 %v1046, %v1072
        %v1084 = vsub.f32 %v1046, %v1076
        %v1085 = vsub.f32 %v1050, %v1072
        %v1086 = vsub.f32 %v1050, %v1076
        %v1087 = vsub.f32 %v1054, %v1072
        %v1088 = vsub.f32 %v1054, %v1076
        %v1089 = vsub.f32 %v1058, %v1072
        %v1090 = vsub.f32 %v1058, %v1076
        %v1091 = vsub.f32 %v1062, %v1072
        %v1092 = vsub.f32 %v1062, %v1076
        %v1093 = vsub.f32 %v1066, %v1072
        %v1094 = vsub.f32 %v1066, %v1076
        %v1095 = vand.u32 2147483647, %v1079
        %v1096 = vand.u32 2147483647, %v1080
        %v1097 = vand.u32 2147483647, %v1081
        %v1098 = vand.u32 2147483647, %v1082
        %v1099 = vand.u32 2147483647, %v1083
        %v1100 = vand.u32 2147483647, %v1084
        %v1101 = vand.u32 2147483647, %v1085
        %v1102 = vand.u32 2147483647, %v1086
        %v1103 = vand.u32 2147483647, %v1087
        %v1104 = vand.u32 2147483647, %v1088
        %v1105 = vand.u32 2147483647, %v1089
        %v1106 = vand.u32 2147483647, %v1090
        %v1107 = vand.u32 2147483647, %v1091
        %v1108 = vand.u32 2147483647, %v1092
        %v1109 = vand.u32 2147483647, %v1093
        %v1110 = vand.u32 2147483647, %v1094
        %v1111 = vadd.f32 %v1018, %v1095
        %v1112 = vadd.f32 %v1019, %v1096
        %v1113 = vadd.f32 %v1020, %v1097
        %v1114 = vadd.f32 %v1021, %v1098
        %v1115 = vadd.f32 %v1022, %v1099
        %v1116 = vadd.f32 %v1023, %v1100
        %v1117 = vadd.f32 %v1024, %v1101
        %v1118 = vadd.f32 %v1025, %v1102
        %v1119 = vadd.f32 %v1026, %v1103
        %v1120 = vadd.f32 %v1027, %v1104
        %v1121 = vadd.f32 %v1028, %v1105
        %v1122 = vadd.f32 %v1029, %v1106
        %v1123 = vadd.f32 %v1030, %v1107
        %v1124 = vadd.f32 %v1031, %v1108
        %v1125 = vadd.f32 %v1032, %v1109
        %v1126 = vadd.f32 %v1033, %v1110
        %s1127 = scalar_lea.vmem %s178, 18
        %v1128 = vld [vmem:[%s1127] ss:$8 sm:$0x3]
        %1129 = vset.pattern.permute.xlu0 10
        %1130 = vperm.xlu0 %1129, %v182
        %v1131 = vpop.permute.xlu0 %1130
        %1133 = vset.pattern.permute.xlu0 10
        %1134 = vperm.xlu0 %1133, %v183
        %v1135 = vpop.permute.xlu0 %1134
        %1137 = vset.pattern.permute.xlu0 10
        %1138 = vperm.xlu0 %1137, %v184
        %v1139 = vpop.permute.xlu0 %1138
        %1141 = vset.pattern.permute.xlu0 10
        %1142 = vperm.xlu0 %1141, %v185
        %v1143 = vpop.permute.xlu0 %1142
        %1145 = vset.pattern.permute.xlu0 10
        %1146 = vperm.xlu0 %1145, %v186
        %v1147 = vpop.permute.xlu0 %1146
        %1149 = vset.pattern.permute.xlu0 10
        %1150 = vperm.xlu0 %1149, %v187
        %v1151 = vpop.permute.xlu0 %1150
        %1153 = vset.pattern.permute.xlu0 10
        %1154 = vperm.xlu0 %1153, %v188
        %v1155 = vpop.permute.xlu0 %1154
        %1157 = vset.pattern.permute.xlu0 10
        %1158 = vperm.xlu0 %1157, %v189
        %v1159 = vpop.permute.xlu0 %1158
        %v1162 = vlaneseq
        %v1163 = vshrl.u32 %v1162, 7
        %v1164 = vsub.s32 0, %v1163
        %v1165 = vrot.slane %v1128, %v1164
        %v1166 = vlaneseq
        %v1167 = vshrl.u32 %v1166, 7
        %v1168 = vsub.s32 1, %v1167
        %v1169 = vrot.slane %v1128, %v1168
        %v1172 = vsub.f32 %v1131, %v1165
        %v1173 = vsub.f32 %v1131, %v1169
        %v1174 = vsub.f32 %v1135, %v1165
        %v1175 = vsub.f32 %v1135, %v1169
        %v1176 = vsub.f32 %v1139, %v1165
        %v1177 = vsub.f32 %v1139, %v1169
        %v1178 = vsub.f32 %v1143, %v1165
        %v1179 = vsub.f32 %v1143, %v1169
        %v1180 = vsub.f32 %v1147, %v1165
        %v1181 = vsub.f32 %v1147, %v1169
        %v1182 = vsub.f32 %v1151, %v1165
        %v1183 = vsub.f32 %v1151, %v1169
        %v1184 = vsub.f32 %v1155, %v1165
        %v1185 = vsub.f32 %v1155, %v1169
        %v1186 = vsub.f32 %v1159, %v1165
        %v1187 = vsub.f32 %v1159, %v1169
        %v1188 = vand.u32 2147483647, %v1172
        %v1189 = vand.u32 2147483647, %v1173
        %v1190 = vand.u32 2147483647, %v1174
        %v1191 = vand.u32 2147483647, %v1175
        %v1192 = vand.u32 2147483647, %v1176
        %v1193 = vand.u32 2147483647, %v1177
        %v1194 = vand.u32 2147483647, %v1178
        %v1195 = vand.u32 2147483647, %v1179
        %v1196 = vand.u32 2147483647, %v1180
        %v1197 = vand.u32 2147483647, %v1181
        %v1198 = vand.u32 2147483647, %v1182
        %v1199 = vand.u32 2147483647, %v1183
        %v1200 = vand.u32 2147483647, %v1184
        %v1201 = vand.u32 2147483647, %v1185
        %v1202 = vand.u32 2147483647, %v1186
        %v1203 = vand.u32 2147483647, %v1187
        %v1204 = vadd.f32 %v1111, %v1188
        %v1205 = vadd.f32 %v1112, %v1189
        %v1206 = vadd.f32 %v1113, %v1190
        %v1207 = vadd.f32 %v1114, %v1191
        %v1208 = vadd.f32 %v1115, %v1192
        %v1209 = vadd.f32 %v1116, %v1193
        %v1210 = vadd.f32 %v1117, %v1194
        %v1211 = vadd.f32 %v1118, %v1195
        %v1212 = vadd.f32 %v1119, %v1196
        %v1213 = vadd.f32 %v1120, %v1197
        %v1214 = vadd.f32 %v1121, %v1198
        %v1215 = vadd.f32 %v1122, %v1199
        %v1216 = vadd.f32 %v1123, %v1200
        %v1217 = vadd.f32 %v1124, %v1201
        %v1218 = vadd.f32 %v1125, %v1202
        %v1219 = vadd.f32 %v1126, %v1203
        %s1220 = scalar_lea.vmem %s178, 19
        %v1221 = vld [vmem:[%s1220] ss:$8 sm:$0x3]
        %1222 = vset.pattern.permute.xlu0 11
        %1223 = vperm.xlu0 %1222, %v182
        %v1224 = vpop.permute.xlu0 %1223
        %1226 = vset.pattern.permute.xlu0 11
        %1227 = vperm.xlu0 %1226, %v183
        %v1228 = vpop.permute.xlu0 %1227
        %1230 = vset.pattern.permute.xlu0 11
        %1231 = vperm.xlu0 %1230, %v184
        %v1232 = vpop.permute.xlu0 %1231
        %1234 = vset.pattern.permute.xlu0 11
        %1235 = vperm.xlu0 %1234, %v185
        %v1236 = vpop.permute.xlu0 %1235
        %1238 = vset.pattern.permute.xlu0 11
        %1239 = vperm.xlu0 %1238, %v186
        %v1240 = vpop.permute.xlu0 %1239
        %1242 = vset.pattern.permute.xlu0 11
        %1243 = vperm.xlu0 %1242, %v187
        %v1244 = vpop.permute.xlu0 %1243
        %1246 = vset.pattern.permute.xlu0 11
        %1247 = vperm.xlu0 %1246, %v188
        %v1248 = vpop.permute.xlu0 %1247
        %1250 = vset.pattern.permute.xlu0 11
        %1251 = vperm.xlu0 %1250, %v189
        %v1252 = vpop.permute.xlu0 %1251
        %v1255 = vlaneseq
        %v1256 = vshrl.u32 %v1255, 7
        %v1257 = vsub.s32 0, %v1256
        %v1258 = vrot.slane %v1221, %v1257
        %v1259 = vlaneseq
        %v1260 = vshrl.u32 %v1259, 7
        %v1261 = vsub.s32 1, %v1260
        %v1262 = vrot.slane %v1221, %v1261
        %v1265 = vsub.f32 %v1224, %v1258
        %v1266 = vsub.f32 %v1224, %v1262
        %v1267 = vsub.f32 %v1228, %v1258
        %v1268 = vsub.f32 %v1228, %v1262
        %v1269 = vsub.f32 %v1232, %v1258
        %v1270 = vsub.f32 %v1232, %v1262
        %v1271 = vsub.f32 %v1236, %v1258
        %v1272 = vsub.f32 %v1236, %v1262
        %v1273 = vsub.f32 %v1240, %v1258
        %v1274 = vsub.f32 %v1240, %v1262
        %v1275 = vsub.f32 %v1244, %v1258
        %v1276 = vsub.f32 %v1244, %v1262
        %v1277 = vsub.f32 %v1248, %v1258
        %v1278 = vsub.f32 %v1248, %v1262
        %v1279 = vsub.f32 %v1252, %v1258
        %v1280 = vsub.f32 %v1252, %v1262
        %v1281 = vand.u32 2147483647, %v1265
        %v1282 = vand.u32 2147483647, %v1266
        %v1283 = vand.u32 2147483647, %v1267
        %v1284 = vand.u32 2147483647, %v1268
        %v1285 = vand.u32 2147483647, %v1269
        %v1286 = vand.u32 2147483647, %v1270
        %v1287 = vand.u32 2147483647, %v1271
        %v1288 = vand.u32 2147483647, %v1272
        %v1289 = vand.u32 2147483647, %v1273
        %v1290 = vand.u32 2147483647, %v1274
        %v1291 = vand.u32 2147483647, %v1275
        %v1292 = vand.u32 2147483647, %v1276
        %v1293 = vand.u32 2147483647, %v1277
        %v1294 = vand.u32 2147483647, %v1278
        %v1295 = vand.u32 2147483647, %v1279
        %v1296 = vand.u32 2147483647, %v1280
        %v1297 = vadd.f32 %v1204, %v1281
        %v1298 = vadd.f32 %v1205, %v1282
        %v1299 = vadd.f32 %v1206, %v1283
        %v1300 = vadd.f32 %v1207, %v1284
        %v1301 = vadd.f32 %v1208, %v1285
        %v1302 = vadd.f32 %v1209, %v1286
        %v1303 = vadd.f32 %v1210, %v1287
        %v1304 = vadd.f32 %v1211, %v1288
        %v1305 = vadd.f32 %v1212, %v1289
        %v1306 = vadd.f32 %v1213, %v1290
        %v1307 = vadd.f32 %v1214, %v1291
        %v1308 = vadd.f32 %v1215, %v1292
        %v1309 = vadd.f32 %v1216, %v1293
        %v1310 = vadd.f32 %v1217, %v1294
        %v1311 = vadd.f32 %v1218, %v1295
        %v1312 = vadd.f32 %v1219, %v1296
        %s1313 = scalar_lea.vmem %s178, 20
        %v1314 = vld [vmem:[%s1313] ss:$8 sm:$0x3]
        %1315 = vset.pattern.permute.xlu0 12
        %1316 = vperm.xlu0 %1315, %v182
        %v1317 = vpop.permute.xlu0 %1316
        %1319 = vset.pattern.permute.xlu0 12
        %1320 = vperm.xlu0 %1319, %v183
        %v1321 = vpop.permute.xlu0 %1320
        %1323 = vset.pattern.permute.xlu0 12
        %1324 = vperm.xlu0 %1323, %v184
        %v1325 = vpop.permute.xlu0 %1324
        %1327 = vset.pattern.permute.xlu0 12
        %1328 = vperm.xlu0 %1327, %v185
        %v1329 = vpop.permute.xlu0 %1328
        %1331 = vset.pattern.permute.xlu0 12
        %1332 = vperm.xlu0 %1331, %v186
        %v1333 = vpop.permute.xlu0 %1332
        %1335 = vset.pattern.permute.xlu0 12
        %1336 = vperm.xlu0 %1335, %v187
        %v1337 = vpop.permute.xlu0 %1336
        %1339 = vset.pattern.permute.xlu0 12
        %1340 = vperm.xlu0 %1339, %v188
        %v1341 = vpop.permute.xlu0 %1340
        %1343 = vset.pattern.permute.xlu0 12
        %1344 = vperm.xlu0 %1343, %v189
        %v1345 = vpop.permute.xlu0 %1344
        %v1348 = vlaneseq
        %v1349 = vshrl.u32 %v1348, 7
        %v1350 = vsub.s32 0, %v1349
        %v1351 = vrot.slane %v1314, %v1350
        %v1352 = vlaneseq
        %v1353 = vshrl.u32 %v1352, 7
        %v1354 = vsub.s32 1, %v1353
        %v1355 = vrot.slane %v1314, %v1354
        %v1358 = vsub.f32 %v1317, %v1351
        %v1359 = vsub.f32 %v1317, %v1355
        %v1360 = vsub.f32 %v1321, %v1351
        %v1361 = vsub.f32 %v1321, %v1355
        %v1362 = vsub.f32 %v1325, %v1351
        %v1363 = vsub.f32 %v1325, %v1355
        %v1364 = vsub.f32 %v1329, %v1351
        %v1365 = vsub.f32 %v1329, %v1355
        %v1366 = vsub.f32 %v1333, %v1351
        %v1367 = vsub.f32 %v1333, %v1355
        %v1368 = vsub.f32 %v1337, %v1351
        %v1369 = vsub.f32 %v1337, %v1355
        %v1370 = vsub.f32 %v1341, %v1351
        %v1371 = vsub.f32 %v1341, %v1355
        %v1372 = vsub.f32 %v1345, %v1351
        %v1373 = vsub.f32 %v1345, %v1355
        %v1374 = vand.u32 2147483647, %v1358
        %v1375 = vand.u32 2147483647, %v1359
        %v1376 = vand.u32 2147483647, %v1360
        %v1377 = vand.u32 2147483647, %v1361
        %v1378 = vand.u32 2147483647, %v1362
        %v1379 = vand.u32 2147483647, %v1363
        %v1380 = vand.u32 2147483647, %v1364
        %v1381 = vand.u32 2147483647, %v1365
        %v1382 = vand.u32 2147483647, %v1366
        %v1383 = vand.u32 2147483647, %v1367
        %v1384 = vand.u32 2147483647, %v1368
        %v1385 = vand.u32 2147483647, %v1369
        %v1386 = vand.u32 2147483647, %v1370
        %v1387 = vand.u32 2147483647, %v1371
        %v1388 = vand.u32 2147483647, %v1372
        %v1389 = vand.u32 2147483647, %v1373
        %v1390 = vadd.f32 %v1297, %v1374
        %v1391 = vadd.f32 %v1298, %v1375
        %v1392 = vadd.f32 %v1299, %v1376
        %v1393 = vadd.f32 %v1300, %v1377
        %v1394 = vadd.f32 %v1301, %v1378
        %v1395 = vadd.f32 %v1302, %v1379
        %v1396 = vadd.f32 %v1303, %v1380
        %v1397 = vadd.f32 %v1304, %v1381
        %v1398 = vadd.f32 %v1305, %v1382
        %v1399 = vadd.f32 %v1306, %v1383
        %v1400 = vadd.f32 %v1307, %v1384
        %v1401 = vadd.f32 %v1308, %v1385
        %v1402 = vadd.f32 %v1309, %v1386
        %v1403 = vadd.f32 %v1310, %v1387
        %v1404 = vadd.f32 %v1311, %v1388
        %v1405 = vadd.f32 %v1312, %v1389
        %s1406 = scalar_lea.vmem %s178, 21
        %v1407 = vld [vmem:[%s1406] ss:$8 sm:$0x3]
        %1408 = vset.pattern.permute.xlu0 13
        %1409 = vperm.xlu0 %1408, %v182
        %v1410 = vpop.permute.xlu0 %1409
        %1412 = vset.pattern.permute.xlu0 13
        %1413 = vperm.xlu0 %1412, %v183
        %v1414 = vpop.permute.xlu0 %1413
        %1416 = vset.pattern.permute.xlu0 13
        %1417 = vperm.xlu0 %1416, %v184
        %v1418 = vpop.permute.xlu0 %1417
        %1420 = vset.pattern.permute.xlu0 13
        %1421 = vperm.xlu0 %1420, %v185
        %v1422 = vpop.permute.xlu0 %1421
        %1424 = vset.pattern.permute.xlu0 13
        %1425 = vperm.xlu0 %1424, %v186
        %v1426 = vpop.permute.xlu0 %1425
        %1428 = vset.pattern.permute.xlu0 13
        %1429 = vperm.xlu0 %1428, %v187
        %v1430 = vpop.permute.xlu0 %1429
        %1432 = vset.pattern.permute.xlu0 13
        %1433 = vperm.xlu0 %1432, %v188
        %v1434 = vpop.permute.xlu0 %1433
        %1436 = vset.pattern.permute.xlu0 13
        %1437 = vperm.xlu0 %1436, %v189
        %v1438 = vpop.permute.xlu0 %1437
        %v1441 = vlaneseq
        %v1442 = vshrl.u32 %v1441, 7
        %v1443 = vsub.s32 0, %v1442
        %v1444 = vrot.slane %v1407, %v1443
        %v1445 = vlaneseq
        %v1446 = vshrl.u32 %v1445, 7
        %v1447 = vsub.s32 1, %v1446
        %v1448 = vrot.slane %v1407, %v1447
        %v1451 = vsub.f32 %v1410, %v1444
        %v1452 = vsub.f32 %v1410, %v1448
        %v1453 = vsub.f32 %v1414, %v1444
        %v1454 = vsub.f32 %v1414, %v1448
        %v1455 = vsub.f32 %v1418, %v1444
        %v1456 = vsub.f32 %v1418, %v1448
        %v1457 = vsub.f32 %v1422, %v1444
        %v1458 = vsub.f32 %v1422, %v1448
        %v1459 = vsub.f32 %v1426, %v1444
        %v1460 = vsub.f32 %v1426, %v1448
        %v1461 = vsub.f32 %v1430, %v1444
        %v1462 = vsub.f32 %v1430, %v1448
        %v1463 = vsub.f32 %v1434, %v1444
        %v1464 = vsub.f32 %v1434, %v1448
        %v1465 = vsub.f32 %v1438, %v1444
        %v1466 = vsub.f32 %v1438, %v1448
        %v1467 = vand.u32 2147483647, %v1451
        %v1468 = vand.u32 2147483647, %v1452
        %v1469 = vand.u32 2147483647, %v1453
        %v1470 = vand.u32 2147483647, %v1454
        %v1471 = vand.u32 2147483647, %v1455
        %v1472 = vand.u32 2147483647, %v1456
        %v1473 = vand.u32 2147483647, %v1457
        %v1474 = vand.u32 2147483647, %v1458
        %v1475 = vand.u32 2147483647, %v1459
        %v1476 = vand.u32 2147483647, %v1460
        %v1477 = vand.u32 2147483647, %v1461
        %v1478 = vand.u32 2147483647, %v1462
        %v1479 = vand.u32 2147483647, %v1463
        %v1480 = vand.u32 2147483647, %v1464
        %v1481 = vand.u32 2147483647, %v1465
        %v1482 = vand.u32 2147483647, %v1466
        %v1483 = vadd.f32 %v1390, %v1467
        %v1484 = vadd.f32 %v1391, %v1468
        %v1485 = vadd.f32 %v1392, %v1469
        %v1486 = vadd.f32 %v1393, %v1470
        %v1487 = vadd.f32 %v1394, %v1471
        %v1488 = vadd.f32 %v1395, %v1472
        %v1489 = vadd.f32 %v1396, %v1473
        %v1490 = vadd.f32 %v1397, %v1474
        %v1491 = vadd.f32 %v1398, %v1475
        %v1492 = vadd.f32 %v1399, %v1476
        %v1493 = vadd.f32 %v1400, %v1477
        %v1494 = vadd.f32 %v1401, %v1478
        %v1495 = vadd.f32 %v1402, %v1479
        %v1496 = vadd.f32 %v1403, %v1480
        %v1497 = vadd.f32 %v1404, %v1481
        %v1498 = vadd.f32 %v1405, %v1482
        %s1499 = scalar_lea.vmem %s178, 22
        %v1500 = vld [vmem:[%s1499] ss:$8 sm:$0x3]
        %1501 = vset.pattern.permute.xlu0 14
        %1502 = vperm.xlu0 %1501, %v182
        %v1503 = vpop.permute.xlu0 %1502
        %1505 = vset.pattern.permute.xlu0 14
        %1506 = vperm.xlu0 %1505, %v183
        %v1507 = vpop.permute.xlu0 %1506
        %1509 = vset.pattern.permute.xlu0 14
        %1510 = vperm.xlu0 %1509, %v184
        %v1511 = vpop.permute.xlu0 %1510
        %1513 = vset.pattern.permute.xlu0 14
        %1514 = vperm.xlu0 %1513, %v185
        %v1515 = vpop.permute.xlu0 %1514
        %1517 = vset.pattern.permute.xlu0 14
        %1518 = vperm.xlu0 %1517, %v186
        %v1519 = vpop.permute.xlu0 %1518
        %1521 = vset.pattern.permute.xlu0 14
        %1522 = vperm.xlu0 %1521, %v187
        %v1523 = vpop.permute.xlu0 %1522
        %1525 = vset.pattern.permute.xlu0 14
        %1526 = vperm.xlu0 %1525, %v188
        %v1527 = vpop.permute.xlu0 %1526
        %1529 = vset.pattern.permute.xlu0 14
        %1530 = vperm.xlu0 %1529, %v189
        %v1531 = vpop.permute.xlu0 %1530
        %v1534 = vlaneseq
        %v1535 = vshrl.u32 %v1534, 7
        %v1536 = vsub.s32 0, %v1535
        %v1537 = vrot.slane %v1500, %v1536
        %v1538 = vlaneseq
        %v1539 = vshrl.u32 %v1538, 7
        %v1540 = vsub.s32 1, %v1539
        %v1541 = vrot.slane %v1500, %v1540
        %v1544 = vsub.f32 %v1503, %v1537
        %v1545 = vsub.f32 %v1503, %v1541
        %v1546 = vsub.f32 %v1507, %v1537
        %v1547 = vsub.f32 %v1507, %v1541
        %v1548 = vsub.f32 %v1511, %v1537
        %v1549 = vsub.f32 %v1511, %v1541
        %v1550 = vsub.f32 %v1515, %v1537
        %v1551 = vsub.f32 %v1515, %v1541
        %v1552 = vsub.f32 %v1519, %v1537
        %v1553 = vsub.f32 %v1519, %v1541
        %v1554 = vsub.f32 %v1523, %v1537
        %v1555 = vsub.f32 %v1523, %v1541
        %v1556 = vsub.f32 %v1527, %v1537
        %v1557 = vsub.f32 %v1527, %v1541
        %v1558 = vsub.f32 %v1531, %v1537
        %v1559 = vsub.f32 %v1531, %v1541
        %v1560 = vand.u32 2147483647, %v1544
        %v1561 = vand.u32 2147483647, %v1545
        %v1562 = vand.u32 2147483647, %v1546
        %v1563 = vand.u32 2147483647, %v1547
        %v1564 = vand.u32 2147483647, %v1548
        %v1565 = vand.u32 2147483647, %v1549
        %v1566 = vand.u32 2147483647, %v1550
        %v1567 = vand.u32 2147483647, %v1551
        %v1568 = vand.u32 2147483647, %v1552
        %v1569 = vand.u32 2147483647, %v1553
        %v1570 = vand.u32 2147483647, %v1554
        %v1571 = vand.u32 2147483647, %v1555
        %v1572 = vand.u32 2147483647, %v1556
        %v1573 = vand.u32 2147483647, %v1557
        %v1574 = vand.u32 2147483647, %v1558
        %v1575 = vand.u32 2147483647, %v1559
        %v1576 = vadd.f32 %v1483, %v1560
        %v1577 = vadd.f32 %v1484, %v1561
        %v1578 = vadd.f32 %v1485, %v1562
        %v1579 = vadd.f32 %v1486, %v1563
        %v1580 = vadd.f32 %v1487, %v1564
        %v1581 = vadd.f32 %v1488, %v1565
        %v1582 = vadd.f32 %v1489, %v1566
        %v1583 = vadd.f32 %v1490, %v1567
        %v1584 = vadd.f32 %v1491, %v1568
        %v1585 = vadd.f32 %v1492, %v1569
        %v1586 = vadd.f32 %v1493, %v1570
        %v1587 = vadd.f32 %v1494, %v1571
        %v1588 = vadd.f32 %v1495, %v1572
        %v1589 = vadd.f32 %v1496, %v1573
        %v1590 = vadd.f32 %v1497, %v1574
        %v1591 = vadd.f32 %v1498, %v1575
        %s1592 = scalar_lea.vmem %s178, 23
        %v1593 = vld [vmem:[%s1592] ss:$8 sm:$0x3]
        %1594 = vset.pattern.permute.xlu0 15
        %1595 = vperm.xlu0 %1594, %v182
        %v1596 = vpop.permute.xlu0 %1595
        %1598 = vset.pattern.permute.xlu0 15
        %1599 = vperm.xlu0 %1598, %v183
        %v1600 = vpop.permute.xlu0 %1599
        %1602 = vset.pattern.permute.xlu0 15
        %1603 = vperm.xlu0 %1602, %v184
        %v1604 = vpop.permute.xlu0 %1603
        %1606 = vset.pattern.permute.xlu0 15
        %1607 = vperm.xlu0 %1606, %v185
        %v1608 = vpop.permute.xlu0 %1607
        %1610 = vset.pattern.permute.xlu0 15
        %1611 = vperm.xlu0 %1610, %v186
        %v1612 = vpop.permute.xlu0 %1611
        %1614 = vset.pattern.permute.xlu0 15
        %1615 = vperm.xlu0 %1614, %v187
        %v1616 = vpop.permute.xlu0 %1615
        %1618 = vset.pattern.permute.xlu0 15
        %1619 = vperm.xlu0 %1618, %v188
        %v1620 = vpop.permute.xlu0 %1619
        %1622 = vset.pattern.permute.xlu0 15
        %1623 = vperm.xlu0 %1622, %v189
        %v1624 = vpop.permute.xlu0 %1623
        %v1627 = vlaneseq
        %v1628 = vshrl.u32 %v1627, 7
        %v1629 = vsub.s32 0, %v1628
        %v1630 = vrot.slane %v1593, %v1629
        %v1631 = vlaneseq
        %v1632 = vshrl.u32 %v1631, 7
        %v1633 = vsub.s32 1, %v1632
        %v1634 = vrot.slane %v1593, %v1633
        %v1637 = vsub.f32 %v1596, %v1630
        %v1638 = vsub.f32 %v1596, %v1634
        %v1639 = vsub.f32 %v1600, %v1630
        %v1640 = vsub.f32 %v1600, %v1634
        %v1641 = vsub.f32 %v1604, %v1630
        %v1642 = vsub.f32 %v1604, %v1634
        %v1643 = vsub.f32 %v1608, %v1630
        %v1644 = vsub.f32 %v1608, %v1634
        %v1645 = vsub.f32 %v1612, %v1630
        %v1646 = vsub.f32 %v1612, %v1634
        %v1647 = vsub.f32 %v1616, %v1630
        %v1648 = vsub.f32 %v1616, %v1634
        %v1649 = vsub.f32 %v1620, %v1630
        %v1650 = vsub.f32 %v1620, %v1634
        %v1651 = vsub.f32 %v1624, %v1630
        %v1652 = vsub.f32 %v1624, %v1634
        %v1653 = vand.u32 2147483647, %v1637
        %v1654 = vand.u32 2147483647, %v1638
        %v1655 = vand.u32 2147483647, %v1639
        %v1656 = vand.u32 2147483647, %v1640
        %v1657 = vand.u32 2147483647, %v1641
        %v1658 = vand.u32 2147483647, %v1642
        %v1659 = vand.u32 2147483647, %v1643
        %v1660 = vand.u32 2147483647, %v1644
        %v1661 = vand.u32 2147483647, %v1645
        %v1662 = vand.u32 2147483647, %v1646
        %v1663 = vand.u32 2147483647, %v1647
        %v1664 = vand.u32 2147483647, %v1648
        %v1665 = vand.u32 2147483647, %v1649
        %v1666 = vand.u32 2147483647, %v1650
        %v1667 = vand.u32 2147483647, %v1651
        %v1668 = vand.u32 2147483647, %v1652
        %v1669 = vadd.f32 %v1576, %v1653
        %v1670 = vadd.f32 %v1577, %v1654
        %v1671 = vadd.f32 %v1578, %v1655
        %v1672 = vadd.f32 %v1579, %v1656
        %v1673 = vadd.f32 %v1580, %v1657
        %v1674 = vadd.f32 %v1581, %v1658
        %v1675 = vadd.f32 %v1582, %v1659
        %v1676 = vadd.f32 %v1583, %v1660
        %v1677 = vadd.f32 %v1584, %v1661
        %v1678 = vadd.f32 %v1585, %v1662
        %v1679 = vadd.f32 %v1586, %v1663
        %v1680 = vadd.f32 %v1587, %v1664
        %v1681 = vadd.f32 %v1588, %v1665
        %v1682 = vadd.f32 %v1589, %v1666
        %v1683 = vadd.f32 %v1590, %v1667
        %v1684 = vadd.f32 %v1591, %v1668
        %s1685 = scalar_lea.vmem %s178, 32
        %v1686 = vld [vmem:[%s1685] ss:$8 sm:$0x3]
        %1687 = vset.pattern.permute.xlu0 16
        %1688 = vperm.xlu0 %1687, %v182
        %v1689 = vpop.permute.xlu0 %1688
        %1691 = vset.pattern.permute.xlu0 16
        %1692 = vperm.xlu0 %1691, %v183
        %v1693 = vpop.permute.xlu0 %1692
        %1695 = vset.pattern.permute.xlu0 16
        %1696 = vperm.xlu0 %1695, %v184
        %v1697 = vpop.permute.xlu0 %1696
        %1699 = vset.pattern.permute.xlu0 16
        %1700 = vperm.xlu0 %1699, %v185
        %v1701 = vpop.permute.xlu0 %1700
        %1703 = vset.pattern.permute.xlu0 16
        %1704 = vperm.xlu0 %1703, %v186
        %v1705 = vpop.permute.xlu0 %1704
        %1707 = vset.pattern.permute.xlu0 16
        %1708 = vperm.xlu0 %1707, %v187
        %v1709 = vpop.permute.xlu0 %1708
        %1711 = vset.pattern.permute.xlu0 16
        %1712 = vperm.xlu0 %1711, %v188
        %v1713 = vpop.permute.xlu0 %1712
        %1715 = vset.pattern.permute.xlu0 16
        %1716 = vperm.xlu0 %1715, %v189
        %v1717 = vpop.permute.xlu0 %1716
        %v1720 = vlaneseq
        %v1721 = vshrl.u32 %v1720, 7
        %v1722 = vsub.s32 0, %v1721
        %v1723 = vrot.slane %v1686, %v1722
        %v1724 = vlaneseq
        %v1725 = vshrl.u32 %v1724, 7
        %v1726 = vsub.s32 1, %v1725
        %v1727 = vrot.slane %v1686, %v1726
        %v1730 = vsub.f32 %v1689, %v1723
        %v1731 = vsub.f32 %v1689, %v1727
        %v1732 = vsub.f32 %v1693, %v1723
        %v1733 = vsub.f32 %v1693, %v1727
        %v1734 = vsub.f32 %v1697, %v1723
        %v1735 = vsub.f32 %v1697, %v1727
        %v1736 = vsub.f32 %v1701, %v1723
        %v1737 = vsub.f32 %v1701, %v1727
        %v1738 = vsub.f32 %v1705, %v1723
        %v1739 = vsub.f32 %v1705, %v1727
        %v1740 = vsub.f32 %v1709, %v1723
        %v1741 = vsub.f32 %v1709, %v1727
        %v1742 = vsub.f32 %v1713, %v1723
        %v1743 = vsub.f32 %v1713, %v1727
        %v1744 = vsub.f32 %v1717, %v1723
        %v1745 = vsub.f32 %v1717, %v1727
        %v1746 = vand.u32 2147483647, %v1730
        %v1747 = vand.u32 2147483647, %v1731
        %v1748 = vand.u32 2147483647, %v1732
        %v1749 = vand.u32 2147483647, %v1733
        %v1750 = vand.u32 2147483647, %v1734
        %v1751 = vand.u32 2147483647, %v1735
        %v1752 = vand.u32 2147483647, %v1736
        %v1753 = vand.u32 2147483647, %v1737
        %v1754 = vand.u32 2147483647, %v1738
        %v1755 = vand.u32 2147483647, %v1739
        %v1756 = vand.u32 2147483647, %v1740
        %v1757 = vand.u32 2147483647, %v1741
        %v1758 = vand.u32 2147483647, %v1742
        %v1759 = vand.u32 2147483647, %v1743
        %v1760 = vand.u32 2147483647, %v1744
        %v1761 = vand.u32 2147483647, %v1745
        %v1762 = vadd.f32 %v1669, %v1746
        %v1763 = vadd.f32 %v1670, %v1747
        %v1764 = vadd.f32 %v1671, %v1748
        %v1765 = vadd.f32 %v1672, %v1749
        %v1766 = vadd.f32 %v1673, %v1750
        %v1767 = vadd.f32 %v1674, %v1751
        %v1768 = vadd.f32 %v1675, %v1752
        %v1769 = vadd.f32 %v1676, %v1753
        %v1770 = vadd.f32 %v1677, %v1754
        %v1771 = vadd.f32 %v1678, %v1755
        %v1772 = vadd.f32 %v1679, %v1756
        %v1773 = vadd.f32 %v1680, %v1757
        %v1774 = vadd.f32 %v1681, %v1758
        %v1775 = vadd.f32 %v1682, %v1759
        %v1776 = vadd.f32 %v1683, %v1760
        %v1777 = vadd.f32 %v1684, %v1761
        %s1778 = scalar_lea.vmem %s178, 33
        %v1779 = vld [vmem:[%s1778] ss:$8 sm:$0x3]
        %1780 = vset.pattern.permute.xlu0 17
        %1781 = vperm.xlu0 %1780, %v182
        %v1782 = vpop.permute.xlu0 %1781
        %1784 = vset.pattern.permute.xlu0 17
        %1785 = vperm.xlu0 %1784, %v183
        %v1786 = vpop.permute.xlu0 %1785
        %1788 = vset.pattern.permute.xlu0 17
        %1789 = vperm.xlu0 %1788, %v184
        %v1790 = vpop.permute.xlu0 %1789
        %1792 = vset.pattern.permute.xlu0 17
        %1793 = vperm.xlu0 %1792, %v185
        %v1794 = vpop.permute.xlu0 %1793
        %1796 = vset.pattern.permute.xlu0 17
        %1797 = vperm.xlu0 %1796, %v186
        %v1798 = vpop.permute.xlu0 %1797
        %1800 = vset.pattern.permute.xlu0 17
        %1801 = vperm.xlu0 %1800, %v187
        %v1802 = vpop.permute.xlu0 %1801
        %1804 = vset.pattern.permute.xlu0 17
        %1805 = vperm.xlu0 %1804, %v188
        %v1806 = vpop.permute.xlu0 %1805
        %1808 = vset.pattern.permute.xlu0 17
        %1809 = vperm.xlu0 %1808, %v189
        %v1810 = vpop.permute.xlu0 %1809
        %v1813 = vlaneseq
        %v1814 = vshrl.u32 %v1813, 7
        %v1815 = vsub.s32 0, %v1814
        %v1816 = vrot.slane %v1779, %v1815
        %v1817 = vlaneseq
        %v1818 = vshrl.u32 %v1817, 7
        %v1819 = vsub.s32 1, %v1818
        %v1820 = vrot.slane %v1779, %v1819
        %v1823 = vsub.f32 %v1782, %v1816
        %v1824 = vsub.f32 %v1782, %v1820
        %v1825 = vsub.f32 %v1786, %v1816
        %v1826 = vsub.f32 %v1786, %v1820
        %v1827 = vsub.f32 %v1790, %v1816
        %v1828 = vsub.f32 %v1790, %v1820
        %v1829 = vsub.f32 %v1794, %v1816
        %v1830 = vsub.f32 %v1794, %v1820
        %v1831 = vsub.f32 %v1798, %v1816
        %v1832 = vsub.f32 %v1798, %v1820
        %v1833 = vsub.f32 %v1802, %v1816
        %v1834 = vsub.f32 %v1802, %v1820
        %v1835 = vsub.f32 %v1806, %v1816
        %v1836 = vsub.f32 %v1806, %v1820
        %v1837 = vsub.f32 %v1810, %v1816
        %v1838 = vsub.f32 %v1810, %v1820
        %v1839 = vand.u32 2147483647, %v1823
        %v1840 = vand.u32 2147483647, %v1824
        %v1841 = vand.u32 2147483647, %v1825
        %v1842 = vand.u32 2147483647, %v1826
        %v1843 = vand.u32 2147483647, %v1827
        %v1844 = vand.u32 2147483647, %v1828
        %v1845 = vand.u32 2147483647, %v1829
        %v1846 = vand.u32 2147483647, %v1830
        %v1847 = vand.u32 2147483647, %v1831
        %v1848 = vand.u32 2147483647, %v1832
        %v1849 = vand.u32 2147483647, %v1833
        %v1850 = vand.u32 2147483647, %v1834
        %v1851 = vand.u32 2147483647, %v1835
        %v1852 = vand.u32 2147483647, %v1836
        %v1853 = vand.u32 2147483647, %v1837
        %v1854 = vand.u32 2147483647, %v1838
        %v1855 = vadd.f32 %v1762, %v1839
        %v1856 = vadd.f32 %v1763, %v1840
        %v1857 = vadd.f32 %v1764, %v1841
        %v1858 = vadd.f32 %v1765, %v1842
        %v1859 = vadd.f32 %v1766, %v1843
        %v1860 = vadd.f32 %v1767, %v1844
        %v1861 = vadd.f32 %v1768, %v1845
        %v1862 = vadd.f32 %v1769, %v1846
        %v1863 = vadd.f32 %v1770, %v1847
        %v1864 = vadd.f32 %v1771, %v1848
        %v1865 = vadd.f32 %v1772, %v1849
        %v1866 = vadd.f32 %v1773, %v1850
        %v1867 = vadd.f32 %v1774, %v1851
        %v1868 = vadd.f32 %v1775, %v1852
        %v1869 = vadd.f32 %v1776, %v1853
        %v1870 = vadd.f32 %v1777, %v1854
        %s1871 = scalar_lea.vmem %s178, 34
        %v1872 = vld [vmem:[%s1871] ss:$8 sm:$0x3]
        %1873 = vset.pattern.permute.xlu0 18
        %1874 = vperm.xlu0 %1873, %v182
        %v1875 = vpop.permute.xlu0 %1874
        %1877 = vset.pattern.permute.xlu0 18
        %1878 = vperm.xlu0 %1877, %v183
        %v1879 = vpop.permute.xlu0 %1878
        %1881 = vset.pattern.permute.xlu0 18
        %1882 = vperm.xlu0 %1881, %v184
        %v1883 = vpop.permute.xlu0 %1882
        %1885 = vset.pattern.permute.xlu0 18
        %1886 = vperm.xlu0 %1885, %v185
        %v1887 = vpop.permute.xlu0 %1886
        %1889 = vset.pattern.permute.xlu0 18
        %1890 = vperm.xlu0 %1889, %v186
        %v1891 = vpop.permute.xlu0 %1890
        %1893 = vset.pattern.permute.xlu0 18
        %1894 = vperm.xlu0 %1893, %v187
        %v1895 = vpop.permute.xlu0 %1894
        %1897 = vset.pattern.permute.xlu0 18
        %1898 = vperm.xlu0 %1897, %v188
        %v1899 = vpop.permute.xlu0 %1898
        %1901 = vset.pattern.permute.xlu0 18
        %1902 = vperm.xlu0 %1901, %v189
        %v1903 = vpop.permute.xlu0 %1902
        %v1906 = vlaneseq
        %v1907 = vshrl.u32 %v1906, 7
        %v1908 = vsub.s32 0, %v1907
        %v1909 = vrot.slane %v1872, %v1908
        %v1910 = vlaneseq
        %v1911 = vshrl.u32 %v1910, 7
        %v1912 = vsub.s32 1, %v1911
        %v1913 = vrot.slane %v1872, %v1912
        %v1916 = vsub.f32 %v1875, %v1909
        %v1917 = vsub.f32 %v1875, %v1913
        %v1918 = vsub.f32 %v1879, %v1909
        %v1919 = vsub.f32 %v1879, %v1913
        %v1920 = vsub.f32 %v1883, %v1909
        %v1921 = vsub.f32 %v1883, %v1913
        %v1922 = vsub.f32 %v1887, %v1909
        %v1923 = vsub.f32 %v1887, %v1913
        %v1924 = vsub.f32 %v1891, %v1909
        %v1925 = vsub.f32 %v1891, %v1913
        %v1926 = vsub.f32 %v1895, %v1909
        %v1927 = vsub.f32 %v1895, %v1913
        %v1928 = vsub.f32 %v1899, %v1909
        %v1929 = vsub.f32 %v1899, %v1913
        %v1930 = vsub.f32 %v1903, %v1909
        %v1931 = vsub.f32 %v1903, %v1913
        %v1932 = vand.u32 2147483647, %v1916
        %v1933 = vand.u32 2147483647, %v1917
        %v1934 = vand.u32 2147483647, %v1918
        %v1935 = vand.u32 2147483647, %v1919
        %v1936 = vand.u32 2147483647, %v1920
        %v1937 = vand.u32 2147483647, %v1921
        %v1938 = vand.u32 2147483647, %v1922
        %v1939 = vand.u32 2147483647, %v1923
        %v1940 = vand.u32 2147483647, %v1924
        %v1941 = vand.u32 2147483647, %v1925
        %v1942 = vand.u32 2147483647, %v1926
        %v1943 = vand.u32 2147483647, %v1927
        %v1944 = vand.u32 2147483647, %v1928
        %v1945 = vand.u32 2147483647, %v1929
        %v1946 = vand.u32 2147483647, %v1930
        %v1947 = vand.u32 2147483647, %v1931
        %v1948 = vadd.f32 %v1855, %v1932
        %v1949 = vadd.f32 %v1856, %v1933
        %v1950 = vadd.f32 %v1857, %v1934
        %v1951 = vadd.f32 %v1858, %v1935
        %v1952 = vadd.f32 %v1859, %v1936
        %v1953 = vadd.f32 %v1860, %v1937
        %v1954 = vadd.f32 %v1861, %v1938
        %v1955 = vadd.f32 %v1862, %v1939
        %v1956 = vadd.f32 %v1863, %v1940
        %v1957 = vadd.f32 %v1864, %v1941
        %v1958 = vadd.f32 %v1865, %v1942
        %v1959 = vadd.f32 %v1866, %v1943
        %v1960 = vadd.f32 %v1867, %v1944
        %v1961 = vadd.f32 %v1868, %v1945
        %v1962 = vadd.f32 %v1869, %v1946
        %v1963 = vadd.f32 %v1870, %v1947
        %s1964 = scalar_lea.vmem %s178, 35
        %v1965 = vld [vmem:[%s1964] ss:$8 sm:$0x3]
        %1966 = vset.pattern.permute.xlu0 19
        %1967 = vperm.xlu0 %1966, %v182
        %v1968 = vpop.permute.xlu0 %1967
        %1970 = vset.pattern.permute.xlu0 19
        %1971 = vperm.xlu0 %1970, %v183
        %v1972 = vpop.permute.xlu0 %1971
        %1974 = vset.pattern.permute.xlu0 19
        %1975 = vperm.xlu0 %1974, %v184
        %v1976 = vpop.permute.xlu0 %1975
        %1978 = vset.pattern.permute.xlu0 19
        %1979 = vperm.xlu0 %1978, %v185
        %v1980 = vpop.permute.xlu0 %1979
        %1982 = vset.pattern.permute.xlu0 19
        %1983 = vperm.xlu0 %1982, %v186
        %v1984 = vpop.permute.xlu0 %1983
        %1986 = vset.pattern.permute.xlu0 19
        %1987 = vperm.xlu0 %1986, %v187
        %v1988 = vpop.permute.xlu0 %1987
        %1990 = vset.pattern.permute.xlu0 19
        %1991 = vperm.xlu0 %1990, %v188
        %v1992 = vpop.permute.xlu0 %1991
        %1994 = vset.pattern.permute.xlu0 19
        %1995 = vperm.xlu0 %1994, %v189
        %v1996 = vpop.permute.xlu0 %1995
        %v1999 = vlaneseq
        %v2000 = vshrl.u32 %v1999, 7
        %v2001 = vsub.s32 0, %v2000
        %v2002 = vrot.slane %v1965, %v2001
        %v2003 = vlaneseq
        %v2004 = vshrl.u32 %v2003, 7
        %v2005 = vsub.s32 1, %v2004
        %v2006 = vrot.slane %v1965, %v2005
        %v2009 = vsub.f32 %v1968, %v2002
        %v2010 = vsub.f32 %v1968, %v2006
        %v2011 = vsub.f32 %v1972, %v2002
        %v2012 = vsub.f32 %v1972, %v2006
        %v2013 = vsub.f32 %v1976, %v2002
        %v2014 = vsub.f32 %v1976, %v2006
        %v2015 = vsub.f32 %v1980, %v2002
        %v2016 = vsub.f32 %v1980, %v2006
        %v2017 = vsub.f32 %v1984, %v2002
        %v2018 = vsub.f32 %v1984, %v2006
        %v2019 = vsub.f32 %v1988, %v2002
        %v2020 = vsub.f32 %v1988, %v2006
        %v2021 = vsub.f32 %v1992, %v2002
        %v2022 = vsub.f32 %v1992, %v2006
        %v2023 = vsub.f32 %v1996, %v2002
        %v2024 = vsub.f32 %v1996, %v2006
        %v2025 = vand.u32 2147483647, %v2009
        %v2026 = vand.u32 2147483647, %v2010
        %v2027 = vand.u32 2147483647, %v2011
        %v2028 = vand.u32 2147483647, %v2012
        %v2029 = vand.u32 2147483647, %v2013
        %v2030 = vand.u32 2147483647, %v2014
        %v2031 = vand.u32 2147483647, %v2015
        %v2032 = vand.u32 2147483647, %v2016
        %v2033 = vand.u32 2147483647, %v2017
        %v2034 = vand.u32 2147483647, %v2018
        %v2035 = vand.u32 2147483647, %v2019
        %v2036 = vand.u32 2147483647, %v2020
        %v2037 = vand.u32 2147483647, %v2021
        %v2038 = vand.u32 2147483647, %v2022
        %v2039 = vand.u32 2147483647, %v2023
        %v2040 = vand.u32 2147483647, %v2024
        %v2041 = vadd.f32 %v1948, %v2025
        %v2042 = vadd.f32 %v1949, %v2026
        %v2043 = vadd.f32 %v1950, %v2027
        %v2044 = vadd.f32 %v1951, %v2028
        %v2045 = vadd.f32 %v1952, %v2029
        %v2046 = vadd.f32 %v1953, %v2030
        %v2047 = vadd.f32 %v1954, %v2031
        %v2048 = vadd.f32 %v1955, %v2032
        %v2049 = vadd.f32 %v1956, %v2033
        %v2050 = vadd.f32 %v1957, %v2034
        %v2051 = vadd.f32 %v1958, %v2035
        %v2052 = vadd.f32 %v1959, %v2036
        %v2053 = vadd.f32 %v1960, %v2037
        %v2054 = vadd.f32 %v1961, %v2038
        %v2055 = vadd.f32 %v1962, %v2039
        %v2056 = vadd.f32 %v1963, %v2040
        %s2057 = scalar_lea.vmem %s178, 36
        %v2058 = vld [vmem:[%s2057] ss:$8 sm:$0x3]
        %2059 = vset.pattern.permute.xlu0 20
        %2060 = vperm.xlu0 %2059, %v182
        %v2061 = vpop.permute.xlu0 %2060
        %2063 = vset.pattern.permute.xlu0 20
        %2064 = vperm.xlu0 %2063, %v183
        %v2065 = vpop.permute.xlu0 %2064
        %2067 = vset.pattern.permute.xlu0 20
        %2068 = vperm.xlu0 %2067, %v184
        %v2069 = vpop.permute.xlu0 %2068
        %2071 = vset.pattern.permute.xlu0 20
        %2072 = vperm.xlu0 %2071, %v185
        %v2073 = vpop.permute.xlu0 %2072
        %2075 = vset.pattern.permute.xlu0 20
        %2076 = vperm.xlu0 %2075, %v186
        %v2077 = vpop.permute.xlu0 %2076
        %2079 = vset.pattern.permute.xlu0 20
        %2080 = vperm.xlu0 %2079, %v187
        %v2081 = vpop.permute.xlu0 %2080
        %2083 = vset.pattern.permute.xlu0 20
        %2084 = vperm.xlu0 %2083, %v188
        %v2085 = vpop.permute.xlu0 %2084
        %2087 = vset.pattern.permute.xlu0 20
        %2088 = vperm.xlu0 %2087, %v189
        %v2089 = vpop.permute.xlu0 %2088
        %v2092 = vlaneseq
        %v2093 = vshrl.u32 %v2092, 7
        %v2094 = vsub.s32 0, %v2093
        %v2095 = vrot.slane %v2058, %v2094
        %v2096 = vlaneseq
        %v2097 = vshrl.u32 %v2096, 7
        %v2098 = vsub.s32 1, %v2097
        %v2099 = vrot.slane %v2058, %v2098
        %v2102 = vsub.f32 %v2061, %v2095
        %v2103 = vsub.f32 %v2061, %v2099
        %v2104 = vsub.f32 %v2065, %v2095
        %v2105 = vsub.f32 %v2065, %v2099
        %v2106 = vsub.f32 %v2069, %v2095
        %v2107 = vsub.f32 %v2069, %v2099
        %v2108 = vsub.f32 %v2073, %v2095
        %v2109 = vsub.f32 %v2073, %v2099
        %v2110 = vsub.f32 %v2077, %v2095
        %v2111 = vsub.f32 %v2077, %v2099
        %v2112 = vsub.f32 %v2081, %v2095
        %v2113 = vsub.f32 %v2081, %v2099
        %v2114 = vsub.f32 %v2085, %v2095
        %v2115 = vsub.f32 %v2085, %v2099
        %v2116 = vsub.f32 %v2089, %v2095
        %v2117 = vsub.f32 %v2089, %v2099
        %v2118 = vand.u32 2147483647, %v2102
        %v2119 = vand.u32 2147483647, %v2103
        %v2120 = vand.u32 2147483647, %v2104
        %v2121 = vand.u32 2147483647, %v2105
        %v2122 = vand.u32 2147483647, %v2106
        %v2123 = vand.u32 2147483647, %v2107
        %v2124 = vand.u32 2147483647, %v2108
        %v2125 = vand.u32 2147483647, %v2109
        %v2126 = vand.u32 2147483647, %v2110
        %v2127 = vand.u32 2147483647, %v2111
        %v2128 = vand.u32 2147483647, %v2112
        %v2129 = vand.u32 2147483647, %v2113
        %v2130 = vand.u32 2147483647, %v2114
        %v2131 = vand.u32 2147483647, %v2115
        %v2132 = vand.u32 2147483647, %v2116
        %v2133 = vand.u32 2147483647, %v2117
        %v2134 = vadd.f32 %v2041, %v2118
        %v2135 = vadd.f32 %v2042, %v2119
        %v2136 = vadd.f32 %v2043, %v2120
        %v2137 = vadd.f32 %v2044, %v2121
        %v2138 = vadd.f32 %v2045, %v2122
        %v2139 = vadd.f32 %v2046, %v2123
        %v2140 = vadd.f32 %v2047, %v2124
        %v2141 = vadd.f32 %v2048, %v2125
        %v2142 = vadd.f32 %v2049, %v2126
        %v2143 = vadd.f32 %v2050, %v2127
        %v2144 = vadd.f32 %v2051, %v2128
        %v2145 = vadd.f32 %v2052, %v2129
        %v2146 = vadd.f32 %v2053, %v2130
        %v2147 = vadd.f32 %v2054, %v2131
        %v2148 = vadd.f32 %v2055, %v2132
        %v2149 = vadd.f32 %v2056, %v2133
        %s2150 = scalar_lea.vmem %s178, 37
        %v2151 = vld [vmem:[%s2150] ss:$8 sm:$0x3]
        %2152 = vset.pattern.permute.xlu0 21
        %2153 = vperm.xlu0 %2152, %v182
        %v2154 = vpop.permute.xlu0 %2153
        %2156 = vset.pattern.permute.xlu0 21
        %2157 = vperm.xlu0 %2156, %v183
        %v2158 = vpop.permute.xlu0 %2157
        %2160 = vset.pattern.permute.xlu0 21
        %2161 = vperm.xlu0 %2160, %v184
        %v2162 = vpop.permute.xlu0 %2161
        %2164 = vset.pattern.permute.xlu0 21
        %2165 = vperm.xlu0 %2164, %v185
        %v2166 = vpop.permute.xlu0 %2165
        %2168 = vset.pattern.permute.xlu0 21
        %2169 = vperm.xlu0 %2168, %v186
        %v2170 = vpop.permute.xlu0 %2169
        %2172 = vset.pattern.permute.xlu0 21
        %2173 = vperm.xlu0 %2172, %v187
        %v2174 = vpop.permute.xlu0 %2173
        %2176 = vset.pattern.permute.xlu0 21
        %2177 = vperm.xlu0 %2176, %v188
        %v2178 = vpop.permute.xlu0 %2177
        %2180 = vset.pattern.permute.xlu0 21
        %2181 = vperm.xlu0 %2180, %v189
        %v2182 = vpop.permute.xlu0 %2181
        %v2185 = vlaneseq
        %v2186 = vshrl.u32 %v2185, 7
        %v2187 = vsub.s32 0, %v2186
        %v2188 = vrot.slane %v2151, %v2187
        %v2189 = vlaneseq
        %v2190 = vshrl.u32 %v2189, 7
        %v2191 = vsub.s32 1, %v2190
        %v2192 = vrot.slane %v2151, %v2191
        %v2195 = vsub.f32 %v2154, %v2188
        %v2196 = vsub.f32 %v2154, %v2192
        %v2197 = vsub.f32 %v2158, %v2188
        %v2198 = vsub.f32 %v2158, %v2192
        %v2199 = vsub.f32 %v2162, %v2188
        %v2200 = vsub.f32 %v2162, %v2192
        %v2201 = vsub.f32 %v2166, %v2188
        %v2202 = vsub.f32 %v2166, %v2192
        %v2203 = vsub.f32 %v2170, %v2188
        %v2204 = vsub.f32 %v2170, %v2192
        %v2205 = vsub.f32 %v2174, %v2188
        %v2206 = vsub.f32 %v2174, %v2192
        %v2207 = vsub.f32 %v2178, %v2188
        %v2208 = vsub.f32 %v2178, %v2192
        %v2209 = vsub.f32 %v2182, %v2188
        %v2210 = vsub.f32 %v2182, %v2192
        %v2211 = vand.u32 2147483647, %v2195
        %v2212 = vand.u32 2147483647, %v2196
        %v2213 = vand.u32 2147483647, %v2197
        %v2214 = vand.u32 2147483647, %v2198
        %v2215 = vand.u32 2147483647, %v2199
        %v2216 = vand.u32 2147483647, %v2200
        %v2217 = vand.u32 2147483647, %v2201
        %v2218 = vand.u32 2147483647, %v2202
        %v2219 = vand.u32 2147483647, %v2203
        %v2220 = vand.u32 2147483647, %v2204
        %v2221 = vand.u32 2147483647, %v2205
        %v2222 = vand.u32 2147483647, %v2206
        %v2223 = vand.u32 2147483647, %v2207
        %v2224 = vand.u32 2147483647, %v2208
        %v2225 = vand.u32 2147483647, %v2209
        %v2226 = vand.u32 2147483647, %v2210
        %v2227 = vadd.f32 %v2134, %v2211
        %v2228 = vadd.f32 %v2135, %v2212
        %v2229 = vadd.f32 %v2136, %v2213
        %v2230 = vadd.f32 %v2137, %v2214
        %v2231 = vadd.f32 %v2138, %v2215
        %v2232 = vadd.f32 %v2139, %v2216
        %v2233 = vadd.f32 %v2140, %v2217
        %v2234 = vadd.f32 %v2141, %v2218
        %v2235 = vadd.f32 %v2142, %v2219
        %v2236 = vadd.f32 %v2143, %v2220
        %v2237 = vadd.f32 %v2144, %v2221
        %v2238 = vadd.f32 %v2145, %v2222
        %v2239 = vadd.f32 %v2146, %v2223
        %v2240 = vadd.f32 %v2147, %v2224
        %v2241 = vadd.f32 %v2148, %v2225
        %v2242 = vadd.f32 %v2149, %v2226
        %s2243 = scalar_lea.vmem %s178, 38
        %v2244 = vld [vmem:[%s2243] ss:$8 sm:$0x3]
        %2245 = vset.pattern.permute.xlu0 22
        %2246 = vperm.xlu0 %2245, %v182
        %v2247 = vpop.permute.xlu0 %2246
        %2249 = vset.pattern.permute.xlu0 22
        %2250 = vperm.xlu0 %2249, %v183
        %v2251 = vpop.permute.xlu0 %2250
        %2253 = vset.pattern.permute.xlu0 22
        %2254 = vperm.xlu0 %2253, %v184
        %v2255 = vpop.permute.xlu0 %2254
        %2257 = vset.pattern.permute.xlu0 22
        %2258 = vperm.xlu0 %2257, %v185
        %v2259 = vpop.permute.xlu0 %2258
        %2261 = vset.pattern.permute.xlu0 22
        %2262 = vperm.xlu0 %2261, %v186
        %v2263 = vpop.permute.xlu0 %2262
        %2265 = vset.pattern.permute.xlu0 22
        %2266 = vperm.xlu0 %2265, %v187
        %v2267 = vpop.permute.xlu0 %2266
        %2269 = vset.pattern.permute.xlu0 22
        %2270 = vperm.xlu0 %2269, %v188
        %v2271 = vpop.permute.xlu0 %2270
        %2273 = vset.pattern.permute.xlu0 22
        %2274 = vperm.xlu0 %2273, %v189
        %v2275 = vpop.permute.xlu0 %2274
        %v2278 = vlaneseq
        %v2279 = vshrl.u32 %v2278, 7
        %v2280 = vsub.s32 0, %v2279
        %v2281 = vrot.slane %v2244, %v2280
        %v2282 = vlaneseq
        %v2283 = vshrl.u32 %v2282, 7
        %v2284 = vsub.s32 1, %v2283
        %v2285 = vrot.slane %v2244, %v2284
        %v2288 = vsub.f32 %v2247, %v2281
        %v2289 = vsub.f32 %v2247, %v2285
        %v2290 = vsub.f32 %v2251, %v2281
        %v2291 = vsub.f32 %v2251, %v2285
        %v2292 = vsub.f32 %v2255, %v2281
        %v2293 = vsub.f32 %v2255, %v2285
        %v2294 = vsub.f32 %v2259, %v2281
        %v2295 = vsub.f32 %v2259, %v2285
        %v2296 = vsub.f32 %v2263, %v2281
        %v2297 = vsub.f32 %v2263, %v2285
        %v2298 = vsub.f32 %v2267, %v2281
        %v2299 = vsub.f32 %v2267, %v2285
        %v2300 = vsub.f32 %v2271, %v2281
        %v2301 = vsub.f32 %v2271, %v2285
        %v2302 = vsub.f32 %v2275, %v2281
        %v2303 = vsub.f32 %v2275, %v2285
        %v2304 = vand.u32 2147483647, %v2288
        %v2305 = vand.u32 2147483647, %v2289
        %v2306 = vand.u32 2147483647, %v2290
        %v2307 = vand.u32 2147483647, %v2291
        %v2308 = vand.u32 2147483647, %v2292
        %v2309 = vand.u32 2147483647, %v2293
        %v2310 = vand.u32 2147483647, %v2294
        %v2311 = vand.u32 2147483647, %v2295
        %v2312 = vand.u32 2147483647, %v2296
        %v2313 = vand.u32 2147483647, %v2297
        %v2314 = vand.u32 2147483647, %v2298
        %v2315 = vand.u32 2147483647, %v2299
        %v2316 = vand.u32 2147483647, %v2300
        %v2317 = vand.u32 2147483647, %v2301
        %v2318 = vand.u32 2147483647, %v2302
        %v2319 = vand.u32 2147483647, %v2303
        %v2320 = vadd.f32 %v2227, %v2304
        %v2321 = vadd.f32 %v2228, %v2305
        %v2322 = vadd.f32 %v2229, %v2306
        %v2323 = vadd.f32 %v2230, %v2307
        %v2324 = vadd.f32 %v2231, %v2308
        %v2325 = vadd.f32 %v2232, %v2309
        %v2326 = vadd.f32 %v2233, %v2310
        %v2327 = vadd.f32 %v2234, %v2311
        %v2328 = vadd.f32 %v2235, %v2312
        %v2329 = vadd.f32 %v2236, %v2313
        %v2330 = vadd.f32 %v2237, %v2314
        %v2331 = vadd.f32 %v2238, %v2315
        %v2332 = vadd.f32 %v2239, %v2316
        %v2333 = vadd.f32 %v2240, %v2317
        %v2334 = vadd.f32 %v2241, %v2318
        %v2335 = vadd.f32 %v2242, %v2319
        %s2336 = scalar_lea.vmem %s178, 39
        %v2337 = vld [vmem:[%s2336] ss:$8 sm:$0x3]
        %2338 = vset.pattern.permute.xlu0 23
        %2339 = vperm.xlu0 %2338, %v182
        %v2340 = vpop.permute.xlu0 %2339
        %2342 = vset.pattern.permute.xlu0 23
        %2343 = vperm.xlu0 %2342, %v183
        %v2344 = vpop.permute.xlu0 %2343
        %2346 = vset.pattern.permute.xlu0 23
        %2347 = vperm.xlu0 %2346, %v184
        %v2348 = vpop.permute.xlu0 %2347
        %2350 = vset.pattern.permute.xlu0 23
        %2351 = vperm.xlu0 %2350, %v185
        %v2352 = vpop.permute.xlu0 %2351
        %2354 = vset.pattern.permute.xlu0 23
        %2355 = vperm.xlu0 %2354, %v186
        %v2356 = vpop.permute.xlu0 %2355
        %2358 = vset.pattern.permute.xlu0 23
        %2359 = vperm.xlu0 %2358, %v187
        %v2360 = vpop.permute.xlu0 %2359
        %2362 = vset.pattern.permute.xlu0 23
        %2363 = vperm.xlu0 %2362, %v188
        %v2364 = vpop.permute.xlu0 %2363
        %2366 = vset.pattern.permute.xlu0 23
        %2367 = vperm.xlu0 %2366, %v189
        %v2368 = vpop.permute.xlu0 %2367
        %v2371 = vlaneseq
        %v2372 = vshrl.u32 %v2371, 7
        %v2373 = vsub.s32 0, %v2372
        %v2374 = vrot.slane %v2337, %v2373
        %v2375 = vlaneseq
        %v2376 = vshrl.u32 %v2375, 7
        %v2377 = vsub.s32 1, %v2376
        %v2378 = vrot.slane %v2337, %v2377
        %v2381 = vsub.f32 %v2340, %v2374
        %v2382 = vsub.f32 %v2340, %v2378
        %v2383 = vsub.f32 %v2344, %v2374
        %v2384 = vsub.f32 %v2344, %v2378
        %v2385 = vsub.f32 %v2348, %v2374
        %v2386 = vsub.f32 %v2348, %v2378
        %v2387 = vsub.f32 %v2352, %v2374
        %v2388 = vsub.f32 %v2352, %v2378
        %v2389 = vsub.f32 %v2356, %v2374
        %v2390 = vsub.f32 %v2356, %v2378
        %v2391 = vsub.f32 %v2360, %v2374
        %v2392 = vsub.f32 %v2360, %v2378
        %v2393 = vsub.f32 %v2364, %v2374
        %v2394 = vsub.f32 %v2364, %v2378
        %v2395 = vsub.f32 %v2368, %v2374
        %v2396 = vsub.f32 %v2368, %v2378
        %v2397 = vand.u32 2147483647, %v2381
        %v2398 = vand.u32 2147483647, %v2382
        %v2399 = vand.u32 2147483647, %v2383
        %v2400 = vand.u32 2147483647, %v2384
        %v2401 = vand.u32 2147483647, %v2385
        %v2402 = vand.u32 2147483647, %v2386
        %v2403 = vand.u32 2147483647, %v2387
        %v2404 = vand.u32 2147483647, %v2388
        %v2405 = vand.u32 2147483647, %v2389
        %v2406 = vand.u32 2147483647, %v2390
        %v2407 = vand.u32 2147483647, %v2391
        %v2408 = vand.u32 2147483647, %v2392
        %v2409 = vand.u32 2147483647, %v2393
        %v2410 = vand.u32 2147483647, %v2394
        %v2411 = vand.u32 2147483647, %v2395
        %v2412 = vand.u32 2147483647, %v2396
        %v2413 = vadd.f32 %v2320, %v2397
        %v2414 = vadd.f32 %v2321, %v2398
        %v2415 = vadd.f32 %v2322, %v2399
        %v2416 = vadd.f32 %v2323, %v2400
        %v2417 = vadd.f32 %v2324, %v2401
        %v2418 = vadd.f32 %v2325, %v2402
        %v2419 = vadd.f32 %v2326, %v2403
        %v2420 = vadd.f32 %v2327, %v2404
        %v2421 = vadd.f32 %v2328, %v2405
        %v2422 = vadd.f32 %v2329, %v2406
        %v2423 = vadd.f32 %v2330, %v2407
        %v2424 = vadd.f32 %v2331, %v2408
        %v2425 = vadd.f32 %v2332, %v2409
        %v2426 = vadd.f32 %v2333, %v2410
        %v2427 = vadd.f32 %v2334, %v2411
        %v2428 = vadd.f32 %v2335, %v2412
        %s2429 = scalar_lea.vmem %s178, 48
        %v2430 = vld [vmem:[%s2429] ss:$8 sm:$0x3]
        %2431 = vset.pattern.permute.xlu0 24
        %2432 = vperm.xlu0 %2431, %v182
        %v2433 = vpop.permute.xlu0 %2432
        %2435 = vset.pattern.permute.xlu0 24
        %2436 = vperm.xlu0 %2435, %v183
        %v2437 = vpop.permute.xlu0 %2436
        %2439 = vset.pattern.permute.xlu0 24
        %2440 = vperm.xlu0 %2439, %v184
        %v2441 = vpop.permute.xlu0 %2440
        %2443 = vset.pattern.permute.xlu0 24
        %2444 = vperm.xlu0 %2443, %v185
        %v2445 = vpop.permute.xlu0 %2444
        %2447 = vset.pattern.permute.xlu0 24
        %2448 = vperm.xlu0 %2447, %v186
        %v2449 = vpop.permute.xlu0 %2448
        %2451 = vset.pattern.permute.xlu0 24
        %2452 = vperm.xlu0 %2451, %v187
        %v2453 = vpop.permute.xlu0 %2452
        %2455 = vset.pattern.permute.xlu0 24
        %2456 = vperm.xlu0 %2455, %v188
        %v2457 = vpop.permute.xlu0 %2456
        %2459 = vset.pattern.permute.xlu0 24
        %2460 = vperm.xlu0 %2459, %v189
        %v2461 = vpop.permute.xlu0 %2460
        %v2464 = vlaneseq
        %v2465 = vshrl.u32 %v2464, 7
        %v2466 = vsub.s32 0, %v2465
        %v2467 = vrot.slane %v2430, %v2466
        %v2468 = vlaneseq
        %v2469 = vshrl.u32 %v2468, 7
        %v2470 = vsub.s32 1, %v2469
        %v2471 = vrot.slane %v2430, %v2470
        %v2474 = vsub.f32 %v2433, %v2467
        %v2475 = vsub.f32 %v2433, %v2471
        %v2476 = vsub.f32 %v2437, %v2467
        %v2477 = vsub.f32 %v2437, %v2471
        %v2478 = vsub.f32 %v2441, %v2467
        %v2479 = vsub.f32 %v2441, %v2471
        %v2480 = vsub.f32 %v2445, %v2467
        %v2481 = vsub.f32 %v2445, %v2471
        %v2482 = vsub.f32 %v2449, %v2467
        %v2483 = vsub.f32 %v2449, %v2471
        %v2484 = vsub.f32 %v2453, %v2467
        %v2485 = vsub.f32 %v2453, %v2471
        %v2486 = vsub.f32 %v2457, %v2467
        %v2487 = vsub.f32 %v2457, %v2471
        %v2488 = vsub.f32 %v2461, %v2467
        %v2489 = vsub.f32 %v2461, %v2471
        %v2490 = vand.u32 2147483647, %v2474
        %v2491 = vand.u32 2147483647, %v2475
        %v2492 = vand.u32 2147483647, %v2476
        %v2493 = vand.u32 2147483647, %v2477
        %v2494 = vand.u32 2147483647, %v2478
        %v2495 = vand.u32 2147483647, %v2479
        %v2496 = vand.u32 2147483647, %v2480
        %v2497 = vand.u32 2147483647, %v2481
        %v2498 = vand.u32 2147483647, %v2482
        %v2499 = vand.u32 2147483647, %v2483
        %v2500 = vand.u32 2147483647, %v2484
        %v2501 = vand.u32 2147483647, %v2485
        %v2502 = vand.u32 2147483647, %v2486
        %v2503 = vand.u32 2147483647, %v2487
        %v2504 = vand.u32 2147483647, %v2488
        %v2505 = vand.u32 2147483647, %v2489
        %v2506 = vadd.f32 %v2413, %v2490
        %v2507 = vadd.f32 %v2414, %v2491
        %v2508 = vadd.f32 %v2415, %v2492
        %v2509 = vadd.f32 %v2416, %v2493
        %v2510 = vadd.f32 %v2417, %v2494
        %v2511 = vadd.f32 %v2418, %v2495
        %v2512 = vadd.f32 %v2419, %v2496
        %v2513 = vadd.f32 %v2420, %v2497
        %v2514 = vadd.f32 %v2421, %v2498
        %v2515 = vadd.f32 %v2422, %v2499
        %v2516 = vadd.f32 %v2423, %v2500
        %v2517 = vadd.f32 %v2424, %v2501
        %v2518 = vadd.f32 %v2425, %v2502
        %v2519 = vadd.f32 %v2426, %v2503
        %v2520 = vadd.f32 %v2427, %v2504
        %v2521 = vadd.f32 %v2428, %v2505
        %s2522 = scalar_lea.vmem %s178, 49
        %v2523 = vld [vmem:[%s2522] ss:$8 sm:$0x3]
        %2524 = vset.pattern.permute.xlu0 25
        %2525 = vperm.xlu0 %2524, %v182
        %v2526 = vpop.permute.xlu0 %2525
        %2528 = vset.pattern.permute.xlu0 25
        %2529 = vperm.xlu0 %2528, %v183
        %v2530 = vpop.permute.xlu0 %2529
        %2532 = vset.pattern.permute.xlu0 25
        %2533 = vperm.xlu0 %2532, %v184
        %v2534 = vpop.permute.xlu0 %2533
        %2536 = vset.pattern.permute.xlu0 25
        %2537 = vperm.xlu0 %2536, %v185
        %v2538 = vpop.permute.xlu0 %2537
        %2540 = vset.pattern.permute.xlu0 25
        %2541 = vperm.xlu0 %2540, %v186
        %v2542 = vpop.permute.xlu0 %2541
        %2544 = vset.pattern.permute.xlu0 25
        %2545 = vperm.xlu0 %2544, %v187
        %v2546 = vpop.permute.xlu0 %2545
        %2548 = vset.pattern.permute.xlu0 25
        %2549 = vperm.xlu0 %2548, %v188
        %v2550 = vpop.permute.xlu0 %2549
        %2552 = vset.pattern.permute.xlu0 25
        %2553 = vperm.xlu0 %2552, %v189
        %v2554 = vpop.permute.xlu0 %2553
        %v2557 = vlaneseq
        %v2558 = vshrl.u32 %v2557, 7
        %v2559 = vsub.s32 0, %v2558
        %v2560 = vrot.slane %v2523, %v2559
        %v2561 = vlaneseq
        %v2562 = vshrl.u32 %v2561, 7
        %v2563 = vsub.s32 1, %v2562
        %v2564 = vrot.slane %v2523, %v2563
        %v2567 = vsub.f32 %v2526, %v2560
        %v2568 = vsub.f32 %v2526, %v2564
        %v2569 = vsub.f32 %v2530, %v2560
        %v2570 = vsub.f32 %v2530, %v2564
        %v2571 = vsub.f32 %v2534, %v2560
        %v2572 = vsub.f32 %v2534, %v2564
        %v2573 = vsub.f32 %v2538, %v2560
        %v2574 = vsub.f32 %v2538, %v2564
        %v2575 = vsub.f32 %v2542, %v2560
        %v2576 = vsub.f32 %v2542, %v2564
        %v2577 = vsub.f32 %v2546, %v2560
        %v2578 = vsub.f32 %v2546, %v2564
        %v2579 = vsub.f32 %v2550, %v2560
        %v2580 = vsub.f32 %v2550, %v2564
        %v2581 = vsub.f32 %v2554, %v2560
        %v2582 = vsub.f32 %v2554, %v2564
        %v2583 = vand.u32 2147483647, %v2567
        %v2584 = vand.u32 2147483647, %v2568
        %v2585 = vand.u32 2147483647, %v2569
        %v2586 = vand.u32 2147483647, %v2570
        %v2587 = vand.u32 2147483647, %v2571
        %v2588 = vand.u32 2147483647, %v2572
        %v2589 = vand.u32 2147483647, %v2573
        %v2590 = vand.u32 2147483647, %v2574
        %v2591 = vand.u32 2147483647, %v2575
        %v2592 = vand.u32 2147483647, %v2576
        %v2593 = vand.u32 2147483647, %v2577
        %v2594 = vand.u32 2147483647, %v2578
        %v2595 = vand.u32 2147483647, %v2579
        %v2596 = vand.u32 2147483647, %v2580
        %v2597 = vand.u32 2147483647, %v2581
        %v2598 = vand.u32 2147483647, %v2582
        %v2599 = vadd.f32 %v2506, %v2583
        %v2600 = vadd.f32 %v2507, %v2584
        %v2601 = vadd.f32 %v2508, %v2585
        %v2602 = vadd.f32 %v2509, %v2586
        %v2603 = vadd.f32 %v2510, %v2587
        %v2604 = vadd.f32 %v2511, %v2588
        %v2605 = vadd.f32 %v2512, %v2589
        %v2606 = vadd.f32 %v2513, %v2590
        %v2607 = vadd.f32 %v2514, %v2591
        %v2608 = vadd.f32 %v2515, %v2592
        %v2609 = vadd.f32 %v2516, %v2593
        %v2610 = vadd.f32 %v2517, %v2594
        %v2611 = vadd.f32 %v2518, %v2595
        %v2612 = vadd.f32 %v2519, %v2596
        %v2613 = vadd.f32 %v2520, %v2597
        %v2614 = vadd.f32 %v2521, %v2598
        %s2615 = scalar_lea.vmem %s178, 50
        %v2616 = vld [vmem:[%s2615] ss:$8 sm:$0x3]
        %2617 = vset.pattern.permute.xlu0 26
        %2618 = vperm.xlu0 %2617, %v182
        %v2619 = vpop.permute.xlu0 %2618
        %2621 = vset.pattern.permute.xlu0 26
        %2622 = vperm.xlu0 %2621, %v183
        %v2623 = vpop.permute.xlu0 %2622
        %2625 = vset.pattern.permute.xlu0 26
        %2626 = vperm.xlu0 %2625, %v184
        %v2627 = vpop.permute.xlu0 %2626
        %2629 = vset.pattern.permute.xlu0 26
        %2630 = vperm.xlu0 %2629, %v185
        %v2631 = vpop.permute.xlu0 %2630
        %2633 = vset.pattern.permute.xlu0 26
        %2634 = vperm.xlu0 %2633, %v186
        %v2635 = vpop.permute.xlu0 %2634
        %2637 = vset.pattern.permute.xlu0 26
        %2638 = vperm.xlu0 %2637, %v187
        %v2639 = vpop.permute.xlu0 %2638
        %2641 = vset.pattern.permute.xlu0 26
        %2642 = vperm.xlu0 %2641, %v188
        %v2643 = vpop.permute.xlu0 %2642
        %2645 = vset.pattern.permute.xlu0 26
        %2646 = vperm.xlu0 %2645, %v189
        %v2647 = vpop.permute.xlu0 %2646
        %v2650 = vlaneseq
        %v2651 = vshrl.u32 %v2650, 7
        %v2652 = vsub.s32 0, %v2651
        %v2653 = vrot.slane %v2616, %v2652
        %v2654 = vlaneseq
        %v2655 = vshrl.u32 %v2654, 7
        %v2656 = vsub.s32 1, %v2655
        %v2657 = vrot.slane %v2616, %v2656
        %v2660 = vsub.f32 %v2619, %v2653
        %v2661 = vsub.f32 %v2619, %v2657
        %v2662 = vsub.f32 %v2623, %v2653
        %v2663 = vsub.f32 %v2623, %v2657
        %v2664 = vsub.f32 %v2627, %v2653
        %v2665 = vsub.f32 %v2627, %v2657
        %v2666 = vsub.f32 %v2631, %v2653
        %v2667 = vsub.f32 %v2631, %v2657
        %v2668 = vsub.f32 %v2635, %v2653
        %v2669 = vsub.f32 %v2635, %v2657
        %v2670 = vsub.f32 %v2639, %v2653
        %v2671 = vsub.f32 %v2639, %v2657
        %v2672 = vsub.f32 %v2643, %v2653
        %v2673 = vsub.f32 %v2643, %v2657
        %v2674 = vsub.f32 %v2647, %v2653
        %v2675 = vsub.f32 %v2647, %v2657
        %v2676 = vand.u32 2147483647, %v2660
        %v2677 = vand.u32 2147483647, %v2661
        %v2678 = vand.u32 2147483647, %v2662
        %v2679 = vand.u32 2147483647, %v2663
        %v2680 = vand.u32 2147483647, %v2664
        %v2681 = vand.u32 2147483647, %v2665
        %v2682 = vand.u32 2147483647, %v2666
        %v2683 = vand.u32 2147483647, %v2667
        %v2684 = vand.u32 2147483647, %v2668
        %v2685 = vand.u32 2147483647, %v2669
        %v2686 = vand.u32 2147483647, %v2670
        %v2687 = vand.u32 2147483647, %v2671
        %v2688 = vand.u32 2147483647, %v2672
        %v2689 = vand.u32 2147483647, %v2673
        %v2690 = vand.u32 2147483647, %v2674
        %v2691 = vand.u32 2147483647, %v2675
        %v2692 = vadd.f32 %v2599, %v2676
        %v2693 = vadd.f32 %v2600, %v2677
        %v2694 = vadd.f32 %v2601, %v2678
        %v2695 = vadd.f32 %v2602, %v2679
        %v2696 = vadd.f32 %v2603, %v2680
        %v2697 = vadd.f32 %v2604, %v2681
        %v2698 = vadd.f32 %v2605, %v2682
        %v2699 = vadd.f32 %v2606, %v2683
        %v2700 = vadd.f32 %v2607, %v2684
        %v2701 = vadd.f32 %v2608, %v2685
        %v2702 = vadd.f32 %v2609, %v2686
        %v2703 = vadd.f32 %v2610, %v2687
        %v2704 = vadd.f32 %v2611, %v2688
        %v2705 = vadd.f32 %v2612, %v2689
        %v2706 = vadd.f32 %v2613, %v2690
        %v2707 = vadd.f32 %v2614, %v2691
        %s2708 = scalar_lea.vmem %s178, 51
        %v2709 = vld [vmem:[%s2708] ss:$8 sm:$0x3]
        %2710 = vset.pattern.permute.xlu0 27
        %2711 = vperm.xlu0 %2710, %v182
        %v2712 = vpop.permute.xlu0 %2711
        %2714 = vset.pattern.permute.xlu0 27
        %2715 = vperm.xlu0 %2714, %v183
        %v2716 = vpop.permute.xlu0 %2715
        %2718 = vset.pattern.permute.xlu0 27
        %2719 = vperm.xlu0 %2718, %v184
        %v2720 = vpop.permute.xlu0 %2719
        %2722 = vset.pattern.permute.xlu0 27
        %2723 = vperm.xlu0 %2722, %v185
        %v2724 = vpop.permute.xlu0 %2723
        %2726 = vset.pattern.permute.xlu0 27
        %2727 = vperm.xlu0 %2726, %v186
        %v2728 = vpop.permute.xlu0 %2727
        %2730 = vset.pattern.permute.xlu0 27
        %2731 = vperm.xlu0 %2730, %v187
        %v2732 = vpop.permute.xlu0 %2731
        %2734 = vset.pattern.permute.xlu0 27
        %2735 = vperm.xlu0 %2734, %v188
        %v2736 = vpop.permute.xlu0 %2735
        %2738 = vset.pattern.permute.xlu0 27
        %2739 = vperm.xlu0 %2738, %v189
        %v2740 = vpop.permute.xlu0 %2739
        %v2743 = vlaneseq
        %v2744 = vshrl.u32 %v2743, 7
        %v2745 = vsub.s32 0, %v2744
        %v2746 = vrot.slane %v2709, %v2745
        %v2747 = vlaneseq
        %v2748 = vshrl.u32 %v2747, 7
        %v2749 = vsub.s32 1, %v2748
        %v2750 = vrot.slane %v2709, %v2749
        %v2753 = vsub.f32 %v2712, %v2746
        %v2754 = vsub.f32 %v2712, %v2750
        %v2755 = vsub.f32 %v2716, %v2746
        %v2756 = vsub.f32 %v2716, %v2750
        %v2757 = vsub.f32 %v2720, %v2746
        %v2758 = vsub.f32 %v2720, %v2750
        %v2759 = vsub.f32 %v2724, %v2746
        %v2760 = vsub.f32 %v2724, %v2750
        %v2761 = vsub.f32 %v2728, %v2746
        %v2762 = vsub.f32 %v2728, %v2750
        %v2763 = vsub.f32 %v2732, %v2746
        %v2764 = vsub.f32 %v2732, %v2750
        %v2765 = vsub.f32 %v2736, %v2746
        %v2766 = vsub.f32 %v2736, %v2750
        %v2767 = vsub.f32 %v2740, %v2746
        %v2768 = vsub.f32 %v2740, %v2750
        %v2769 = vand.u32 2147483647, %v2753
        %v2770 = vand.u32 2147483647, %v2754
        %v2771 = vand.u32 2147483647, %v2755
        %v2772 = vand.u32 2147483647, %v2756
        %v2773 = vand.u32 2147483647, %v2757
        %v2774 = vand.u32 2147483647, %v2758
        %v2775 = vand.u32 2147483647, %v2759
        %v2776 = vand.u32 2147483647, %v2760
        %v2777 = vand.u32 2147483647, %v2761
        %v2778 = vand.u32 2147483647, %v2762
        %v2779 = vand.u32 2147483647, %v2763
        %v2780 = vand.u32 2147483647, %v2764
        %v2781 = vand.u32 2147483647, %v2765
        %v2782 = vand.u32 2147483647, %v2766
        %v2783 = vand.u32 2147483647, %v2767
        %v2784 = vand.u32 2147483647, %v2768
        %v2785 = vadd.f32 %v2692, %v2769
        %v2786 = vadd.f32 %v2693, %v2770
        %v2787 = vadd.f32 %v2694, %v2771
        %v2788 = vadd.f32 %v2695, %v2772
        %v2789 = vadd.f32 %v2696, %v2773
        %v2790 = vadd.f32 %v2697, %v2774
        %v2791 = vadd.f32 %v2698, %v2775
        %v2792 = vadd.f32 %v2699, %v2776
        %v2793 = vadd.f32 %v2700, %v2777
        %v2794 = vadd.f32 %v2701, %v2778
        %v2795 = vadd.f32 %v2702, %v2779
        %v2796 = vadd.f32 %v2703, %v2780
        %v2797 = vadd.f32 %v2704, %v2781
        %v2798 = vadd.f32 %v2705, %v2782
        %v2799 = vadd.f32 %v2706, %v2783
        %v2800 = vadd.f32 %v2707, %v2784
        %s2801 = scalar_lea.vmem %s178, 52
        %v2802 = vld [vmem:[%s2801] ss:$8 sm:$0x3]
        %2803 = vset.pattern.permute.xlu0 28
        %2804 = vperm.xlu0 %2803, %v182
        %v2805 = vpop.permute.xlu0 %2804
        %2807 = vset.pattern.permute.xlu0 28
        %2808 = vperm.xlu0 %2807, %v183
        %v2809 = vpop.permute.xlu0 %2808
        %2811 = vset.pattern.permute.xlu0 28
        %2812 = vperm.xlu0 %2811, %v184
        %v2813 = vpop.permute.xlu0 %2812
        %2815 = vset.pattern.permute.xlu0 28
        %2816 = vperm.xlu0 %2815, %v185
        %v2817 = vpop.permute.xlu0 %2816
        %2819 = vset.pattern.permute.xlu0 28
        %2820 = vperm.xlu0 %2819, %v186
        %v2821 = vpop.permute.xlu0 %2820
        %2823 = vset.pattern.permute.xlu0 28
        %2824 = vperm.xlu0 %2823, %v187
        %v2825 = vpop.permute.xlu0 %2824
        %2827 = vset.pattern.permute.xlu0 28
        %2828 = vperm.xlu0 %2827, %v188
        %v2829 = vpop.permute.xlu0 %2828
        %2831 = vset.pattern.permute.xlu0 28
        %2832 = vperm.xlu0 %2831, %v189
        %v2833 = vpop.permute.xlu0 %2832
        %v2836 = vlaneseq
        %v2837 = vshrl.u32 %v2836, 7
        %v2838 = vsub.s32 0, %v2837
        %v2839 = vrot.slane %v2802, %v2838
        %v2840 = vlaneseq
        %v2841 = vshrl.u32 %v2840, 7
        %v2842 = vsub.s32 1, %v2841
        %v2843 = vrot.slane %v2802, %v2842
        %v2846 = vsub.f32 %v2805, %v2839
        %v2847 = vsub.f32 %v2805, %v2843
        %v2848 = vsub.f32 %v2809, %v2839
        %v2849 = vsub.f32 %v2809, %v2843
        %v2850 = vsub.f32 %v2813, %v2839
        %v2851 = vsub.f32 %v2813, %v2843
        %v2852 = vsub.f32 %v2817, %v2839
        %v2853 = vsub.f32 %v2817, %v2843
        %v2854 = vsub.f32 %v2821, %v2839
        %v2855 = vsub.f32 %v2821, %v2843
        %v2856 = vsub.f32 %v2825, %v2839
        %v2857 = vsub.f32 %v2825, %v2843
        %v2858 = vsub.f32 %v2829, %v2839
        %v2859 = vsub.f32 %v2829, %v2843
        %v2860 = vsub.f32 %v2833, %v2839
        %v2861 = vsub.f32 %v2833, %v2843
        %v2862 = vand.u32 2147483647, %v2846
        %v2863 = vand.u32 2147483647, %v2847
        %v2864 = vand.u32 2147483647, %v2848
        %v2865 = vand.u32 2147483647, %v2849
        %v2866 = vand.u32 2147483647, %v2850
        %v2867 = vand.u32 2147483647, %v2851
        %v2868 = vand.u32 2147483647, %v2852
        %v2869 = vand.u32 2147483647, %v2853
        %v2870 = vand.u32 2147483647, %v2854
        %v2871 = vand.u32 2147483647, %v2855
        %v2872 = vand.u32 2147483647, %v2856
        %v2873 = vand.u32 2147483647, %v2857
        %v2874 = vand.u32 2147483647, %v2858
        %v2875 = vand.u32 2147483647, %v2859
        %v2876 = vand.u32 2147483647, %v2860
        %v2877 = vand.u32 2147483647, %v2861
        %v2878 = vadd.f32 %v2785, %v2862
        %v2879 = vadd.f32 %v2786, %v2863
        %v2880 = vadd.f32 %v2787, %v2864
        %v2881 = vadd.f32 %v2788, %v2865
        %v2882 = vadd.f32 %v2789, %v2866
        %v2883 = vadd.f32 %v2790, %v2867
        %v2884 = vadd.f32 %v2791, %v2868
        %v2885 = vadd.f32 %v2792, %v2869
        %v2886 = vadd.f32 %v2793, %v2870
        %v2887 = vadd.f32 %v2794, %v2871
        %v2888 = vadd.f32 %v2795, %v2872
        %v2889 = vadd.f32 %v2796, %v2873
        %v2890 = vadd.f32 %v2797, %v2874
        %v2891 = vadd.f32 %v2798, %v2875
        %v2892 = vadd.f32 %v2799, %v2876
        %v2893 = vadd.f32 %v2800, %v2877
        %s2894 = scalar_lea.vmem %s178, 53
        %v2895 = vld [vmem:[%s2894] ss:$8 sm:$0x3]
        %2896 = vset.pattern.permute.xlu0 29
        %2897 = vperm.xlu0 %2896, %v182
        %v2898 = vpop.permute.xlu0 %2897
        %2900 = vset.pattern.permute.xlu0 29
        %2901 = vperm.xlu0 %2900, %v183
        %v2902 = vpop.permute.xlu0 %2901
        %2904 = vset.pattern.permute.xlu0 29
        %2905 = vperm.xlu0 %2904, %v184
        %v2906 = vpop.permute.xlu0 %2905
        %2908 = vset.pattern.permute.xlu0 29
        %2909 = vperm.xlu0 %2908, %v185
        %v2910 = vpop.permute.xlu0 %2909
        %2912 = vset.pattern.permute.xlu0 29
        %2913 = vperm.xlu0 %2912, %v186
        %v2914 = vpop.permute.xlu0 %2913
        %2916 = vset.pattern.permute.xlu0 29
        %2917 = vperm.xlu0 %2916, %v187
        %v2918 = vpop.permute.xlu0 %2917
        %2920 = vset.pattern.permute.xlu0 29
        %2921 = vperm.xlu0 %2920, %v188
        %v2922 = vpop.permute.xlu0 %2921
        %2924 = vset.pattern.permute.xlu0 29
        %2925 = vperm.xlu0 %2924, %v189
        %v2926 = vpop.permute.xlu0 %2925
        %v2929 = vlaneseq
        %v2930 = vshrl.u32 %v2929, 7
        %v2931 = vsub.s32 0, %v2930
        %v2932 = vrot.slane %v2895, %v2931
        %v2933 = vlaneseq
        %v2934 = vshrl.u32 %v2933, 7
        %v2935 = vsub.s32 1, %v2934
        %v2936 = vrot.slane %v2895, %v2935
        %v2939 = vsub.f32 %v2898, %v2932
        %v2940 = vsub.f32 %v2898, %v2936
        %v2941 = vsub.f32 %v2902, %v2932
        %v2942 = vsub.f32 %v2902, %v2936
        %v2943 = vsub.f32 %v2906, %v2932
        %v2944 = vsub.f32 %v2906, %v2936
        %v2945 = vsub.f32 %v2910, %v2932
        %v2946 = vsub.f32 %v2910, %v2936
        %v2947 = vsub.f32 %v2914, %v2932
        %v2948 = vsub.f32 %v2914, %v2936
        %v2949 = vsub.f32 %v2918, %v2932
        %v2950 = vsub.f32 %v2918, %v2936
        %v2951 = vsub.f32 %v2922, %v2932
        %v2952 = vsub.f32 %v2922, %v2936
        %v2953 = vsub.f32 %v2926, %v2932
        %v2954 = vsub.f32 %v2926, %v2936
        %v2955 = vand.u32 2147483647, %v2939
        %v2956 = vand.u32 2147483647, %v2940
        %v2957 = vand.u32 2147483647, %v2941
        %v2958 = vand.u32 2147483647, %v2942
        %v2959 = vand.u32 2147483647, %v2943
        %v2960 = vand.u32 2147483647, %v2944
        %v2961 = vand.u32 2147483647, %v2945
        %v2962 = vand.u32 2147483647, %v2946
        %v2963 = vand.u32 2147483647, %v2947
        %v2964 = vand.u32 2147483647, %v2948
        %v2965 = vand.u32 2147483647, %v2949
        %v2966 = vand.u32 2147483647, %v2950
        %v2967 = vand.u32 2147483647, %v2951
        %v2968 = vand.u32 2147483647, %v2952
        %v2969 = vand.u32 2147483647, %v2953
        %v2970 = vand.u32 2147483647, %v2954
        %v2971 = vadd.f32 %v2878, %v2955
        %v2972 = vadd.f32 %v2879, %v2956
        %v2973 = vadd.f32 %v2880, %v2957
        %v2974 = vadd.f32 %v2881, %v2958
        %v2975 = vadd.f32 %v2882, %v2959
        %v2976 = vadd.f32 %v2883, %v2960
        %v2977 = vadd.f32 %v2884, %v2961
        %v2978 = vadd.f32 %v2885, %v2962
        %v2979 = vadd.f32 %v2886, %v2963
        %v2980 = vadd.f32 %v2887, %v2964
        %v2981 = vadd.f32 %v2888, %v2965
        %v2982 = vadd.f32 %v2889, %v2966
        %v2983 = vadd.f32 %v2890, %v2967
        %v2984 = vadd.f32 %v2891, %v2968
        %v2985 = vadd.f32 %v2892, %v2969
        %v2986 = vadd.f32 %v2893, %v2970
        %s2987 = scalar_lea.vmem %s178, 54
        %v2988 = vld [vmem:[%s2987] ss:$8 sm:$0x3]
        %2989 = vset.pattern.permute.xlu0 30
        %2990 = vperm.xlu0 %2989, %v182
        %v2991 = vpop.permute.xlu0 %2990
        %2993 = vset.pattern.permute.xlu0 30
        %2994 = vperm.xlu0 %2993, %v183
        %v2995 = vpop.permute.xlu0 %2994
        %2997 = vset.pattern.permute.xlu0 30
        %2998 = vperm.xlu0 %2997, %v184
        %v2999 = vpop.permute.xlu0 %2998
        %3001 = vset.pattern.permute.xlu0 30
        %3002 = vperm.xlu0 %3001, %v185
        %v3003 = vpop.permute.xlu0 %3002
        %3005 = vset.pattern.permute.xlu0 30
        %3006 = vperm.xlu0 %3005, %v186
        %v3007 = vpop.permute.xlu0 %3006
        %3009 = vset.pattern.permute.xlu0 30
        %3010 = vperm.xlu0 %3009, %v187
        %v3011 = vpop.permute.xlu0 %3010
        %3013 = vset.pattern.permute.xlu0 30
        %3014 = vperm.xlu0 %3013, %v188
        %v3015 = vpop.permute.xlu0 %3014
        %3017 = vset.pattern.permute.xlu0 30
        %3018 = vperm.xlu0 %3017, %v189
        %v3019 = vpop.permute.xlu0 %3018
        %v3022 = vlaneseq
        %v3023 = vshrl.u32 %v3022, 7
        %v3024 = vsub.s32 0, %v3023
        %v3025 = vrot.slane %v2988, %v3024
        %v3026 = vlaneseq
        %v3027 = vshrl.u32 %v3026, 7
        %v3028 = vsub.s32 1, %v3027
        %v3029 = vrot.slane %v2988, %v3028
        %v3032 = vsub.f32 %v2991, %v3025
        %v3033 = vsub.f32 %v2991, %v3029
        %v3034 = vsub.f32 %v2995, %v3025
        %v3035 = vsub.f32 %v2995, %v3029
        %v3036 = vsub.f32 %v2999, %v3025
        %v3037 = vsub.f32 %v2999, %v3029
        %v3038 = vsub.f32 %v3003, %v3025
        %v3039 = vsub.f32 %v3003, %v3029
        %v3040 = vsub.f32 %v3007, %v3025
        %v3041 = vsub.f32 %v3007, %v3029
        %v3042 = vsub.f32 %v3011, %v3025
        %v3043 = vsub.f32 %v3011, %v3029
        %v3044 = vsub.f32 %v3015, %v3025
        %v3045 = vsub.f32 %v3015, %v3029
        %v3046 = vsub.f32 %v3019, %v3025
        %v3047 = vsub.f32 %v3019, %v3029
        %v3048 = vand.u32 2147483647, %v3032
        %v3049 = vand.u32 2147483647, %v3033
        %v3050 = vand.u32 2147483647, %v3034
        %v3051 = vand.u32 2147483647, %v3035
        %v3052 = vand.u32 2147483647, %v3036
        %v3053 = vand.u32 2147483647, %v3037
        %v3054 = vand.u32 2147483647, %v3038
        %v3055 = vand.u32 2147483647, %v3039
        %v3056 = vand.u32 2147483647, %v3040
        %v3057 = vand.u32 2147483647, %v3041
        %v3058 = vand.u32 2147483647, %v3042
        %v3059 = vand.u32 2147483647, %v3043
        %v3060 = vand.u32 2147483647, %v3044
        %v3061 = vand.u32 2147483647, %v3045
        %v3062 = vand.u32 2147483647, %v3046
        %v3063 = vand.u32 2147483647, %v3047
        %v3064 = vadd.f32 %v2971, %v3048
        %v3065 = vadd.f32 %v2972, %v3049
        %v3066 = vadd.f32 %v2973, %v3050
        %v3067 = vadd.f32 %v2974, %v3051
        %v3068 = vadd.f32 %v2975, %v3052
        %v3069 = vadd.f32 %v2976, %v3053
        %v3070 = vadd.f32 %v2977, %v3054
        %v3071 = vadd.f32 %v2978, %v3055
        %v3072 = vadd.f32 %v2979, %v3056
        %v3073 = vadd.f32 %v2980, %v3057
        %v3074 = vadd.f32 %v2981, %v3058
        %v3075 = vadd.f32 %v2982, %v3059
        %v3076 = vadd.f32 %v2983, %v3060
        %v3077 = vadd.f32 %v2984, %v3061
        %v3078 = vadd.f32 %v2985, %v3062
        %v3079 = vadd.f32 %v2986, %v3063
        %s3080 = scalar_lea.vmem %s178, 55
        %v3081 = vld [vmem:[%s3080] ss:$8 sm:$0x3]
        %3082 = vset.pattern.permute.xlu0 31
        %3083 = vperm.xlu0 %3082, %v182
        %v3084 = vpop.permute.xlu0 %3083
        %3086 = vset.pattern.permute.xlu0 31
        %3087 = vperm.xlu0 %3086, %v183
        %v3088 = vpop.permute.xlu0 %3087
        %3090 = vset.pattern.permute.xlu0 31
        %3091 = vperm.xlu0 %3090, %v184
        %v3092 = vpop.permute.xlu0 %3091
        %3094 = vset.pattern.permute.xlu0 31
        %3095 = vperm.xlu0 %3094, %v185
        %v3096 = vpop.permute.xlu0 %3095
        %3098 = vset.pattern.permute.xlu0 31
        %3099 = vperm.xlu0 %3098, %v186
        %v3100 = vpop.permute.xlu0 %3099
        %3102 = vset.pattern.permute.xlu0 31
        %3103 = vperm.xlu0 %3102, %v187
        %v3104 = vpop.permute.xlu0 %3103
        %3106 = vset.pattern.permute.xlu0 31
        %3107 = vperm.xlu0 %3106, %v188
        %v3108 = vpop.permute.xlu0 %3107
        %3110 = vset.pattern.permute.xlu0 31
        %3111 = vperm.xlu0 %3110, %v189
        %v3112 = vpop.permute.xlu0 %3111
        %v3115 = vlaneseq
        %v3116 = vshrl.u32 %v3115, 7
        %v3117 = vsub.s32 0, %v3116
        %v3118 = vrot.slane %v3081, %v3117
        %v3119 = vlaneseq
        %v3120 = vshrl.u32 %v3119, 7
        %v3121 = vsub.s32 1, %v3120
        %v3122 = vrot.slane %v3081, %v3121
        %v3125 = vsub.f32 %v3084, %v3118
        %v3126 = vsub.f32 %v3084, %v3122
        %v3127 = vsub.f32 %v3088, %v3118
        %v3128 = vsub.f32 %v3088, %v3122
        %v3129 = vsub.f32 %v3092, %v3118
        %v3130 = vsub.f32 %v3092, %v3122
        %v3131 = vsub.f32 %v3096, %v3118
        %v3132 = vsub.f32 %v3096, %v3122
        %v3133 = vsub.f32 %v3100, %v3118
        %v3134 = vsub.f32 %v3100, %v3122
        %v3135 = vsub.f32 %v3104, %v3118
        %v3136 = vsub.f32 %v3104, %v3122
        %v3137 = vsub.f32 %v3108, %v3118
        %v3138 = vsub.f32 %v3108, %v3122
        %v3139 = vsub.f32 %v3112, %v3118
        %v3140 = vsub.f32 %v3112, %v3122
        %v3141 = vand.u32 2147483647, %v3125
        %v3142 = vand.u32 2147483647, %v3126
        %v3143 = vand.u32 2147483647, %v3127
        %v3144 = vand.u32 2147483647, %v3128
        %v3145 = vand.u32 2147483647, %v3129
        %v3146 = vand.u32 2147483647, %v3130
        %v3147 = vand.u32 2147483647, %v3131
        %v3148 = vand.u32 2147483647, %v3132
        %v3149 = vand.u32 2147483647, %v3133
        %v3150 = vand.u32 2147483647, %v3134
        %v3151 = vand.u32 2147483647, %v3135
        %v3152 = vand.u32 2147483647, %v3136
        %v3153 = vand.u32 2147483647, %v3137
        %v3154 = vand.u32 2147483647, %v3138
        %v3155 = vand.u32 2147483647, %v3139
        %v3156 = vand.u32 2147483647, %v3140
        %v3157 = vadd.f32 %v3064, %v3141
        %v3158 = vadd.f32 %v3065, %v3142
        %v3159 = vadd.f32 %v3066, %v3143
        %v3160 = vadd.f32 %v3067, %v3144
        %v3161 = vadd.f32 %v3068, %v3145
        %v3162 = vadd.f32 %v3069, %v3146
        %v3163 = vadd.f32 %v3070, %v3147
        %v3164 = vadd.f32 %v3071, %v3148
        %v3165 = vadd.f32 %v3072, %v3149
        %v3166 = vadd.f32 %v3073, %v3150
        %v3167 = vadd.f32 %v3074, %v3151
        %v3168 = vadd.f32 %v3075, %v3152
        %v3169 = vadd.f32 %v3076, %v3153
        %v3170 = vadd.f32 %v3077, %v3154
        %v3171 = vadd.f32 %v3078, %v3155
        %v3172 = vadd.f32 %v3079, %v3156
        %v3173 = vsub.f32 0.0, %v3157
        %v3174 = vsub.f32 0.0, %v3158
        %v3175 = vsub.f32 0.0, %v3159
        %v3176 = vsub.f32 0.0, %v3160
        %v3177 = vsub.f32 0.0, %v3161
        %v3178 = vsub.f32 0.0, %v3162
        %v3179 = vsub.f32 0.0, %v3163
        %v3180 = vsub.f32 0.0, %v3164
        %v3181 = vsub.f32 0.0, %v3165
        %v3182 = vsub.f32 0.0, %v3166
        %v3183 = vsub.f32 0.0, %v3167
        %v3184 = vsub.f32 0.0, %v3168
        %v3185 = vsub.f32 0.0, %v3169
        %v3186 = vsub.f32 0.0, %v3170
        %v3187 = vsub.f32 0.0, %v3171
        %v3188 = vsub.f32 0.0, %v3172
        %v3189 = vmul.f32 %v3173, 1.442695
        %v3190 = vpow.pop %v3189
        %v3191 = vmul.f32 %v3174, 1.442695
        %v3192 = vpow.pop %v3191
        %v3193 = vmul.f32 %v3175, 1.442695
        %v3194 = vpow.pop %v3193
        %v3195 = vmul.f32 %v3176, 1.442695
        %v3196 = vpow.pop %v3195
        %v3197 = vmul.f32 %v3177, 1.442695
        %v3198 = vpow.pop %v3197
        %v3199 = vmul.f32 %v3178, 1.442695
        %v3200 = vpow.pop %v3199
        %v3201 = vmul.f32 %v3179, 1.442695
        %v3202 = vpow.pop %v3201
        %v3203 = vmul.f32 %v3180, 1.442695
        %v3204 = vpow.pop %v3203
        %v3205 = vmul.f32 %v3181, 1.442695
        %v3206 = vpow.pop %v3205
        %v3207 = vmul.f32 %v3182, 1.442695
        %v3208 = vpow.pop %v3207
        %v3209 = vmul.f32 %v3183, 1.442695
        %v3210 = vpow.pop %v3209
        %v3211 = vmul.f32 %v3184, 1.442695
        %v3212 = vpow.pop %v3211
        %v3213 = vmul.f32 %v3185, 1.442695
        %v3214 = vpow.pop %v3213
        %v3215 = vmul.f32 %v3186, 1.442695
        %v3216 = vpow.pop %v3215
        %v3217 = vmul.f32 %v3187, 1.442695
        %v3218 = vpow.pop %v3217
        %v3219 = vmul.f32 %v3188, 1.442695
        %v3220 = vpow.pop %v3219
        %v3221 = vadd.f32 %v3190, 1.0
        %v3222 = vadd.f32 %v3192, 1.0
        %v3223 = vadd.f32 %v3194, 1.0
        %v3224 = vadd.f32 %v3196, 1.0
        %v3225 = vadd.f32 %v3198, 1.0
        %v3226 = vadd.f32 %v3200, 1.0
        %v3227 = vadd.f32 %v3202, 1.0
        %v3228 = vadd.f32 %v3204, 1.0
        %v3229 = vadd.f32 %v3206, 1.0
        %v3230 = vadd.f32 %v3208, 1.0
        %v3231 = vadd.f32 %v3210, 1.0
        %v3232 = vadd.f32 %v3212, 1.0
        %v3233 = vadd.f32 %v3214, 1.0
        %v3234 = vadd.f32 %v3216, 1.0
        %v3235 = vadd.f32 %v3218, 1.0
        %v3236 = vadd.f32 %v3220, 1.0
        %v3237 = vrcp.pop %v3221
        %v3238 = vrcp.pop %v3222
        %v3239 = vrcp.pop %v3223
        %v3240 = vrcp.pop %v3224
        %v3241 = vrcp.pop %v3225
        %v3242 = vrcp.pop %v3226
        %v3243 = vrcp.pop %v3227
        %v3244 = vrcp.pop %v3228
        %v3245 = vrcp.pop %v3229
        %v3246 = vrcp.pop %v3230
        %v3247 = vrcp.pop %v3231
        %v3248 = vrcp.pop %v3232
        %v3249 = vrcp.pop %v3233
        %v3250 = vrcp.pop %v3234
        %v3251 = vrcp.pop %v3235
        %v3252 = vrcp.pop %v3236
        %3253 = vst [vmem:[%s167] sm:$0xff] %v3237
        %3254 = vst [vmem:[%s167 + $0x8] sm:$0xff] %v3238
        %3255 = vst [vmem:[%s167 + $0x10] sm:$0xff] %v3239
        %3256 = vst [vmem:[%s167 + $0x18] sm:$0xff] %v3240
        %3257 = vst [vmem:[%s167 + $0x20] sm:$0xff] %v3241
        %3258 = vst [vmem:[%s167 + $0x28] sm:$0xff] %v3242
        %3259 = vst [vmem:[%s167 + $0x30] sm:$0xff] %v3243
        %3260 = vst [vmem:[%s167 + $0x38] sm:$0xff] %v3244
        %3261 = vst [vmem:[%s167 + $0x40] sm:$0xff] %v3245
        %3262 = vst [vmem:[%s167 + $0x48] sm:$0xff] %v3246
        %3263 = vst [vmem:[%s167 + $0x50] sm:$0xff] %v3247
        %3264 = vst [vmem:[%s167 + $0x58] sm:$0xff] %v3248
        %3265 = vst [vmem:[%s167 + $0x60] sm:$0xff] %v3249
        %3266 = vst [vmem:[%s167 + $0x68] sm:$0xff] %v3250
        %3267 = vst [vmem:[%s167 + $0x70] sm:$0xff] %v3251
        %3268 = vst [vmem:[%s167 + $0x78] sm:$0xff] %v3252
        %v3269 = vld [vmem:[%s172 + $0x40] sm:$0xff]
        %v3270 = vld [vmem:[%s172 + $0x48] sm:$0xff]
        %v3271 = vld [vmem:[%s172 + $0x50] sm:$0xff]
        %v3272 = vld [vmem:[%s172 + $0x58] sm:$0xff]
        %v3273 = vld [vmem:[%s172 + $0x60] sm:$0xff]
        %v3274 = vld [vmem:[%s172 + $0x68] sm:$0xff]
        %v3275 = vld [vmem:[%s172 + $0x70] sm:$0xff]
        %v3276 = vld [vmem:[%s172 + $0x78] sm:$0xff]
        %v3277 = vld [vmem:[%s178] ss:$8 sm:$0x3]
        %3279 = vset.pattern.permute.xlu0 0
        %3280 = vperm.xlu0 %3279, %v3269
        %v3281 = vpop.permute.xlu0 %3280
        %3284 = vset.pattern.permute.xlu0 0
        %3285 = vperm.xlu0 %3284, %v3270
        %v3286 = vpop.permute.xlu0 %3285
        %3289 = vset.pattern.permute.xlu0 0
        %3290 = vperm.xlu0 %3289, %v3271
        %v3291 = vpop.permute.xlu0 %3290
        %3294 = vset.pattern.permute.xlu0 0
        %3295 = vperm.xlu0 %3294, %v3272
        %v3296 = vpop.permute.xlu0 %3295
        %3299 = vset.pattern.permute.xlu0 0
        %3300 = vperm.xlu0 %3299, %v3273
        %v3301 = vpop.permute.xlu0 %3300
        %3304 = vset.pattern.permute.xlu0 0
        %3305 = vperm.xlu0 %3304, %v3274
        %v3306 = vpop.permute.xlu0 %3305
        %3309 = vset.pattern.permute.xlu0 0
        %3310 = vperm.xlu0 %3309, %v3275
        %v3311 = vpop.permute.xlu0 %3310
        %3314 = vset.pattern.permute.xlu0 0
        %3315 = vperm.xlu0 %3314, %v3276
        %v3316 = vpop.permute.xlu0 %3315
        %v3319 = vlaneseq
        %v3320 = vshrl.u32 %v3319, 7
        %v3321 = vsub.s32 0, %v3320
        %v3322 = vrot.slane %v3277, %v3321
        %v3323 = vlaneseq
        %v3324 = vshrl.u32 %v3323, 7
        %v3325 = vsub.s32 1, %v3324
        %v3326 = vrot.slane %v3277, %v3325
        %v3329 = vsub.f32 %v3281, %v3322
        %v3330 = vsub.f32 %v3281, %v3326
        %v3331 = vsub.f32 %v3286, %v3322
        %v3332 = vsub.f32 %v3286, %v3326
        %v3333 = vsub.f32 %v3291, %v3322
        %v3334 = vsub.f32 %v3291, %v3326
        %v3335 = vsub.f32 %v3296, %v3322
        %v3336 = vsub.f32 %v3296, %v3326
        %v3337 = vsub.f32 %v3301, %v3322
        %v3338 = vsub.f32 %v3301, %v3326
        %v3339 = vsub.f32 %v3306, %v3322
        %v3340 = vsub.f32 %v3306, %v3326
        %v3341 = vsub.f32 %v3311, %v3322
        %v3342 = vsub.f32 %v3311, %v3326
        %v3343 = vsub.f32 %v3316, %v3322
        %v3344 = vsub.f32 %v3316, %v3326
        %v3345 = vand.u32 2147483647, %v3329
        %v3346 = vand.u32 2147483647, %v3330
        %v3347 = vand.u32 2147483647, %v3331
        %v3348 = vand.u32 2147483647, %v3332
        %v3349 = vand.u32 2147483647, %v3333
        %v3350 = vand.u32 2147483647, %v3334
        %v3351 = vand.u32 2147483647, %v3335
        %v3352 = vand.u32 2147483647, %v3336
        %v3353 = vand.u32 2147483647, %v3337
        %v3354 = vand.u32 2147483647, %v3338
        %v3355 = vand.u32 2147483647, %v3339
        %v3356 = vand.u32 2147483647, %v3340
        %v3357 = vand.u32 2147483647, %v3341
        %v3358 = vand.u32 2147483647, %v3342
        %v3359 = vand.u32 2147483647, %v3343
        %v3360 = vand.u32 2147483647, %v3344
        %v3361 = vadd.f32 %v3345, 0.0
        %v3362 = vadd.f32 %v3346, 0.0
        %v3363 = vadd.f32 %v3347, 0.0
        %v3364 = vadd.f32 %v3348, 0.0
        %v3365 = vadd.f32 %v3349, 0.0
        %v3366 = vadd.f32 %v3350, 0.0
        %v3367 = vadd.f32 %v3351, 0.0
        %v3368 = vadd.f32 %v3352, 0.0
        %v3369 = vadd.f32 %v3353, 0.0
        %v3370 = vadd.f32 %v3354, 0.0
        %v3371 = vadd.f32 %v3355, 0.0
        %v3372 = vadd.f32 %v3356, 0.0
        %v3373 = vadd.f32 %v3357, 0.0
        %v3374 = vadd.f32 %v3358, 0.0
        %v3375 = vadd.f32 %v3359, 0.0
        %v3376 = vadd.f32 %v3360, 0.0
        %v3377 = vld [vmem:[%s290] ss:$8 sm:$0x3]
        %3378 = vset.pattern.permute.xlu0 1
        %3379 = vperm.xlu0 %3378, %v3269
        %v3380 = vpop.permute.xlu0 %3379
        %3382 = vset.pattern.permute.xlu0 1
        %3383 = vperm.xlu0 %3382, %v3270
        %v3384 = vpop.permute.xlu0 %3383
        %3386 = vset.pattern.permute.xlu0 1
        %3387 = vperm.xlu0 %3386, %v3271
        %v3388 = vpop.permute.xlu0 %3387
        %3390 = vset.pattern.permute.xlu0 1
        %3391 = vperm.xlu0 %3390, %v3272
        %v3392 = vpop.permute.xlu0 %3391
        %3394 = vset.pattern.permute.xlu0 1
        %3395 = vperm.xlu0 %3394, %v3273
        %v3396 = vpop.permute.xlu0 %3395
        %3398 = vset.pattern.permute.xlu0 1
        %3399 = vperm.xlu0 %3398, %v3274
        %v3400 = vpop.permute.xlu0 %3399
        %3402 = vset.pattern.permute.xlu0 1
        %3403 = vperm.xlu0 %3402, %v3275
        %v3404 = vpop.permute.xlu0 %3403
        %3406 = vset.pattern.permute.xlu0 1
        %3407 = vperm.xlu0 %3406, %v3276
        %v3408 = vpop.permute.xlu0 %3407
        %v3411 = vlaneseq
        %v3412 = vshrl.u32 %v3411, 7
        %v3413 = vsub.s32 0, %v3412
        %v3414 = vrot.slane %v3377, %v3413
        %v3415 = vlaneseq
        %v3416 = vshrl.u32 %v3415, 7
        %v3417 = vsub.s32 1, %v3416
        %v3418 = vrot.slane %v3377, %v3417
        %v3421 = vsub.f32 %v3380, %v3414
        %v3422 = vsub.f32 %v3380, %v3418
        %v3423 = vsub.f32 %v3384, %v3414
        %v3424 = vsub.f32 %v3384, %v3418
        %v3425 = vsub.f32 %v3388, %v3414
        %v3426 = vsub.f32 %v3388, %v3418
        %v3427 = vsub.f32 %v3392, %v3414
        %v3428 = vsub.f32 %v3392, %v3418
        %v3429 = vsub.f32 %v3396, %v3414
        %v3430 = vsub.f32 %v3396, %v3418
        %v3431 = vsub.f32 %v3400, %v3414
        %v3432 = vsub.f32 %v3400, %v3418
        %v3433 = vsub.f32 %v3404, %v3414
        %v3434 = vsub.f32 %v3404, %v3418
        %v3435 = vsub.f32 %v3408, %v3414
        %v3436 = vsub.f32 %v3408, %v3418
        %v3437 = vand.u32 2147483647, %v3421
        %v3438 = vand.u32 2147483647, %v3422
        %v3439 = vand.u32 2147483647, %v3423
        %v3440 = vand.u32 2147483647, %v3424
        %v3441 = vand.u32 2147483647, %v3425
        %v3442 = vand.u32 2147483647, %v3426
        %v3443 = vand.u32 2147483647, %v3427
        %v3444 = vand.u32 2147483647, %v3428
        %v3445 = vand.u32 2147483647, %v3429
        %v3446 = vand.u32 2147483647, %v3430
        %v3447 = vand.u32 2147483647, %v3431
        %v3448 = vand.u32 2147483647, %v3432
        %v3449 = vand.u32 2147483647, %v3433
        %v3450 = vand.u32 2147483647, %v3434
        %v3451 = vand.u32 2147483647, %v3435
        %v3452 = vand.u32 2147483647, %v3436
        %v3453 = vadd.f32 %v3361, %v3437
        %v3454 = vadd.f32 %v3362, %v3438
        %v3455 = vadd.f32 %v3363, %v3439
        %v3456 = vadd.f32 %v3364, %v3440
        %v3457 = vadd.f32 %v3365, %v3441
        %v3458 = vadd.f32 %v3366, %v3442
        %v3459 = vadd.f32 %v3367, %v3443
        %v3460 = vadd.f32 %v3368, %v3444
        %v3461 = vadd.f32 %v3369, %v3445
        %v3462 = vadd.f32 %v3370, %v3446
        %v3463 = vadd.f32 %v3371, %v3447
        %v3464 = vadd.f32 %v3372, %v3448
        %v3465 = vadd.f32 %v3373, %v3449
        %v3466 = vadd.f32 %v3374, %v3450
        %v3467 = vadd.f32 %v3375, %v3451
        %v3468 = vadd.f32 %v3376, %v3452
        %v3469 = vld [vmem:[%s383] ss:$8 sm:$0x3]
        %3470 = vset.pattern.permute.xlu0 2
        %3471 = vperm.xlu0 %3470, %v3269
        %v3472 = vpop.permute.xlu0 %3471
        %3474 = vset.pattern.permute.xlu0 2
        %3475 = vperm.xlu0 %3474, %v3270
        %v3476 = vpop.permute.xlu0 %3475
        %3478 = vset.pattern.permute.xlu0 2
        %3479 = vperm.xlu0 %3478, %v3271
        %v3480 = vpop.permute.xlu0 %3479
        %3482 = vset.pattern.permute.xlu0 2
        %3483 = vperm.xlu0 %3482, %v3272
        %v3484 = vpop.permute.xlu0 %3483
        %3486 = vset.pattern.permute.xlu0 2
        %3487 = vperm.xlu0 %3486, %v3273
        %v3488 = vpop.permute.xlu0 %3487
        %3490 = vset.pattern.permute.xlu0 2
        %3491 = vperm.xlu0 %3490, %v3274
        %v3492 = vpop.permute.xlu0 %3491
        %3494 = vset.pattern.permute.xlu0 2
        %3495 = vperm.xlu0 %3494, %v3275
        %v3496 = vpop.permute.xlu0 %3495
        %3498 = vset.pattern.permute.xlu0 2
        %3499 = vperm.xlu0 %3498, %v3276
        %v3500 = vpop.permute.xlu0 %3499
        %v3503 = vlaneseq
        %v3504 = vshrl.u32 %v3503, 7
        %v3505 = vsub.s32 0, %v3504
        %v3506 = vrot.slane %v3469, %v3505
        %v3507 = vlaneseq
        %v3508 = vshrl.u32 %v3507, 7
        %v3509 = vsub.s32 1, %v3508
        %v3510 = vrot.slane %v3469, %v3509
        %v3513 = vsub.f32 %v3472, %v3506
        %v3514 = vsub.f32 %v3472, %v3510
        %v3515 = vsub.f32 %v3476, %v3506
        %v3516 = vsub.f32 %v3476, %v3510
        %v3517 = vsub.f32 %v3480, %v3506
        %v3518 = vsub.f32 %v3480, %v3510
        %v3519 = vsub.f32 %v3484, %v3506
        %v3520 = vsub.f32 %v3484, %v3510
        %v3521 = vsub.f32 %v3488, %v3506
        %v3522 = vsub.f32 %v3488, %v3510
        %v3523 = vsub.f32 %v3492, %v3506
        %v3524 = vsub.f32 %v3492, %v3510
        %v3525 = vsub.f32 %v3496, %v3506
        %v3526 = vsub.f32 %v3496, %v3510
        %v3527 = vsub.f32 %v3500, %v3506
        %v3528 = vsub.f32 %v3500, %v3510
        %v3529 = vand.u32 2147483647, %v3513
        %v3530 = vand.u32 2147483647, %v3514
        %v3531 = vand.u32 2147483647, %v3515
        %v3532 = vand.u32 2147483647, %v3516
        %v3533 = vand.u32 2147483647, %v3517
        %v3534 = vand.u32 2147483647, %v3518
        %v3535 = vand.u32 2147483647, %v3519
        %v3536 = vand.u32 2147483647, %v3520
        %v3537 = vand.u32 2147483647, %v3521
        %v3538 = vand.u32 2147483647, %v3522
        %v3539 = vand.u32 2147483647, %v3523
        %v3540 = vand.u32 2147483647, %v3524
        %v3541 = vand.u32 2147483647, %v3525
        %v3542 = vand.u32 2147483647, %v3526
        %v3543 = vand.u32 2147483647, %v3527
        %v3544 = vand.u32 2147483647, %v3528
        %v3545 = vadd.f32 %v3453, %v3529
        %v3546 = vadd.f32 %v3454, %v3530
        %v3547 = vadd.f32 %v3455, %v3531
        %v3548 = vadd.f32 %v3456, %v3532
        %v3549 = vadd.f32 %v3457, %v3533
        %v3550 = vadd.f32 %v3458, %v3534
        %v3551 = vadd.f32 %v3459, %v3535
        %v3552 = vadd.f32 %v3460, %v3536
        %v3553 = vadd.f32 %v3461, %v3537
        %v3554 = vadd.f32 %v3462, %v3538
        %v3555 = vadd.f32 %v3463, %v3539
        %v3556 = vadd.f32 %v3464, %v3540
        %v3557 = vadd.f32 %v3465, %v3541
        %v3558 = vadd.f32 %v3466, %v3542
        %v3559 = vadd.f32 %v3467, %v3543
        %v3560 = vadd.f32 %v3468, %v3544
        %v3561 = vld [vmem:[%s476] ss:$8 sm:$0x3]
        %3562 = vset.pattern.permute.xlu0 3
        %3563 = vperm.xlu0 %3562, %v3269
        %v3564 = vpop.permute.xlu0 %3563
        %3566 = vset.pattern.permute.xlu0 3
        %3567 = vperm.xlu0 %3566, %v3270
        %v3568 = vpop.permute.xlu0 %3567
        %3570 = vset.pattern.permute.xlu0 3
        %3571 = vperm.xlu0 %3570, %v3271
        %v3572 = vpop.permute.xlu0 %3571
        %3574 = vset.pattern.permute.xlu0 3
        %3575 = vperm.xlu0 %3574, %v3272
        %v3576 = vpop.permute.xlu0 %3575
        %3578 = vset.pattern.permute.xlu0 3
        %3579 = vperm.xlu0 %3578, %v3273
        %v3580 = vpop.permute.xlu0 %3579
        %3582 = vset.pattern.permute.xlu0 3
        %3583 = vperm.xlu0 %3582, %v3274
        %v3584 = vpop.permute.xlu0 %3583
        %3586 = vset.pattern.permute.xlu0 3
        %3587 = vperm.xlu0 %3586, %v3275
        %v3588 = vpop.permute.xlu0 %3587
        %3590 = vset.pattern.permute.xlu0 3
        %3591 = vperm.xlu0 %3590, %v3276
        %v3592 = vpop.permute.xlu0 %3591
        %v3595 = vlaneseq
        %v3596 = vshrl.u32 %v3595, 7
        %v3597 = vsub.s32 0, %v3596
        %v3598 = vrot.slane %v3561, %v3597
        %v3599 = vlaneseq
        %v3600 = vshrl.u32 %v3599, 7
        %v3601 = vsub.s32 1, %v3600
        %v3602 = vrot.slane %v3561, %v3601
        %v3605 = vsub.f32 %v3564, %v3598
        %v3606 = vsub.f32 %v3564, %v3602
        %v3607 = vsub.f32 %v3568, %v3598
        %v3608 = vsub.f32 %v3568, %v3602
        %v3609 = vsub.f32 %v3572, %v3598
        %v3610 = vsub.f32 %v3572, %v3602
        %v3611 = vsub.f32 %v3576, %v3598
        %v3612 = vsub.f32 %v3576, %v3602
        %v3613 = vsub.f32 %v3580, %v3598
        %v3614 = vsub.f32 %v3580, %v3602
        %v3615 = vsub.f32 %v3584, %v3598
        %v3616 = vsub.f32 %v3584, %v3602
        %v3617 = vsub.f32 %v3588, %v3598
        %v3618 = vsub.f32 %v3588, %v3602
        %v3619 = vsub.f32 %v3592, %v3598
        %v3620 = vsub.f32 %v3592, %v3602
        %v3621 = vand.u32 2147483647, %v3605
        %v3622 = vand.u32 2147483647, %v3606
        %v3623 = vand.u32 2147483647, %v3607
        %v3624 = vand.u32 2147483647, %v3608
        %v3625 = vand.u32 2147483647, %v3609
        %v3626 = vand.u32 2147483647, %v3610
        %v3627 = vand.u32 2147483647, %v3611
        %v3628 = vand.u32 2147483647, %v3612
        %v3629 = vand.u32 2147483647, %v3613
        %v3630 = vand.u32 2147483647, %v3614
        %v3631 = vand.u32 2147483647, %v3615
        %v3632 = vand.u32 2147483647, %v3616
        %v3633 = vand.u32 2147483647, %v3617
        %v3634 = vand.u32 2147483647, %v3618
        %v3635 = vand.u32 2147483647, %v3619
        %v3636 = vand.u32 2147483647, %v3620
        %v3637 = vadd.f32 %v3545, %v3621
        %v3638 = vadd.f32 %v3546, %v3622
        %v3639 = vadd.f32 %v3547, %v3623
        %v3640 = vadd.f32 %v3548, %v3624
        %v3641 = vadd.f32 %v3549, %v3625
        %v3642 = vadd.f32 %v3550, %v3626
        %v3643 = vadd.f32 %v3551, %v3627
        %v3644 = vadd.f32 %v3552, %v3628
        %v3645 = vadd.f32 %v3553, %v3629
        %v3646 = vadd.f32 %v3554, %v3630
        %v3647 = vadd.f32 %v3555, %v3631
        %v3648 = vadd.f32 %v3556, %v3632
        %v3649 = vadd.f32 %v3557, %v3633
        %v3650 = vadd.f32 %v3558, %v3634
        %v3651 = vadd.f32 %v3559, %v3635
        %v3652 = vadd.f32 %v3560, %v3636
        %v3653 = vld [vmem:[%s569] ss:$8 sm:$0x3]
        %3654 = vset.pattern.permute.xlu0 4
        %3655 = vperm.xlu0 %3654, %v3269
        %v3656 = vpop.permute.xlu0 %3655
        %3658 = vset.pattern.permute.xlu0 4
        %3659 = vperm.xlu0 %3658, %v3270
        %v3660 = vpop.permute.xlu0 %3659
        %3662 = vset.pattern.permute.xlu0 4
        %3663 = vperm.xlu0 %3662, %v3271
        %v3664 = vpop.permute.xlu0 %3663
        %3666 = vset.pattern.permute.xlu0 4
        %3667 = vperm.xlu0 %3666, %v3272
        %v3668 = vpop.permute.xlu0 %3667
        %3670 = vset.pattern.permute.xlu0 4
        %3671 = vperm.xlu0 %3670, %v3273
        %v3672 = vpop.permute.xlu0 %3671
        %3674 = vset.pattern.permute.xlu0 4
        %3675 = vperm.xlu0 %3674, %v3274
        %v3676 = vpop.permute.xlu0 %3675
        %3678 = vset.pattern.permute.xlu0 4
        %3679 = vperm.xlu0 %3678, %v3275
        %v3680 = vpop.permute.xlu0 %3679
        %3682 = vset.pattern.permute.xlu0 4
        %3683 = vperm.xlu0 %3682, %v3276
        %v3684 = vpop.permute.xlu0 %3683
        %v3687 = vlaneseq
        %v3688 = vshrl.u32 %v3687, 7
        %v3689 = vsub.s32 0, %v3688
        %v3690 = vrot.slane %v3653, %v3689
        %v3691 = vlaneseq
        %v3692 = vshrl.u32 %v3691, 7
        %v3693 = vsub.s32 1, %v3692
        %v3694 = vrot.slane %v3653, %v3693
        %v3697 = vsub.f32 %v3656, %v3690
        %v3698 = vsub.f32 %v3656, %v3694
        %v3699 = vsub.f32 %v3660, %v3690
        %v3700 = vsub.f32 %v3660, %v3694
        %v3701 = vsub.f32 %v3664, %v3690
        %v3702 = vsub.f32 %v3664, %v3694
        %v3703 = vsub.f32 %v3668, %v3690
        %v3704 = vsub.f32 %v3668, %v3694
        %v3705 = vsub.f32 %v3672, %v3690
        %v3706 = vsub.f32 %v3672, %v3694
        %v3707 = vsub.f32 %v3676, %v3690
        %v3708 = vsub.f32 %v3676, %v3694
        %v3709 = vsub.f32 %v3680, %v3690
        %v3710 = vsub.f32 %v3680, %v3694
        %v3711 = vsub.f32 %v3684, %v3690
        %v3712 = vsub.f32 %v3684, %v3694
        %v3713 = vand.u32 2147483647, %v3697
        %v3714 = vand.u32 2147483647, %v3698
        %v3715 = vand.u32 2147483647, %v3699
        %v3716 = vand.u32 2147483647, %v3700
        %v3717 = vand.u32 2147483647, %v3701
        %v3718 = vand.u32 2147483647, %v3702
        %v3719 = vand.u32 2147483647, %v3703
        %v3720 = vand.u32 2147483647, %v3704
        %v3721 = vand.u32 2147483647, %v3705
        %v3722 = vand.u32 2147483647, %v3706
        %v3723 = vand.u32 2147483647, %v3707
        %v3724 = vand.u32 2147483647, %v3708
        %v3725 = vand.u32 2147483647, %v3709
        %v3726 = vand.u32 2147483647, %v3710
        %v3727 = vand.u32 2147483647, %v3711
        %v3728 = vand.u32 2147483647, %v3712
        %v3729 = vadd.f32 %v3637, %v3713
        %v3730 = vadd.f32 %v3638, %v3714
        %v3731 = vadd.f32 %v3639, %v3715
        %v3732 = vadd.f32 %v3640, %v3716
        %v3733 = vadd.f32 %v3641, %v3717
        %v3734 = vadd.f32 %v3642, %v3718
        %v3735 = vadd.f32 %v3643, %v3719
        %v3736 = vadd.f32 %v3644, %v3720
        %v3737 = vadd.f32 %v3645, %v3721
        %v3738 = vadd.f32 %v3646, %v3722
        %v3739 = vadd.f32 %v3647, %v3723
        %v3740 = vadd.f32 %v3648, %v3724
        %v3741 = vadd.f32 %v3649, %v3725
        %v3742 = vadd.f32 %v3650, %v3726
        %v3743 = vadd.f32 %v3651, %v3727
        %v3744 = vadd.f32 %v3652, %v3728
        %v3745 = vld [vmem:[%s662] ss:$8 sm:$0x3]
        %3746 = vset.pattern.permute.xlu0 5
        %3747 = vperm.xlu0 %3746, %v3269
        %v3748 = vpop.permute.xlu0 %3747
        %3750 = vset.pattern.permute.xlu0 5
        %3751 = vperm.xlu0 %3750, %v3270
        %v3752 = vpop.permute.xlu0 %3751
        %3754 = vset.pattern.permute.xlu0 5
        %3755 = vperm.xlu0 %3754, %v3271
        %v3756 = vpop.permute.xlu0 %3755
        %3758 = vset.pattern.permute.xlu0 5
        %3759 = vperm.xlu0 %3758, %v3272
        %v3760 = vpop.permute.xlu0 %3759
        %3762 = vset.pattern.permute.xlu0 5
        %3763 = vperm.xlu0 %3762, %v3273
        %v3764 = vpop.permute.xlu0 %3763
        %3766 = vset.pattern.permute.xlu0 5
        %3767 = vperm.xlu0 %3766, %v3274
        %v3768 = vpop.permute.xlu0 %3767
        %3770 = vset.pattern.permute.xlu0 5
        %3771 = vperm.xlu0 %3770, %v3275
        %v3772 = vpop.permute.xlu0 %3771
        %3774 = vset.pattern.permute.xlu0 5
        %3775 = vperm.xlu0 %3774, %v3276
        %v3776 = vpop.permute.xlu0 %3775
        %v3779 = vlaneseq
        %v3780 = vshrl.u32 %v3779, 7
        %v3781 = vsub.s32 0, %v3780
        %v3782 = vrot.slane %v3745, %v3781
        %v3783 = vlaneseq
        %v3784 = vshrl.u32 %v3783, 7
        %v3785 = vsub.s32 1, %v3784
        %v3786 = vrot.slane %v3745, %v3785
        %v3789 = vsub.f32 %v3748, %v3782
        %v3790 = vsub.f32 %v3748, %v3786
        %v3791 = vsub.f32 %v3752, %v3782
        %v3792 = vsub.f32 %v3752, %v3786
        %v3793 = vsub.f32 %v3756, %v3782
        %v3794 = vsub.f32 %v3756, %v3786
        %v3795 = vsub.f32 %v3760, %v3782
        %v3796 = vsub.f32 %v3760, %v3786
        %v3797 = vsub.f32 %v3764, %v3782
        %v3798 = vsub.f32 %v3764, %v3786
        %v3799 = vsub.f32 %v3768, %v3782
        %v3800 = vsub.f32 %v3768, %v3786
        %v3801 = vsub.f32 %v3772, %v3782
        %v3802 = vsub.f32 %v3772, %v3786
        %v3803 = vsub.f32 %v3776, %v3782
        %v3804 = vsub.f32 %v3776, %v3786
        %v3805 = vand.u32 2147483647, %v3789
        %v3806 = vand.u32 2147483647, %v3790
        %v3807 = vand.u32 2147483647, %v3791
        %v3808 = vand.u32 2147483647, %v3792
        %v3809 = vand.u32 2147483647, %v3793
        %v3810 = vand.u32 2147483647, %v3794
        %v3811 = vand.u32 2147483647, %v3795
        %v3812 = vand.u32 2147483647, %v3796
        %v3813 = vand.u32 2147483647, %v3797
        %v3814 = vand.u32 2147483647, %v3798
        %v3815 = vand.u32 2147483647, %v3799
        %v3816 = vand.u32 2147483647, %v3800
        %v3817 = vand.u32 2147483647, %v3801
        %v3818 = vand.u32 2147483647, %v3802
        %v3819 = vand.u32 2147483647, %v3803
        %v3820 = vand.u32 2147483647, %v3804
        %v3821 = vadd.f32 %v3729, %v3805
        %v3822 = vadd.f32 %v3730, %v3806
        %v3823 = vadd.f32 %v3731, %v3807
        %v3824 = vadd.f32 %v3732, %v3808
        %v3825 = vadd.f32 %v3733, %v3809
        %v3826 = vadd.f32 %v3734, %v3810
        %v3827 = vadd.f32 %v3735, %v3811
        %v3828 = vadd.f32 %v3736, %v3812
        %v3829 = vadd.f32 %v3737, %v3813
        %v3830 = vadd.f32 %v3738, %v3814
        %v3831 = vadd.f32 %v3739, %v3815
        %v3832 = vadd.f32 %v3740, %v3816
        %v3833 = vadd.f32 %v3741, %v3817
        %v3834 = vadd.f32 %v3742, %v3818
        %v3835 = vadd.f32 %v3743, %v3819
        %v3836 = vadd.f32 %v3744, %v3820
        %v3837 = vld [vmem:[%s755] ss:$8 sm:$0x3]
        %3838 = vset.pattern.permute.xlu0 6
        %3839 = vperm.xlu0 %3838, %v3269
        %v3840 = vpop.permute.xlu0 %3839
        %3842 = vset.pattern.permute.xlu0 6
        %3843 = vperm.xlu0 %3842, %v3270
        %v3844 = vpop.permute.xlu0 %3843
        %3846 = vset.pattern.permute.xlu0 6
        %3847 = vperm.xlu0 %3846, %v3271
        %v3848 = vpop.permute.xlu0 %3847
        %3850 = vset.pattern.permute.xlu0 6
        %3851 = vperm.xlu0 %3850, %v3272
        %v3852 = vpop.permute.xlu0 %3851
        %3854 = vset.pattern.permute.xlu0 6
        %3855 = vperm.xlu0 %3854, %v3273
        %v3856 = vpop.permute.xlu0 %3855
        %3858 = vset.pattern.permute.xlu0 6
        %3859 = vperm.xlu0 %3858, %v3274
        %v3860 = vpop.permute.xlu0 %3859
        %3862 = vset.pattern.permute.xlu0 6
        %3863 = vperm.xlu0 %3862, %v3275
        %v3864 = vpop.permute.xlu0 %3863
        %3866 = vset.pattern.permute.xlu0 6
        %3867 = vperm.xlu0 %3866, %v3276
        %v3868 = vpop.permute.xlu0 %3867
        %v3871 = vlaneseq
        %v3872 = vshrl.u32 %v3871, 7
        %v3873 = vsub.s32 0, %v3872
        %v3874 = vrot.slane %v3837, %v3873
        %v3875 = vlaneseq
        %v3876 = vshrl.u32 %v3875, 7
        %v3877 = vsub.s32 1, %v3876
        %v3878 = vrot.slane %v3837, %v3877
        %v3881 = vsub.f32 %v3840, %v3874
        %v3882 = vsub.f32 %v3840, %v3878
        %v3883 = vsub.f32 %v3844, %v3874
        %v3884 = vsub.f32 %v3844, %v3878
        %v3885 = vsub.f32 %v3848, %v3874
        %v3886 = vsub.f32 %v3848, %v3878
        %v3887 = vsub.f32 %v3852, %v3874
        %v3888 = vsub.f32 %v3852, %v3878
        %v3889 = vsub.f32 %v3856, %v3874
        %v3890 = vsub.f32 %v3856, %v3878
        %v3891 = vsub.f32 %v3860, %v3874
        %v3892 = vsub.f32 %v3860, %v3878
        %v3893 = vsub.f32 %v3864, %v3874
        %v3894 = vsub.f32 %v3864, %v3878
        %v3895 = vsub.f32 %v3868, %v3874
        %v3896 = vsub.f32 %v3868, %v3878
        %v3897 = vand.u32 2147483647, %v3881
        %v3898 = vand.u32 2147483647, %v3882
        %v3899 = vand.u32 2147483647, %v3883
        %v3900 = vand.u32 2147483647, %v3884
        %v3901 = vand.u32 2147483647, %v3885
        %v3902 = vand.u32 2147483647, %v3886
        %v3903 = vand.u32 2147483647, %v3887
        %v3904 = vand.u32 2147483647, %v3888
        %v3905 = vand.u32 2147483647, %v3889
        %v3906 = vand.u32 2147483647, %v3890
        %v3907 = vand.u32 2147483647, %v3891
        %v3908 = vand.u32 2147483647, %v3892
        %v3909 = vand.u32 2147483647, %v3893
        %v3910 = vand.u32 2147483647, %v3894
        %v3911 = vand.u32 2147483647, %v3895
        %v3912 = vand.u32 2147483647, %v3896
        %v3913 = vadd.f32 %v3821, %v3897
        %v3914 = vadd.f32 %v3822, %v3898
        %v3915 = vadd.f32 %v3823, %v3899
        %v3916 = vadd.f32 %v3824, %v3900
        %v3917 = vadd.f32 %v3825, %v3901
        %v3918 = vadd.f32 %v3826, %v3902
        %v3919 = vadd.f32 %v3827, %v3903
        %v3920 = vadd.f32 %v3828, %v3904
        %v3921 = vadd.f32 %v3829, %v3905
        %v3922 = vadd.f32 %v3830, %v3906
        %v3923 = vadd.f32 %v3831, %v3907
        %v3924 = vadd.f32 %v3832, %v3908
        %v3925 = vadd.f32 %v3833, %v3909
        %v3926 = vadd.f32 %v3834, %v3910
        %v3927 = vadd.f32 %v3835, %v3911
        %v3928 = vadd.f32 %v3836, %v3912
        %v3929 = vld [vmem:[%s848] ss:$8 sm:$0x3]
        %3930 = vset.pattern.permute.xlu0 7
        %3931 = vperm.xlu0 %3930, %v3269
        %v3932 = vpop.permute.xlu0 %3931
        %3934 = vset.pattern.permute.xlu0 7
        %3935 = vperm.xlu0 %3934, %v3270
        %v3936 = vpop.permute.xlu0 %3935
        %3938 = vset.pattern.permute.xlu0 7
        %3939 = vperm.xlu0 %3938, %v3271
        %v3940 = vpop.permute.xlu0 %3939
        %3942 = vset.pattern.permute.xlu0 7
        %3943 = vperm.xlu0 %3942, %v3272
        %v3944 = vpop.permute.xlu0 %3943
        %3946 = vset.pattern.permute.xlu0 7
        %3947 = vperm.xlu0 %3946, %v3273
        %v3948 = vpop.permute.xlu0 %3947
        %3950 = vset.pattern.permute.xlu0 7
        %3951 = vperm.xlu0 %3950, %v3274
        %v3952 = vpop.permute.xlu0 %3951
        %3954 = vset.pattern.permute.xlu0 7
        %3955 = vperm.xlu0 %3954, %v3275
        %v3956 = vpop.permute.xlu0 %3955
        %3958 = vset.pattern.permute.xlu0 7
        %3959 = vperm.xlu0 %3958, %v3276
        %v3960 = vpop.permute.xlu0 %3959
        %v3963 = vlaneseq
        %v3964 = vshrl.u32 %v3963, 7
        %v3965 = vsub.s32 0, %v3964
        %v3966 = vrot.slane %v3929, %v3965
        %v3967 = vlaneseq
        %v3968 = vshrl.u32 %v3967, 7
        %v3969 = vsub.s32 1, %v3968
        %v3970 = vrot.slane %v3929, %v3969
        %v3973 = vsub.f32 %v3932, %v3966
        %v3974 = vsub.f32 %v3932, %v3970
        %v3975 = vsub.f32 %v3936, %v3966
        %v3976 = vsub.f32 %v3936, %v3970
        %v3977 = vsub.f32 %v3940, %v3966
        %v3978 = vsub.f32 %v3940, %v3970
        %v3979 = vsub.f32 %v3944, %v3966
        %v3980 = vsub.f32 %v3944, %v3970
        %v3981 = vsub.f32 %v3948, %v3966
        %v3982 = vsub.f32 %v3948, %v3970
        %v3983 = vsub.f32 %v3952, %v3966
        %v3984 = vsub.f32 %v3952, %v3970
        %v3985 = vsub.f32 %v3956, %v3966
        %v3986 = vsub.f32 %v3956, %v3970
        %v3987 = vsub.f32 %v3960, %v3966
        %v3988 = vsub.f32 %v3960, %v3970
        %v3989 = vand.u32 2147483647, %v3973
        %v3990 = vand.u32 2147483647, %v3974
        %v3991 = vand.u32 2147483647, %v3975
        %v3992 = vand.u32 2147483647, %v3976
        %v3993 = vand.u32 2147483647, %v3977
        %v3994 = vand.u32 2147483647, %v3978
        %v3995 = vand.u32 2147483647, %v3979
        %v3996 = vand.u32 2147483647, %v3980
        %v3997 = vand.u32 2147483647, %v3981
        %v3998 = vand.u32 2147483647, %v3982
        %v3999 = vand.u32 2147483647, %v3983
        %v4000 = vand.u32 2147483647, %v3984
        %v4001 = vand.u32 2147483647, %v3985
        %v4002 = vand.u32 2147483647, %v3986
        %v4003 = vand.u32 2147483647, %v3987
        %v4004 = vand.u32 2147483647, %v3988
        %v4005 = vadd.f32 %v3913, %v3989
        %v4006 = vadd.f32 %v3914, %v3990
        %v4007 = vadd.f32 %v3915, %v3991
        %v4008 = vadd.f32 %v3916, %v3992
        %v4009 = vadd.f32 %v3917, %v3993
        %v4010 = vadd.f32 %v3918, %v3994
        %v4011 = vadd.f32 %v3919, %v3995
        %v4012 = vadd.f32 %v3920, %v3996
        %v4013 = vadd.f32 %v3921, %v3997
        %v4014 = vadd.f32 %v3922, %v3998
        %v4015 = vadd.f32 %v3923, %v3999
        %v4016 = vadd.f32 %v3924, %v4000
        %v4017 = vadd.f32 %v3925, %v4001
        %v4018 = vadd.f32 %v3926, %v4002
        %v4019 = vadd.f32 %v3927, %v4003
        %v4020 = vadd.f32 %v3928, %v4004
        %v4021 = vld [vmem:[%s941] ss:$8 sm:$0x3]
        %4022 = vset.pattern.permute.xlu0 8
        %4023 = vperm.xlu0 %4022, %v3269
        %v4024 = vpop.permute.xlu0 %4023
        %4026 = vset.pattern.permute.xlu0 8
        %4027 = vperm.xlu0 %4026, %v3270
        %v4028 = vpop.permute.xlu0 %4027
        %4030 = vset.pattern.permute.xlu0 8
        %4031 = vperm.xlu0 %4030, %v3271
        %v4032 = vpop.permute.xlu0 %4031
        %4034 = vset.pattern.permute.xlu0 8
        %4035 = vperm.xlu0 %4034, %v3272
        %v4036 = vpop.permute.xlu0 %4035
        %4038 = vset.pattern.permute.xlu0 8
        %4039 = vperm.xlu0 %4038, %v3273
        %v4040 = vpop.permute.xlu0 %4039
        %4042 = vset.pattern.permute.xlu0 8
        %4043 = vperm.xlu0 %4042, %v3274
        %v4044 = vpop.permute.xlu0 %4043
        %4046 = vset.pattern.permute.xlu0 8
        %4047 = vperm.xlu0 %4046, %v3275
        %v4048 = vpop.permute.xlu0 %4047
        %4050 = vset.pattern.permute.xlu0 8
        %4051 = vperm.xlu0 %4050, %v3276
        %v4052 = vpop.permute.xlu0 %4051
        %v4055 = vlaneseq
        %v4056 = vshrl.u32 %v4055, 7
        %v4057 = vsub.s32 0, %v4056
        %v4058 = vrot.slane %v4021, %v4057
        %v4059 = vlaneseq
        %v4060 = vshrl.u32 %v4059, 7
        %v4061 = vsub.s32 1, %v4060
        %v4062 = vrot.slane %v4021, %v4061
        %v4065 = vsub.f32 %v4024, %v4058
        %v4066 = vsub.f32 %v4024, %v4062
        %v4067 = vsub.f32 %v4028, %v4058
        %v4068 = vsub.f32 %v4028, %v4062
        %v4069 = vsub.f32 %v4032, %v4058
        %v4070 = vsub.f32 %v4032, %v4062
        %v4071 = vsub.f32 %v4036, %v4058
        %v4072 = vsub.f32 %v4036, %v4062
        %v4073 = vsub.f32 %v4040, %v4058
        %v4074 = vsub.f32 %v4040, %v4062
        %v4075 = vsub.f32 %v4044, %v4058
        %v4076 = vsub.f32 %v4044, %v4062
        %v4077 = vsub.f32 %v4048, %v4058
        %v4078 = vsub.f32 %v4048, %v4062
        %v4079 = vsub.f32 %v4052, %v4058
        %v4080 = vsub.f32 %v4052, %v4062
        %v4081 = vand.u32 2147483647, %v4065
        %v4082 = vand.u32 2147483647, %v4066
        %v4083 = vand.u32 2147483647, %v4067
        %v4084 = vand.u32 2147483647, %v4068
        %v4085 = vand.u32 2147483647, %v4069
        %v4086 = vand.u32 2147483647, %v4070
        %v4087 = vand.u32 2147483647, %v4071
        %v4088 = vand.u32 2147483647, %v4072
        %v4089 = vand.u32 2147483647, %v4073
        %v4090 = vand.u32 2147483647, %v4074
        %v4091 = vand.u32 2147483647, %v4075
        %v4092 = vand.u32 2147483647, %v4076
        %v4093 = vand.u32 2147483647, %v4077
        %v4094 = vand.u32 2147483647, %v4078
        %v4095 = vand.u32 2147483647, %v4079
        %v4096 = vand.u32 2147483647, %v4080
        %v4097 = vadd.f32 %v4005, %v4081
        %v4098 = vadd.f32 %v4006, %v4082
        %v4099 = vadd.f32 %v4007, %v4083
        %v4100 = vadd.f32 %v4008, %v4084
        %v4101 = vadd.f32 %v4009, %v4085
        %v4102 = vadd.f32 %v4010, %v4086
        %v4103 = vadd.f32 %v4011, %v4087
        %v4104 = vadd.f32 %v4012, %v4088
        %v4105 = vadd.f32 %v4013, %v4089
        %v4106 = vadd.f32 %v4014, %v4090
        %v4107 = vadd.f32 %v4015, %v4091
        %v4108 = vadd.f32 %v4016, %v4092
        %v4109 = vadd.f32 %v4017, %v4093
        %v4110 = vadd.f32 %v4018, %v4094
        %v4111 = vadd.f32 %v4019, %v4095
        %v4112 = vadd.f32 %v4020, %v4096
        %v4113 = vld [vmem:[%s1034] ss:$8 sm:$0x3]
        %4114 = vset.pattern.permute.xlu0 9
        %4115 = vperm.xlu0 %4114, %v3269
        %v4116 = vpop.permute.xlu0 %4115
        %4118 = vset.pattern.permute.xlu0 9
        %4119 = vperm.xlu0 %4118, %v3270
        %v4120 = vpop.permute.xlu0 %4119
        %4122 = vset.pattern.permute.xlu0 9
        %4123 = vperm.xlu0 %4122, %v3271
        %v4124 = vpop.permute.xlu0 %4123
        %4126 = vset.pattern.permute.xlu0 9
        %4127 = vperm.xlu0 %4126, %v3272
        %v4128 = vpop.permute.xlu0 %4127
        %4130 = vset.pattern.permute.xlu0 9
        %4131 = vperm.xlu0 %4130, %v3273
        %v4132 = vpop.permute.xlu0 %4131
        %4134 = vset.pattern.permute.xlu0 9
        %4135 = vperm.xlu0 %4134, %v3274
        %v4136 = vpop.permute.xlu0 %4135
        %4138 = vset.pattern.permute.xlu0 9
        %4139 = vperm.xlu0 %4138, %v3275
        %v4140 = vpop.permute.xlu0 %4139
        %4142 = vset.pattern.permute.xlu0 9
        %4143 = vperm.xlu0 %4142, %v3276
        %v4144 = vpop.permute.xlu0 %4143
        %v4147 = vlaneseq
        %v4148 = vshrl.u32 %v4147, 7
        %v4149 = vsub.s32 0, %v4148
        %v4150 = vrot.slane %v4113, %v4149
        %v4151 = vlaneseq
        %v4152 = vshrl.u32 %v4151, 7
        %v4153 = vsub.s32 1, %v4152
        %v4154 = vrot.slane %v4113, %v4153
        %v4157 = vsub.f32 %v4116, %v4150
        %v4158 = vsub.f32 %v4116, %v4154
        %v4159 = vsub.f32 %v4120, %v4150
        %v4160 = vsub.f32 %v4120, %v4154
        %v4161 = vsub.f32 %v4124, %v4150
        %v4162 = vsub.f32 %v4124, %v4154
        %v4163 = vsub.f32 %v4128, %v4150
        %v4164 = vsub.f32 %v4128, %v4154
        %v4165 = vsub.f32 %v4132, %v4150
        %v4166 = vsub.f32 %v4132, %v4154
        %v4167 = vsub.f32 %v4136, %v4150
        %v4168 = vsub.f32 %v4136, %v4154
        %v4169 = vsub.f32 %v4140, %v4150
        %v4170 = vsub.f32 %v4140, %v4154
        %v4171 = vsub.f32 %v4144, %v4150
        %v4172 = vsub.f32 %v4144, %v4154
        %v4173 = vand.u32 2147483647, %v4157
        %v4174 = vand.u32 2147483647, %v4158
        %v4175 = vand.u32 2147483647, %v4159
        %v4176 = vand.u32 2147483647, %v4160
        %v4177 = vand.u32 2147483647, %v4161
        %v4178 = vand.u32 2147483647, %v4162
        %v4179 = vand.u32 2147483647, %v4163
        %v4180 = vand.u32 2147483647, %v4164
        %v4181 = vand.u32 2147483647, %v4165
        %v4182 = vand.u32 2147483647, %v4166
        %v4183 = vand.u32 2147483647, %v4167
        %v4184 = vand.u32 2147483647, %v4168
        %v4185 = vand.u32 2147483647, %v4169
        %v4186 = vand.u32 2147483647, %v4170
        %v4187 = vand.u32 2147483647, %v4171
        %v4188 = vand.u32 2147483647, %v4172
        %v4189 = vadd.f32 %v4097, %v4173
        %v4190 = vadd.f32 %v4098, %v4174
        %v4191 = vadd.f32 %v4099, %v4175
        %v4192 = vadd.f32 %v4100, %v4176
        %v4193 = vadd.f32 %v4101, %v4177
        %v4194 = vadd.f32 %v4102, %v4178
        %v4195 = vadd.f32 %v4103, %v4179
        %v4196 = vadd.f32 %v4104, %v4180
        %v4197 = vadd.f32 %v4105, %v4181
        %v4198 = vadd.f32 %v4106, %v4182
        %v4199 = vadd.f32 %v4107, %v4183
        %v4200 = vadd.f32 %v4108, %v4184
        %v4201 = vadd.f32 %v4109, %v4185
        %v4202 = vadd.f32 %v4110, %v4186
        %v4203 = vadd.f32 %v4111, %v4187
        %v4204 = vadd.f32 %v4112, %v4188
        %v4205 = vld [vmem:[%s1127] ss:$8 sm:$0x3]
        %4206 = vset.pattern.permute.xlu0 10
        %4207 = vperm.xlu0 %4206, %v3269
        %v4208 = vpop.permute.xlu0 %4207
        %4210 = vset.pattern.permute.xlu0 10
        %4211 = vperm.xlu0 %4210, %v3270
        %v4212 = vpop.permute.xlu0 %4211
        %4214 = vset.pattern.permute.xlu0 10
        %4215 = vperm.xlu0 %4214, %v3271
        %v4216 = vpop.permute.xlu0 %4215
        %4218 = vset.pattern.permute.xlu0 10
        %4219 = vperm.xlu0 %4218, %v3272
        %v4220 = vpop.permute.xlu0 %4219
        %4222 = vset.pattern.permute.xlu0 10
        %4223 = vperm.xlu0 %4222, %v3273
        %v4224 = vpop.permute.xlu0 %4223
        %4226 = vset.pattern.permute.xlu0 10
        %4227 = vperm.xlu0 %4226, %v3274
        %v4228 = vpop.permute.xlu0 %4227
        %4230 = vset.pattern.permute.xlu0 10
        %4231 = vperm.xlu0 %4230, %v3275
        %v4232 = vpop.permute.xlu0 %4231
        %4234 = vset.pattern.permute.xlu0 10
        %4235 = vperm.xlu0 %4234, %v3276
        %v4236 = vpop.permute.xlu0 %4235
        %v4239 = vlaneseq
        %v4240 = vshrl.u32 %v4239, 7
        %v4241 = vsub.s32 0, %v4240
        %v4242 = vrot.slane %v4205, %v4241
        %v4243 = vlaneseq
        %v4244 = vshrl.u32 %v4243, 7
        %v4245 = vsub.s32 1, %v4244
        %v4246 = vrot.slane %v4205, %v4245
        %v4249 = vsub.f32 %v4208, %v4242
        %v4250 = vsub.f32 %v4208, %v4246
        %v4251 = vsub.f32 %v4212, %v4242
        %v4252 = vsub.f32 %v4212, %v4246
        %v4253 = vsub.f32 %v4216, %v4242
        %v4254 = vsub.f32 %v4216, %v4246
        %v4255 = vsub.f32 %v4220, %v4242
        %v4256 = vsub.f32 %v4220, %v4246
        %v4257 = vsub.f32 %v4224, %v4242
        %v4258 = vsub.f32 %v4224, %v4246
        %v4259 = vsub.f32 %v4228, %v4242
        %v4260 = vsub.f32 %v4228, %v4246
        %v4261 = vsub.f32 %v4232, %v4242
        %v4262 = vsub.f32 %v4232, %v4246
        %v4263 = vsub.f32 %v4236, %v4242
        %v4264 = vsub.f32 %v4236, %v4246
        %v4265 = vand.u32 2147483647, %v4249
        %v4266 = vand.u32 2147483647, %v4250
        %v4267 = vand.u32 2147483647, %v4251
        %v4268 = vand.u32 2147483647, %v4252
        %v4269 = vand.u32 2147483647, %v4253
        %v4270 = vand.u32 2147483647, %v4254
        %v4271 = vand.u32 2147483647, %v4255
        %v4272 = vand.u32 2147483647, %v4256
        %v4273 = vand.u32 2147483647, %v4257
        %v4274 = vand.u32 2147483647, %v4258
        %v4275 = vand.u32 2147483647, %v4259
        %v4276 = vand.u32 2147483647, %v4260
        %v4277 = vand.u32 2147483647, %v4261
        %v4278 = vand.u32 2147483647, %v4262
        %v4279 = vand.u32 2147483647, %v4263
        %v4280 = vand.u32 2147483647, %v4264
        %v4281 = vadd.f32 %v4189, %v4265
        %v4282 = vadd.f32 %v4190, %v4266
        %v4283 = vadd.f32 %v4191, %v4267
        %v4284 = vadd.f32 %v4192, %v4268
        %v4285 = vadd.f32 %v4193, %v4269
        %v4286 = vadd.f32 %v4194, %v4270
        %v4287 = vadd.f32 %v4195, %v4271
        %v4288 = vadd.f32 %v4196, %v4272
        %v4289 = vadd.f32 %v4197, %v4273
        %v4290 = vadd.f32 %v4198, %v4274
        %v4291 = vadd.f32 %v4199, %v4275
        %v4292 = vadd.f32 %v4200, %v4276
        %v4293 = vadd.f32 %v4201, %v4277
        %v4294 = vadd.f32 %v4202, %v4278
        %v4295 = vadd.f32 %v4203, %v4279
        %v4296 = vadd.f32 %v4204, %v4280
        %v4297 = vld [vmem:[%s1220] ss:$8 sm:$0x3]
        %4298 = vset.pattern.permute.xlu0 11
        %4299 = vperm.xlu0 %4298, %v3269
        %v4300 = vpop.permute.xlu0 %4299
        %4302 = vset.pattern.permute.xlu0 11
        %4303 = vperm.xlu0 %4302, %v3270
        %v4304 = vpop.permute.xlu0 %4303
        %4306 = vset.pattern.permute.xlu0 11
        %4307 = vperm.xlu0 %4306, %v3271
        %v4308 = vpop.permute.xlu0 %4307
        %4310 = vset.pattern.permute.xlu0 11
        %4311 = vperm.xlu0 %4310, %v3272
        %v4312 = vpop.permute.xlu0 %4311
        %4314 = vset.pattern.permute.xlu0 11
        %4315 = vperm.xlu0 %4314, %v3273
        %v4316 = vpop.permute.xlu0 %4315
        %4318 = vset.pattern.permute.xlu0 11
        %4319 = vperm.xlu0 %4318, %v3274
        %v4320 = vpop.permute.xlu0 %4319
        %4322 = vset.pattern.permute.xlu0 11
        %4323 = vperm.xlu0 %4322, %v3275
        %v4324 = vpop.permute.xlu0 %4323
        %4326 = vset.pattern.permute.xlu0 11
        %4327 = vperm.xlu0 %4326, %v3276
        %v4328 = vpop.permute.xlu0 %4327
        %v4331 = vlaneseq
        %v4332 = vshrl.u32 %v4331, 7
        %v4333 = vsub.s32 0, %v4332
        %v4334 = vrot.slane %v4297, %v4333
        %v4335 = vlaneseq
        %v4336 = vshrl.u32 %v4335, 7
        %v4337 = vsub.s32 1, %v4336
        %v4338 = vrot.slane %v4297, %v4337
        %v4341 = vsub.f32 %v4300, %v4334
        %v4342 = vsub.f32 %v4300, %v4338
        %v4343 = vsub.f32 %v4304, %v4334
        %v4344 = vsub.f32 %v4304, %v4338
        %v4345 = vsub.f32 %v4308, %v4334
        %v4346 = vsub.f32 %v4308, %v4338
        %v4347 = vsub.f32 %v4312, %v4334
        %v4348 = vsub.f32 %v4312, %v4338
        %v4349 = vsub.f32 %v4316, %v4334
        %v4350 = vsub.f32 %v4316, %v4338
        %v4351 = vsub.f32 %v4320, %v4334
        %v4352 = vsub.f32 %v4320, %v4338
        %v4353 = vsub.f32 %v4324, %v4334
        %v4354 = vsub.f32 %v4324, %v4338
        %v4355 = vsub.f32 %v4328, %v4334
        %v4356 = vsub.f32 %v4328, %v4338
        %v4357 = vand.u32 2147483647, %v4341
        %v4358 = vand.u32 2147483647, %v4342
        %v4359 = vand.u32 2147483647, %v4343
        %v4360 = vand.u32 2147483647, %v4344
        %v4361 = vand.u32 2147483647, %v4345
        %v4362 = vand.u32 2147483647, %v4346
        %v4363 = vand.u32 2147483647, %v4347
        %v4364 = vand.u32 2147483647, %v4348
        %v4365 = vand.u32 2147483647, %v4349
        %v4366 = vand.u32 2147483647, %v4350
        %v4367 = vand.u32 2147483647, %v4351
        %v4368 = vand.u32 2147483647, %v4352
        %v4369 = vand.u32 2147483647, %v4353
        %v4370 = vand.u32 2147483647, %v4354
        %v4371 = vand.u32 2147483647, %v4355
        %v4372 = vand.u32 2147483647, %v4356
        %v4373 = vadd.f32 %v4281, %v4357
        %v4374 = vadd.f32 %v4282, %v4358
        %v4375 = vadd.f32 %v4283, %v4359
        %v4376 = vadd.f32 %v4284, %v4360
        %v4377 = vadd.f32 %v4285, %v4361
        %v4378 = vadd.f32 %v4286, %v4362
        %v4379 = vadd.f32 %v4287, %v4363
        %v4380 = vadd.f32 %v4288, %v4364
        %v4381 = vadd.f32 %v4289, %v4365
        %v4382 = vadd.f32 %v4290, %v4366
        %v4383 = vadd.f32 %v4291, %v4367
        %v4384 = vadd.f32 %v4292, %v4368
        %v4385 = vadd.f32 %v4293, %v4369
        %v4386 = vadd.f32 %v4294, %v4370
        %v4387 = vadd.f32 %v4295, %v4371
        %v4388 = vadd.f32 %v4296, %v4372
        %v4389 = vld [vmem:[%s1313] ss:$8 sm:$0x3]
        %4390 = vset.pattern.permute.xlu0 12
        %4391 = vperm.xlu0 %4390, %v3269
        %v4392 = vpop.permute.xlu0 %4391
        %4394 = vset.pattern.permute.xlu0 12
        %4395 = vperm.xlu0 %4394, %v3270
        %v4396 = vpop.permute.xlu0 %4395
        %4398 = vset.pattern.permute.xlu0 12
        %4399 = vperm.xlu0 %4398, %v3271
        %v4400 = vpop.permute.xlu0 %4399
        %4402 = vset.pattern.permute.xlu0 12
        %4403 = vperm.xlu0 %4402, %v3272
        %v4404 = vpop.permute.xlu0 %4403
        %4406 = vset.pattern.permute.xlu0 12
        %4407 = vperm.xlu0 %4406, %v3273
        %v4408 = vpop.permute.xlu0 %4407
        %4410 = vset.pattern.permute.xlu0 12
        %4411 = vperm.xlu0 %4410, %v3274
        %v4412 = vpop.permute.xlu0 %4411
        %4414 = vset.pattern.permute.xlu0 12
        %4415 = vperm.xlu0 %4414, %v3275
        %v4416 = vpop.permute.xlu0 %4415
        %4418 = vset.pattern.permute.xlu0 12
        %4419 = vperm.xlu0 %4418, %v3276
        %v4420 = vpop.permute.xlu0 %4419
        %v4423 = vlaneseq
        %v4424 = vshrl.u32 %v4423, 7
        %v4425 = vsub.s32 0, %v4424
        %v4426 = vrot.slane %v4389, %v4425
        %v4427 = vlaneseq
        %v4428 = vshrl.u32 %v4427, 7
        %v4429 = vsub.s32 1, %v4428
        %v4430 = vrot.slane %v4389, %v4429
        %v4433 = vsub.f32 %v4392, %v4426
        %v4434 = vsub.f32 %v4392, %v4430
        %v4435 = vsub.f32 %v4396, %v4426
        %v4436 = vsub.f32 %v4396, %v4430
        %v4437 = vsub.f32 %v4400, %v4426
        %v4438 = vsub.f32 %v4400, %v4430
        %v4439 = vsub.f32 %v4404, %v4426
        %v4440 = vsub.f32 %v4404, %v4430
        %v4441 = vsub.f32 %v4408, %v4426
        %v4442 = vsub.f32 %v4408, %v4430
        %v4443 = vsub.f32 %v4412, %v4426
        %v4444 = vsub.f32 %v4412, %v4430
        %v4445 = vsub.f32 %v4416, %v4426
        %v4446 = vsub.f32 %v4416, %v4430
        %v4447 = vsub.f32 %v4420, %v4426
        %v4448 = vsub.f32 %v4420, %v4430
        %v4449 = vand.u32 2147483647, %v4433
        %v4450 = vand.u32 2147483647, %v4434
        %v4451 = vand.u32 2147483647, %v4435
        %v4452 = vand.u32 2147483647, %v4436
        %v4453 = vand.u32 2147483647, %v4437
        %v4454 = vand.u32 2147483647, %v4438
        %v4455 = vand.u32 2147483647, %v4439
        %v4456 = vand.u32 2147483647, %v4440
        %v4457 = vand.u32 2147483647, %v4441
        %v4458 = vand.u32 2147483647, %v4442
        %v4459 = vand.u32 2147483647, %v4443
        %v4460 = vand.u32 2147483647, %v4444
        %v4461 = vand.u32 2147483647, %v4445
        %v4462 = vand.u32 2147483647, %v4446
        %v4463 = vand.u32 2147483647, %v4447
        %v4464 = vand.u32 2147483647, %v4448
        %v4465 = vadd.f32 %v4373, %v4449
        %v4466 = vadd.f32 %v4374, %v4450
        %v4467 = vadd.f32 %v4375, %v4451
        %v4468 = vadd.f32 %v4376, %v4452
        %v4469 = vadd.f32 %v4377, %v4453
        %v4470 = vadd.f32 %v4378, %v4454
        %v4471 = vadd.f32 %v4379, %v4455
        %v4472 = vadd.f32 %v4380, %v4456
        %v4473 = vadd.f32 %v4381, %v4457
        %v4474 = vadd.f32 %v4382, %v4458
        %v4475 = vadd.f32 %v4383, %v4459
        %v4476 = vadd.f32 %v4384, %v4460
        %v4477 = vadd.f32 %v4385, %v4461
        %v4478 = vadd.f32 %v4386, %v4462
        %v4479 = vadd.f32 %v4387, %v4463
        %v4480 = vadd.f32 %v4388, %v4464
        %v4481 = vld [vmem:[%s1406] ss:$8 sm:$0x3]
        %4482 = vset.pattern.permute.xlu0 13
        %4483 = vperm.xlu0 %4482, %v3269
        %v4484 = vpop.permute.xlu0 %4483
        %4486 = vset.pattern.permute.xlu0 13
        %4487 = vperm.xlu0 %4486, %v3270
        %v4488 = vpop.permute.xlu0 %4487
        %4490 = vset.pattern.permute.xlu0 13
        %4491 = vperm.xlu0 %4490, %v3271
        %v4492 = vpop.permute.xlu0 %4491
        %4494 = vset.pattern.permute.xlu0 13
        %4495 = vperm.xlu0 %4494, %v3272
        %v4496 = vpop.permute.xlu0 %4495
        %4498 = vset.pattern.permute.xlu0 13
        %4499 = vperm.xlu0 %4498, %v3273
        %v4500 = vpop.permute.xlu0 %4499
        %4502 = vset.pattern.permute.xlu0 13
        %4503 = vperm.xlu0 %4502, %v3274
        %v4504 = vpop.permute.xlu0 %4503
        %4506 = vset.pattern.permute.xlu0 13
        %4507 = vperm.xlu0 %4506, %v3275
        %v4508 = vpop.permute.xlu0 %4507
        %4510 = vset.pattern.permute.xlu0 13
        %4511 = vperm.xlu0 %4510, %v3276
        %v4512 = vpop.permute.xlu0 %4511
        %v4515 = vlaneseq
        %v4516 = vshrl.u32 %v4515, 7
        %v4517 = vsub.s32 0, %v4516
        %v4518 = vrot.slane %v4481, %v4517
        %v4519 = vlaneseq
        %v4520 = vshrl.u32 %v4519, 7
        %v4521 = vsub.s32 1, %v4520
        %v4522 = vrot.slane %v4481, %v4521
        %v4525 = vsub.f32 %v4484, %v4518
        %v4526 = vsub.f32 %v4484, %v4522
        %v4527 = vsub.f32 %v4488, %v4518
        %v4528 = vsub.f32 %v4488, %v4522
        %v4529 = vsub.f32 %v4492, %v4518
        %v4530 = vsub.f32 %v4492, %v4522
        %v4531 = vsub.f32 %v4496, %v4518
        %v4532 = vsub.f32 %v4496, %v4522
        %v4533 = vsub.f32 %v4500, %v4518
        %v4534 = vsub.f32 %v4500, %v4522
        %v4535 = vsub.f32 %v4504, %v4518
        %v4536 = vsub.f32 %v4504, %v4522
        %v4537 = vsub.f32 %v4508, %v4518
        %v4538 = vsub.f32 %v4508, %v4522
        %v4539 = vsub.f32 %v4512, %v4518
        %v4540 = vsub.f32 %v4512, %v4522
        %v4541 = vand.u32 2147483647, %v4525
        %v4542 = vand.u32 2147483647, %v4526
        %v4543 = vand.u32 2147483647, %v4527
        %v4544 = vand.u32 2147483647, %v4528
        %v4545 = vand.u32 2147483647, %v4529
        %v4546 = vand.u32 2147483647, %v4530
        %v4547 = vand.u32 2147483647, %v4531
        %v4548 = vand.u32 2147483647, %v4532
        %v4549 = vand.u32 2147483647, %v4533
        %v4550 = vand.u32 2147483647, %v4534
        %v4551 = vand.u32 2147483647, %v4535
        %v4552 = vand.u32 2147483647, %v4536
        %v4553 = vand.u32 2147483647, %v4537
        %v4554 = vand.u32 2147483647, %v4538
        %v4555 = vand.u32 2147483647, %v4539
        %v4556 = vand.u32 2147483647, %v4540
        %v4557 = vadd.f32 %v4465, %v4541
        %v4558 = vadd.f32 %v4466, %v4542
        %v4559 = vadd.f32 %v4467, %v4543
        %v4560 = vadd.f32 %v4468, %v4544
        %v4561 = vadd.f32 %v4469, %v4545
        %v4562 = vadd.f32 %v4470, %v4546
        %v4563 = vadd.f32 %v4471, %v4547
        %v4564 = vadd.f32 %v4472, %v4548
        %v4565 = vadd.f32 %v4473, %v4549
        %v4566 = vadd.f32 %v4474, %v4550
        %v4567 = vadd.f32 %v4475, %v4551
        %v4568 = vadd.f32 %v4476, %v4552
        %v4569 = vadd.f32 %v4477, %v4553
        %v4570 = vadd.f32 %v4478, %v4554
        %v4571 = vadd.f32 %v4479, %v4555
        %v4572 = vadd.f32 %v4480, %v4556
        %v4573 = vld [vmem:[%s1499] ss:$8 sm:$0x3]
        %4574 = vset.pattern.permute.xlu0 14
        %4575 = vperm.xlu0 %4574, %v3269
        %v4576 = vpop.permute.xlu0 %4575
        %4578 = vset.pattern.permute.xlu0 14
        %4579 = vperm.xlu0 %4578, %v3270
        %v4580 = vpop.permute.xlu0 %4579
        %4582 = vset.pattern.permute.xlu0 14
        %4583 = vperm.xlu0 %4582, %v3271
        %v4584 = vpop.permute.xlu0 %4583
        %4586 = vset.pattern.permute.xlu0 14
        %4587 = vperm.xlu0 %4586, %v3272
        %v4588 = vpop.permute.xlu0 %4587
        %4590 = vset.pattern.permute.xlu0 14
        %4591 = vperm.xlu0 %4590, %v3273
        %v4592 = vpop.permute.xlu0 %4591
        %4594 = vset.pattern.permute.xlu0 14
        %4595 = vperm.xlu0 %4594, %v3274
        %v4596 = vpop.permute.xlu0 %4595
        %4598 = vset.pattern.permute.xlu0 14
        %4599 = vperm.xlu0 %4598, %v3275
        %v4600 = vpop.permute.xlu0 %4599
        %4602 = vset.pattern.permute.xlu0 14
        %4603 = vperm.xlu0 %4602, %v3276
        %v4604 = vpop.permute.xlu0 %4603
        %v4607 = vlaneseq
        %v4608 = vshrl.u32 %v4607, 7
        %v4609 = vsub.s32 0, %v4608
        %v4610 = vrot.slane %v4573, %v4609
        %v4611 = vlaneseq
        %v4612 = vshrl.u32 %v4611, 7
        %v4613 = vsub.s32 1, %v4612
        %v4614 = vrot.slane %v4573, %v4613
        %v4617 = vsub.f32 %v4576, %v4610
        %v4618 = vsub.f32 %v4576, %v4614
        %v4619 = vsub.f32 %v4580, %v4610
        %v4620 = vsub.f32 %v4580, %v4614
        %v4621 = vsub.f32 %v4584, %v4610
        %v4622 = vsub.f32 %v4584, %v4614
        %v4623 = vsub.f32 %v4588, %v4610
        %v4624 = vsub.f32 %v4588, %v4614
        %v4625 = vsub.f32 %v4592, %v4610
        %v4626 = vsub.f32 %v4592, %v4614
        %v4627 = vsub.f32 %v4596, %v4610
        %v4628 = vsub.f32 %v4596, %v4614
        %v4629 = vsub.f32 %v4600, %v4610
        %v4630 = vsub.f32 %v4600, %v4614
        %v4631 = vsub.f32 %v4604, %v4610
        %v4632 = vsub.f32 %v4604, %v4614
        %v4633 = vand.u32 2147483647, %v4617
        %v4634 = vand.u32 2147483647, %v4618
        %v4635 = vand.u32 2147483647, %v4619
        %v4636 = vand.u32 2147483647, %v4620
        %v4637 = vand.u32 2147483647, %v4621
        %v4638 = vand.u32 2147483647, %v4622
        %v4639 = vand.u32 2147483647, %v4623
        %v4640 = vand.u32 2147483647, %v4624
        %v4641 = vand.u32 2147483647, %v4625
        %v4642 = vand.u32 2147483647, %v4626
        %v4643 = vand.u32 2147483647, %v4627
        %v4644 = vand.u32 2147483647, %v4628
        %v4645 = vand.u32 2147483647, %v4629
        %v4646 = vand.u32 2147483647, %v4630
        %v4647 = vand.u32 2147483647, %v4631
        %v4648 = vand.u32 2147483647, %v4632
        %v4649 = vadd.f32 %v4557, %v4633
        %v4650 = vadd.f32 %v4558, %v4634
        %v4651 = vadd.f32 %v4559, %v4635
        %v4652 = vadd.f32 %v4560, %v4636
        %v4653 = vadd.f32 %v4561, %v4637
        %v4654 = vadd.f32 %v4562, %v4638
        %v4655 = vadd.f32 %v4563, %v4639
        %v4656 = vadd.f32 %v4564, %v4640
        %v4657 = vadd.f32 %v4565, %v4641
        %v4658 = vadd.f32 %v4566, %v4642
        %v4659 = vadd.f32 %v4567, %v4643
        %v4660 = vadd.f32 %v4568, %v4644
        %v4661 = vadd.f32 %v4569, %v4645
        %v4662 = vadd.f32 %v4570, %v4646
        %v4663 = vadd.f32 %v4571, %v4647
        %v4664 = vadd.f32 %v4572, %v4648
        %v4665 = vld [vmem:[%s1592] ss:$8 sm:$0x3]
        %4666 = vset.pattern.permute.xlu0 15
        %4667 = vperm.xlu0 %4666, %v3269
        %v4668 = vpop.permute.xlu0 %4667
        %4670 = vset.pattern.permute.xlu0 15
        %4671 = vperm.xlu0 %4670, %v3270
        %v4672 = vpop.permute.xlu0 %4671
        %4674 = vset.pattern.permute.xlu0 15
        %4675 = vperm.xlu0 %4674, %v3271
        %v4676 = vpop.permute.xlu0 %4675
        %4678 = vset.pattern.permute.xlu0 15
        %4679 = vperm.xlu0 %4678, %v3272
        %v4680 = vpop.permute.xlu0 %4679
        %4682 = vset.pattern.permute.xlu0 15
        %4683 = vperm.xlu0 %4682, %v3273
        %v4684 = vpop.permute.xlu0 %4683
        %4686 = vset.pattern.permute.xlu0 15
        %4687 = vperm.xlu0 %4686, %v3274
        %v4688 = vpop.permute.xlu0 %4687
        %4690 = vset.pattern.permute.xlu0 15
        %4691 = vperm.xlu0 %4690, %v3275
        %v4692 = vpop.permute.xlu0 %4691
        %4694 = vset.pattern.permute.xlu0 15
        %4695 = vperm.xlu0 %4694, %v3276
        %v4696 = vpop.permute.xlu0 %4695
        %v4699 = vlaneseq
        %v4700 = vshrl.u32 %v4699, 7
        %v4701 = vsub.s32 0, %v4700
        %v4702 = vrot.slane %v4665, %v4701
        %v4703 = vlaneseq
        %v4704 = vshrl.u32 %v4703, 7
        %v4705 = vsub.s32 1, %v4704
        %v4706 = vrot.slane %v4665, %v4705
        %v4709 = vsub.f32 %v4668, %v4702
        %v4710 = vsub.f32 %v4668, %v4706
        %v4711 = vsub.f32 %v4672, %v4702
        %v4712 = vsub.f32 %v4672, %v4706
        %v4713 = vsub.f32 %v4676, %v4702
        %v4714 = vsub.f32 %v4676, %v4706
        %v4715 = vsub.f32 %v4680, %v4702
        %v4716 = vsub.f32 %v4680, %v4706
        %v4717 = vsub.f32 %v4684, %v4702
        %v4718 = vsub.f32 %v4684, %v4706
        %v4719 = vsub.f32 %v4688, %v4702
        %v4720 = vsub.f32 %v4688, %v4706
        %v4721 = vsub.f32 %v4692, %v4702
        %v4722 = vsub.f32 %v4692, %v4706
        %v4723 = vsub.f32 %v4696, %v4702
        %v4724 = vsub.f32 %v4696, %v4706
        %v4725 = vand.u32 2147483647, %v4709
        %v4726 = vand.u32 2147483647, %v4710
        %v4727 = vand.u32 2147483647, %v4711
        %v4728 = vand.u32 2147483647, %v4712
        %v4729 = vand.u32 2147483647, %v4713
        %v4730 = vand.u32 2147483647, %v4714
        %v4731 = vand.u32 2147483647, %v4715
        %v4732 = vand.u32 2147483647, %v4716
        %v4733 = vand.u32 2147483647, %v4717
        %v4734 = vand.u32 2147483647, %v4718
        %v4735 = vand.u32 2147483647, %v4719
        %v4736 = vand.u32 2147483647, %v4720
        %v4737 = vand.u32 2147483647, %v4721
        %v4738 = vand.u32 2147483647, %v4722
        %v4739 = vand.u32 2147483647, %v4723
        %v4740 = vand.u32 2147483647, %v4724
        %v4741 = vadd.f32 %v4649, %v4725
        %v4742 = vadd.f32 %v4650, %v4726
        %v4743 = vadd.f32 %v4651, %v4727
        %v4744 = vadd.f32 %v4652, %v4728
        %v4745 = vadd.f32 %v4653, %v4729
        %v4746 = vadd.f32 %v4654, %v4730
        %v4747 = vadd.f32 %v4655, %v4731
        %v4748 = vadd.f32 %v4656, %v4732
        %v4749 = vadd.f32 %v4657, %v4733
        %v4750 = vadd.f32 %v4658, %v4734
        %v4751 = vadd.f32 %v4659, %v4735
        %v4752 = vadd.f32 %v4660, %v4736
        %v4753 = vadd.f32 %v4661, %v4737
        %v4754 = vadd.f32 %v4662, %v4738
        %v4755 = vadd.f32 %v4663, %v4739
        %v4756 = vadd.f32 %v4664, %v4740
        %v4757 = vld [vmem:[%s1685] ss:$8 sm:$0x3]
        %4758 = vset.pattern.permute.xlu0 16
        %4759 = vperm.xlu0 %4758, %v3269
        %v4760 = vpop.permute.xlu0 %4759
        %4762 = vset.pattern.permute.xlu0 16
        %4763 = vperm.xlu0 %4762, %v3270
        %v4764 = vpop.permute.xlu0 %4763
        %4766 = vset.pattern.permute.xlu0 16
        %4767 = vperm.xlu0 %4766, %v3271
        %v4768 = vpop.permute.xlu0 %4767
        %4770 = vset.pattern.permute.xlu0 16
        %4771 = vperm.xlu0 %4770, %v3272
        %v4772 = vpop.permute.xlu0 %4771
        %4774 = vset.pattern.permute.xlu0 16
        %4775 = vperm.xlu0 %4774, %v3273
        %v4776 = vpop.permute.xlu0 %4775
        %4778 = vset.pattern.permute.xlu0 16
        %4779 = vperm.xlu0 %4778, %v3274
        %v4780 = vpop.permute.xlu0 %4779
        %4782 = vset.pattern.permute.xlu0 16
        %4783 = vperm.xlu0 %4782, %v3275
        %v4784 = vpop.permute.xlu0 %4783
        %4786 = vset.pattern.permute.xlu0 16
        %4787 = vperm.xlu0 %4786, %v3276
        %v4788 = vpop.permute.xlu0 %4787
        %v4791 = vlaneseq
        %v4792 = vshrl.u32 %v4791, 7
        %v4793 = vsub.s32 0, %v4792
        %v4794 = vrot.slane %v4757, %v4793
        %v4795 = vlaneseq
        %v4796 = vshrl.u32 %v4795, 7
        %v4797 = vsub.s32 1, %v4796
        %v4798 = vrot.slane %v4757, %v4797
        %v4801 = vsub.f32 %v4760, %v4794
        %v4802 = vsub.f32 %v4760, %v4798
        %v4803 = vsub.f32 %v4764, %v4794
        %v4804 = vsub.f32 %v4764, %v4798
        %v4805 = vsub.f32 %v4768, %v4794
        %v4806 = vsub.f32 %v4768, %v4798
        %v4807 = vsub.f32 %v4772, %v4794
        %v4808 = vsub.f32 %v4772, %v4798
        %v4809 = vsub.f32 %v4776, %v4794
        %v4810 = vsub.f32 %v4776, %v4798
        %v4811 = vsub.f32 %v4780, %v4794
        %v4812 = vsub.f32 %v4780, %v4798
        %v4813 = vsub.f32 %v4784, %v4794
        %v4814 = vsub.f32 %v4784, %v4798
        %v4815 = vsub.f32 %v4788, %v4794
        %v4816 = vsub.f32 %v4788, %v4798
        %v4817 = vand.u32 2147483647, %v4801
        %v4818 = vand.u32 2147483647, %v4802
        %v4819 = vand.u32 2147483647, %v4803
        %v4820 = vand.u32 2147483647, %v4804
        %v4821 = vand.u32 2147483647, %v4805
        %v4822 = vand.u32 2147483647, %v4806
        %v4823 = vand.u32 2147483647, %v4807
        %v4824 = vand.u32 2147483647, %v4808
        %v4825 = vand.u32 2147483647, %v4809
        %v4826 = vand.u32 2147483647, %v4810
        %v4827 = vand.u32 2147483647, %v4811
        %v4828 = vand.u32 2147483647, %v4812
        %v4829 = vand.u32 2147483647, %v4813
        %v4830 = vand.u32 2147483647, %v4814
        %v4831 = vand.u32 2147483647, %v4815
        %v4832 = vand.u32 2147483647, %v4816
        %v4833 = vadd.f32 %v4741, %v4817
        %v4834 = vadd.f32 %v4742, %v4818
        %v4835 = vadd.f32 %v4743, %v4819
        %v4836 = vadd.f32 %v4744, %v4820
        %v4837 = vadd.f32 %v4745, %v4821
        %v4838 = vadd.f32 %v4746, %v4822
        %v4839 = vadd.f32 %v4747, %v4823
        %v4840 = vadd.f32 %v4748, %v4824
        %v4841 = vadd.f32 %v4749, %v4825
        %v4842 = vadd.f32 %v4750, %v4826
        %v4843 = vadd.f32 %v4751, %v4827
        %v4844 = vadd.f32 %v4752, %v4828
        %v4845 = vadd.f32 %v4753, %v4829
        %v4846 = vadd.f32 %v4754, %v4830
        %v4847 = vadd.f32 %v4755, %v4831
        %v4848 = vadd.f32 %v4756, %v4832
        %v4849 = vld [vmem:[%s1778] ss:$8 sm:$0x3]
        %4850 = vset.pattern.permute.xlu0 17
        %4851 = vperm.xlu0 %4850, %v3269
        %v4852 = vpop.permute.xlu0 %4851
        %4854 = vset.pattern.permute.xlu0 17
        %4855 = vperm.xlu0 %4854, %v3270
        %v4856 = vpop.permute.xlu0 %4855
        %4858 = vset.pattern.permute.xlu0 17
        %4859 = vperm.xlu0 %4858, %v3271
        %v4860 = vpop.permute.xlu0 %4859
        %4862 = vset.pattern.permute.xlu0 17
        %4863 = vperm.xlu0 %4862, %v3272
        %v4864 = vpop.permute.xlu0 %4863
        %4866 = vset.pattern.permute.xlu0 17
        %4867 = vperm.xlu0 %4866, %v3273
        %v4868 = vpop.permute.xlu0 %4867
        %4870 = vset.pattern.permute.xlu0 17
        %4871 = vperm.xlu0 %4870, %v3274
        %v4872 = vpop.permute.xlu0 %4871
        %4874 = vset.pattern.permute.xlu0 17
        %4875 = vperm.xlu0 %4874, %v3275
        %v4876 = vpop.permute.xlu0 %4875
        %4878 = vset.pattern.permute.xlu0 17
        %4879 = vperm.xlu0 %4878, %v3276
        %v4880 = vpop.permute.xlu0 %4879
        %v4883 = vlaneseq
        %v4884 = vshrl.u32 %v4883, 7
        %v4885 = vsub.s32 0, %v4884
        %v4886 = vrot.slane %v4849, %v4885
        %v4887 = vlaneseq
        %v4888 = vshrl.u32 %v4887, 7
        %v4889 = vsub.s32 1, %v4888
        %v4890 = vrot.slane %v4849, %v4889
        %v4893 = vsub.f32 %v4852, %v4886
        %v4894 = vsub.f32 %v4852, %v4890
        %v4895 = vsub.f32 %v4856, %v4886
        %v4896 = vsub.f32 %v4856, %v4890
        %v4897 = vsub.f32 %v4860, %v4886
        %v4898 = vsub.f32 %v4860, %v4890
        %v4899 = vsub.f32 %v4864, %v4886
        %v4900 = vsub.f32 %v4864, %v4890
        %v4901 = vsub.f32 %v4868, %v4886
        %v4902 = vsub.f32 %v4868, %v4890
        %v4903 = vsub.f32 %v4872, %v4886
        %v4904 = vsub.f32 %v4872, %v4890
        %v4905 = vsub.f32 %v4876, %v4886
        %v4906 = vsub.f32 %v4876, %v4890
        %v4907 = vsub.f32 %v4880, %v4886
        %v4908 = vsub.f32 %v4880, %v4890
        %v4909 = vand.u32 2147483647, %v4893
        %v4910 = vand.u32 2147483647, %v4894
        %v4911 = vand.u32 2147483647, %v4895
        %v4912 = vand.u32 2147483647, %v4896
        %v4913 = vand.u32 2147483647, %v4897
        %v4914 = vand.u32 2147483647, %v4898
        %v4915 = vand.u32 2147483647, %v4899
        %v4916 = vand.u32 2147483647, %v4900
        %v4917 = vand.u32 2147483647, %v4901
        %v4918 = vand.u32 2147483647, %v4902
        %v4919 = vand.u32 2147483647, %v4903
        %v4920 = vand.u32 2147483647, %v4904
        %v4921 = vand.u32 2147483647, %v4905
        %v4922 = vand.u32 2147483647, %v4906
        %v4923 = vand.u32 2147483647, %v4907
        %v4924 = vand.u32 2147483647, %v4908
        %v4925 = vadd.f32 %v4833, %v4909
        %v4926 = vadd.f32 %v4834, %v4910
        %v4927 = vadd.f32 %v4835, %v4911
        %v4928 = vadd.f32 %v4836, %v4912
        %v4929 = vadd.f32 %v4837, %v4913
        %v4930 = vadd.f32 %v4838, %v4914
        %v4931 = vadd.f32 %v4839, %v4915
        %v4932 = vadd.f32 %v4840, %v4916
        %v4933 = vadd.f32 %v4841, %v4917
        %v4934 = vadd.f32 %v4842, %v4918
        %v4935 = vadd.f32 %v4843, %v4919
        %v4936 = vadd.f32 %v4844, %v4920
        %v4937 = vadd.f32 %v4845, %v4921
        %v4938 = vadd.f32 %v4846, %v4922
        %v4939 = vadd.f32 %v4847, %v4923
        %v4940 = vadd.f32 %v4848, %v4924
        %v4941 = vld [vmem:[%s1871] ss:$8 sm:$0x3]
        %4942 = vset.pattern.permute.xlu0 18
        %4943 = vperm.xlu0 %4942, %v3269
        %v4944 = vpop.permute.xlu0 %4943
        %4946 = vset.pattern.permute.xlu0 18
        %4947 = vperm.xlu0 %4946, %v3270
        %v4948 = vpop.permute.xlu0 %4947
        %4950 = vset.pattern.permute.xlu0 18
        %4951 = vperm.xlu0 %4950, %v3271
        %v4952 = vpop.permute.xlu0 %4951
        %4954 = vset.pattern.permute.xlu0 18
        %4955 = vperm.xlu0 %4954, %v3272
        %v4956 = vpop.permute.xlu0 %4955
        %4958 = vset.pattern.permute.xlu0 18
        %4959 = vperm.xlu0 %4958, %v3273
        %v4960 = vpop.permute.xlu0 %4959
        %4962 = vset.pattern.permute.xlu0 18
        %4963 = vperm.xlu0 %4962, %v3274
        %v4964 = vpop.permute.xlu0 %4963
        %4966 = vset.pattern.permute.xlu0 18
        %4967 = vperm.xlu0 %4966, %v3275
        %v4968 = vpop.permute.xlu0 %4967
        %4970 = vset.pattern.permute.xlu0 18
        %4971 = vperm.xlu0 %4970, %v3276
        %v4972 = vpop.permute.xlu0 %4971
        %v4975 = vlaneseq
        %v4976 = vshrl.u32 %v4975, 7
        %v4977 = vsub.s32 0, %v4976
        %v4978 = vrot.slane %v4941, %v4977
        %v4979 = vlaneseq
        %v4980 = vshrl.u32 %v4979, 7
        %v4981 = vsub.s32 1, %v4980
        %v4982 = vrot.slane %v4941, %v4981
        %v4985 = vsub.f32 %v4944, %v4978
        %v4986 = vsub.f32 %v4944, %v4982
        %v4987 = vsub.f32 %v4948, %v4978
        %v4988 = vsub.f32 %v4948, %v4982
        %v4989 = vsub.f32 %v4952, %v4978
        %v4990 = vsub.f32 %v4952, %v4982
        %v4991 = vsub.f32 %v4956, %v4978
        %v4992 = vsub.f32 %v4956, %v4982
        %v4993 = vsub.f32 %v4960, %v4978
        %v4994 = vsub.f32 %v4960, %v4982
        %v4995 = vsub.f32 %v4964, %v4978
        %v4996 = vsub.f32 %v4964, %v4982
        %v4997 = vsub.f32 %v4968, %v4978
        %v4998 = vsub.f32 %v4968, %v4982
        %v4999 = vsub.f32 %v4972, %v4978
        %v5000 = vsub.f32 %v4972, %v4982
        %v5001 = vand.u32 2147483647, %v4985
        %v5002 = vand.u32 2147483647, %v4986
        %v5003 = vand.u32 2147483647, %v4987
        %v5004 = vand.u32 2147483647, %v4988
        %v5005 = vand.u32 2147483647, %v4989
        %v5006 = vand.u32 2147483647, %v4990
        %v5007 = vand.u32 2147483647, %v4991
        %v5008 = vand.u32 2147483647, %v4992
        %v5009 = vand.u32 2147483647, %v4993
        %v5010 = vand.u32 2147483647, %v4994
        %v5011 = vand.u32 2147483647, %v4995
        %v5012 = vand.u32 2147483647, %v4996
        %v5013 = vand.u32 2147483647, %v4997
        %v5014 = vand.u32 2147483647, %v4998
        %v5015 = vand.u32 2147483647, %v4999
        %v5016 = vand.u32 2147483647, %v5000
        %v5017 = vadd.f32 %v4925, %v5001
        %v5018 = vadd.f32 %v4926, %v5002
        %v5019 = vadd.f32 %v4927, %v5003
        %v5020 = vadd.f32 %v4928, %v5004
        %v5021 = vadd.f32 %v4929, %v5005
        %v5022 = vadd.f32 %v4930, %v5006
        %v5023 = vadd.f32 %v4931, %v5007
        %v5024 = vadd.f32 %v4932, %v5008
        %v5025 = vadd.f32 %v4933, %v5009
        %v5026 = vadd.f32 %v4934, %v5010
        %v5027 = vadd.f32 %v4935, %v5011
        %v5028 = vadd.f32 %v4936, %v5012
        %v5029 = vadd.f32 %v4937, %v5013
        %v5030 = vadd.f32 %v4938, %v5014
        %v5031 = vadd.f32 %v4939, %v5015
        %v5032 = vadd.f32 %v4940, %v5016
        %v5033 = vld [vmem:[%s1964] ss:$8 sm:$0x3]
        %5034 = vset.pattern.permute.xlu0 19
        %5035 = vperm.xlu0 %5034, %v3269
        %v5036 = vpop.permute.xlu0 %5035
        %5038 = vset.pattern.permute.xlu0 19
        %5039 = vperm.xlu0 %5038, %v3270
        %v5040 = vpop.permute.xlu0 %5039
        %5042 = vset.pattern.permute.xlu0 19
        %5043 = vperm.xlu0 %5042, %v3271
        %v5044 = vpop.permute.xlu0 %5043
        %5046 = vset.pattern.permute.xlu0 19
        %5047 = vperm.xlu0 %5046, %v3272
        %v5048 = vpop.permute.xlu0 %5047
        %5050 = vset.pattern.permute.xlu0 19
        %5051 = vperm.xlu0 %5050, %v3273
        %v5052 = vpop.permute.xlu0 %5051
        %5054 = vset.pattern.permute.xlu0 19
        %5055 = vperm.xlu0 %5054, %v3274
        %v5056 = vpop.permute.xlu0 %5055
        %5058 = vset.pattern.permute.xlu0 19
        %5059 = vperm.xlu0 %5058, %v3275
        %v5060 = vpop.permute.xlu0 %5059
        %5062 = vset.pattern.permute.xlu0 19
        %5063 = vperm.xlu0 %5062, %v3276
        %v5064 = vpop.permute.xlu0 %5063
        %v5067 = vlaneseq
        %v5068 = vshrl.u32 %v5067, 7
        %v5069 = vsub.s32 0, %v5068
        %v5070 = vrot.slane %v5033, %v5069
        %v5071 = vlaneseq
        %v5072 = vshrl.u32 %v5071, 7
        %v5073 = vsub.s32 1, %v5072
        %v5074 = vrot.slane %v5033, %v5073
        %v5077 = vsub.f32 %v5036, %v5070
        %v5078 = vsub.f32 %v5036, %v5074
        %v5079 = vsub.f32 %v5040, %v5070
        %v5080 = vsub.f32 %v5040, %v5074
        %v5081 = vsub.f32 %v5044, %v5070
        %v5082 = vsub.f32 %v5044, %v5074
        %v5083 = vsub.f32 %v5048, %v5070
        %v5084 = vsub.f32 %v5048, %v5074
        %v5085 = vsub.f32 %v5052, %v5070
        %v5086 = vsub.f32 %v5052, %v5074
        %v5087 = vsub.f32 %v5056, %v5070
        %v5088 = vsub.f32 %v5056, %v5074
        %v5089 = vsub.f32 %v5060, %v5070
        %v5090 = vsub.f32 %v5060, %v5074
        %v5091 = vsub.f32 %v5064, %v5070
        %v5092 = vsub.f32 %v5064, %v5074
        %v5093 = vand.u32 2147483647, %v5077
        %v5094 = vand.u32 2147483647, %v5078
        %v5095 = vand.u32 2147483647, %v5079
        %v5096 = vand.u32 2147483647, %v5080
        %v5097 = vand.u32 2147483647, %v5081
        %v5098 = vand.u32 2147483647, %v5082
        %v5099 = vand.u32 2147483647, %v5083
        %v5100 = vand.u32 2147483647, %v5084
        %v5101 = vand.u32 2147483647, %v5085
        %v5102 = vand.u32 2147483647, %v5086
        %v5103 = vand.u32 2147483647, %v5087
        %v5104 = vand.u32 2147483647, %v5088
        %v5105 = vand.u32 2147483647, %v5089
        %v5106 = vand.u32 2147483647, %v5090
        %v5107 = vand.u32 2147483647, %v5091
        %v5108 = vand.u32 2147483647, %v5092
        %v5109 = vadd.f32 %v5017, %v5093
        %v5110 = vadd.f32 %v5018, %v5094
        %v5111 = vadd.f32 %v5019, %v5095
        %v5112 = vadd.f32 %v5020, %v5096
        %v5113 = vadd.f32 %v5021, %v5097
        %v5114 = vadd.f32 %v5022, %v5098
        %v5115 = vadd.f32 %v5023, %v5099
        %v5116 = vadd.f32 %v5024, %v5100
        %v5117 = vadd.f32 %v5025, %v5101
        %v5118 = vadd.f32 %v5026, %v5102
        %v5119 = vadd.f32 %v5027, %v5103
        %v5120 = vadd.f32 %v5028, %v5104
        %v5121 = vadd.f32 %v5029, %v5105
        %v5122 = vadd.f32 %v5030, %v5106
        %v5123 = vadd.f32 %v5031, %v5107
        %v5124 = vadd.f32 %v5032, %v5108
        %v5125 = vld [vmem:[%s2057] ss:$8 sm:$0x3]
        %5126 = vset.pattern.permute.xlu0 20
        %5127 = vperm.xlu0 %5126, %v3269
        %v5128 = vpop.permute.xlu0 %5127
        %5130 = vset.pattern.permute.xlu0 20
        %5131 = vperm.xlu0 %5130, %v3270
        %v5132 = vpop.permute.xlu0 %5131
        %5134 = vset.pattern.permute.xlu0 20
        %5135 = vperm.xlu0 %5134, %v3271
        %v5136 = vpop.permute.xlu0 %5135
        %5138 = vset.pattern.permute.xlu0 20
        %5139 = vperm.xlu0 %5138, %v3272
        %v5140 = vpop.permute.xlu0 %5139
        %5142 = vset.pattern.permute.xlu0 20
        %5143 = vperm.xlu0 %5142, %v3273
        %v5144 = vpop.permute.xlu0 %5143
        %5146 = vset.pattern.permute.xlu0 20
        %5147 = vperm.xlu0 %5146, %v3274
        %v5148 = vpop.permute.xlu0 %5147
        %5150 = vset.pattern.permute.xlu0 20
        %5151 = vperm.xlu0 %5150, %v3275
        %v5152 = vpop.permute.xlu0 %5151
        %5154 = vset.pattern.permute.xlu0 20
        %5155 = vperm.xlu0 %5154, %v3276
        %v5156 = vpop.permute.xlu0 %5155
        %v5159 = vlaneseq
        %v5160 = vshrl.u32 %v5159, 7
        %v5161 = vsub.s32 0, %v5160
        %v5162 = vrot.slane %v5125, %v5161
        %v5163 = vlaneseq
        %v5164 = vshrl.u32 %v5163, 7
        %v5165 = vsub.s32 1, %v5164
        %v5166 = vrot.slane %v5125, %v5165
        %v5169 = vsub.f32 %v5128, %v5162
        %v5170 = vsub.f32 %v5128, %v5166
        %v5171 = vsub.f32 %v5132, %v5162
        %v5172 = vsub.f32 %v5132, %v5166
        %v5173 = vsub.f32 %v5136, %v5162
        %v5174 = vsub.f32 %v5136, %v5166
        %v5175 = vsub.f32 %v5140, %v5162
        %v5176 = vsub.f32 %v5140, %v5166
        %v5177 = vsub.f32 %v5144, %v5162
        %v5178 = vsub.f32 %v5144, %v5166
        %v5179 = vsub.f32 %v5148, %v5162
        %v5180 = vsub.f32 %v5148, %v5166
        %v5181 = vsub.f32 %v5152, %v5162
        %v5182 = vsub.f32 %v5152, %v5166
        %v5183 = vsub.f32 %v5156, %v5162
        %v5184 = vsub.f32 %v5156, %v5166
        %v5185 = vand.u32 2147483647, %v5169
        %v5186 = vand.u32 2147483647, %v5170
        %v5187 = vand.u32 2147483647, %v5171
        %v5188 = vand.u32 2147483647, %v5172
        %v5189 = vand.u32 2147483647, %v5173
        %v5190 = vand.u32 2147483647, %v5174
        %v5191 = vand.u32 2147483647, %v5175
        %v5192 = vand.u32 2147483647, %v5176
        %v5193 = vand.u32 2147483647, %v5177
        %v5194 = vand.u32 2147483647, %v5178
        %v5195 = vand.u32 2147483647, %v5179
        %v5196 = vand.u32 2147483647, %v5180
        %v5197 = vand.u32 2147483647, %v5181
        %v5198 = vand.u32 2147483647, %v5182
        %v5199 = vand.u32 2147483647, %v5183
        %v5200 = vand.u32 2147483647, %v5184
        %v5201 = vadd.f32 %v5109, %v5185
        %v5202 = vadd.f32 %v5110, %v5186
        %v5203 = vadd.f32 %v5111, %v5187
        %v5204 = vadd.f32 %v5112, %v5188
        %v5205 = vadd.f32 %v5113, %v5189
        %v5206 = vadd.f32 %v5114, %v5190
        %v5207 = vadd.f32 %v5115, %v5191
        %v5208 = vadd.f32 %v5116, %v5192
        %v5209 = vadd.f32 %v5117, %v5193
        %v5210 = vadd.f32 %v5118, %v5194
        %v5211 = vadd.f32 %v5119, %v5195
        %v5212 = vadd.f32 %v5120, %v5196
        %v5213 = vadd.f32 %v5121, %v5197
        %v5214 = vadd.f32 %v5122, %v5198
        %v5215 = vadd.f32 %v5123, %v5199
        %v5216 = vadd.f32 %v5124, %v5200
        %v5217 = vld [vmem:[%s2150] ss:$8 sm:$0x3]
        %5218 = vset.pattern.permute.xlu0 21
        %5219 = vperm.xlu0 %5218, %v3269
        %v5220 = vpop.permute.xlu0 %5219
        %5222 = vset.pattern.permute.xlu0 21
        %5223 = vperm.xlu0 %5222, %v3270
        %v5224 = vpop.permute.xlu0 %5223
        %5226 = vset.pattern.permute.xlu0 21
        %5227 = vperm.xlu0 %5226, %v3271
        %v5228 = vpop.permute.xlu0 %5227
        %5230 = vset.pattern.permute.xlu0 21
        %5231 = vperm.xlu0 %5230, %v3272
        %v5232 = vpop.permute.xlu0 %5231
        %5234 = vset.pattern.permute.xlu0 21
        %5235 = vperm.xlu0 %5234, %v3273
        %v5236 = vpop.permute.xlu0 %5235
        %5238 = vset.pattern.permute.xlu0 21
        %5239 = vperm.xlu0 %5238, %v3274
        %v5240 = vpop.permute.xlu0 %5239
        %5242 = vset.pattern.permute.xlu0 21
        %5243 = vperm.xlu0 %5242, %v3275
        %v5244 = vpop.permute.xlu0 %5243
        %5246 = vset.pattern.permute.xlu0 21
        %5247 = vperm.xlu0 %5246, %v3276
        %v5248 = vpop.permute.xlu0 %5247
        %v5251 = vlaneseq
        %v5252 = vshrl.u32 %v5251, 7
        %v5253 = vsub.s32 0, %v5252
        %v5254 = vrot.slane %v5217, %v5253
        %v5255 = vlaneseq
        %v5256 = vshrl.u32 %v5255, 7
        %v5257 = vsub.s32 1, %v5256
        %v5258 = vrot.slane %v5217, %v5257
        %v5261 = vsub.f32 %v5220, %v5254
        %v5262 = vsub.f32 %v5220, %v5258
        %v5263 = vsub.f32 %v5224, %v5254
        %v5264 = vsub.f32 %v5224, %v5258
        %v5265 = vsub.f32 %v5228, %v5254
        %v5266 = vsub.f32 %v5228, %v5258
        %v5267 = vsub.f32 %v5232, %v5254
        %v5268 = vsub.f32 %v5232, %v5258
        %v5269 = vsub.f32 %v5236, %v5254
        %v5270 = vsub.f32 %v5236, %v5258
        %v5271 = vsub.f32 %v5240, %v5254
        %v5272 = vsub.f32 %v5240, %v5258
        %v5273 = vsub.f32 %v5244, %v5254
        %v5274 = vsub.f32 %v5244, %v5258
        %v5275 = vsub.f32 %v5248, %v5254
        %v5276 = vsub.f32 %v5248, %v5258
        %v5277 = vand.u32 2147483647, %v5261
        %v5278 = vand.u32 2147483647, %v5262
        %v5279 = vand.u32 2147483647, %v5263
        %v5280 = vand.u32 2147483647, %v5264
        %v5281 = vand.u32 2147483647, %v5265
        %v5282 = vand.u32 2147483647, %v5266
        %v5283 = vand.u32 2147483647, %v5267
        %v5284 = vand.u32 2147483647, %v5268
        %v5285 = vand.u32 2147483647, %v5269
        %v5286 = vand.u32 2147483647, %v5270
        %v5287 = vand.u32 2147483647, %v5271
        %v5288 = vand.u32 2147483647, %v5272
        %v5289 = vand.u32 2147483647, %v5273
        %v5290 = vand.u32 2147483647, %v5274
        %v5291 = vand.u32 2147483647, %v5275
        %v5292 = vand.u32 2147483647, %v5276
        %v5293 = vadd.f32 %v5201, %v5277
        %v5294 = vadd.f32 %v5202, %v5278
        %v5295 = vadd.f32 %v5203, %v5279
        %v5296 = vadd.f32 %v5204, %v5280
        %v5297 = vadd.f32 %v5205, %v5281
        %v5298 = vadd.f32 %v5206, %v5282
        %v5299 = vadd.f32 %v5207, %v5283
        %v5300 = vadd.f32 %v5208, %v5284
        %v5301 = vadd.f32 %v5209, %v5285
        %v5302 = vadd.f32 %v5210, %v5286
        %v5303 = vadd.f32 %v5211, %v5287
        %v5304 = vadd.f32 %v5212, %v5288
        %v5305 = vadd.f32 %v5213, %v5289
        %v5306 = vadd.f32 %v5214, %v5290
        %v5307 = vadd.f32 %v5215, %v5291
        %v5308 = vadd.f32 %v5216, %v5292
        %v5309 = vld [vmem:[%s2243] ss:$8 sm:$0x3]
        %5310 = vset.pattern.permute.xlu0 22
        %5311 = vperm.xlu0 %5310, %v3269
        %v5312 = vpop.permute.xlu0 %5311
        %5314 = vset.pattern.permute.xlu0 22
        %5315 = vperm.xlu0 %5314, %v3270
        %v5316 = vpop.permute.xlu0 %5315
        %5318 = vset.pattern.permute.xlu0 22
        %5319 = vperm.xlu0 %5318, %v3271
        %v5320 = vpop.permute.xlu0 %5319
        %5322 = vset.pattern.permute.xlu0 22
        %5323 = vperm.xlu0 %5322, %v3272
        %v5324 = vpop.permute.xlu0 %5323
        %5326 = vset.pattern.permute.xlu0 22
        %5327 = vperm.xlu0 %5326, %v3273
        %v5328 = vpop.permute.xlu0 %5327
        %5330 = vset.pattern.permute.xlu0 22
        %5331 = vperm.xlu0 %5330, %v3274
        %v5332 = vpop.permute.xlu0 %5331
        %5334 = vset.pattern.permute.xlu0 22
        %5335 = vperm.xlu0 %5334, %v3275
        %v5336 = vpop.permute.xlu0 %5335
        %5338 = vset.pattern.permute.xlu0 22
        %5339 = vperm.xlu0 %5338, %v3276
        %v5340 = vpop.permute.xlu0 %5339
        %v5343 = vlaneseq
        %v5344 = vshrl.u32 %v5343, 7
        %v5345 = vsub.s32 0, %v5344
        %v5346 = vrot.slane %v5309, %v5345
        %v5347 = vlaneseq
        %v5348 = vshrl.u32 %v5347, 7
        %v5349 = vsub.s32 1, %v5348
        %v5350 = vrot.slane %v5309, %v5349
        %v5353 = vsub.f32 %v5312, %v5346
        %v5354 = vsub.f32 %v5312, %v5350
        %v5355 = vsub.f32 %v5316, %v5346
        %v5356 = vsub.f32 %v5316, %v5350
        %v5357 = vsub.f32 %v5320, %v5346
        %v5358 = vsub.f32 %v5320, %v5350
        %v5359 = vsub.f32 %v5324, %v5346
        %v5360 = vsub.f32 %v5324, %v5350
        %v5361 = vsub.f32 %v5328, %v5346
        %v5362 = vsub.f32 %v5328, %v5350
        %v5363 = vsub.f32 %v5332, %v5346
        %v5364 = vsub.f32 %v5332, %v5350
        %v5365 = vsub.f32 %v5336, %v5346
        %v5366 = vsub.f32 %v5336, %v5350
        %v5367 = vsub.f32 %v5340, %v5346
        %v5368 = vsub.f32 %v5340, %v5350
        %v5369 = vand.u32 2147483647, %v5353
        %v5370 = vand.u32 2147483647, %v5354
        %v5371 = vand.u32 2147483647, %v5355
        %v5372 = vand.u32 2147483647, %v5356
        %v5373 = vand.u32 2147483647, %v5357
        %v5374 = vand.u32 2147483647, %v5358
        %v5375 = vand.u32 2147483647, %v5359
        %v5376 = vand.u32 2147483647, %v5360
        %v5377 = vand.u32 2147483647, %v5361
        %v5378 = vand.u32 2147483647, %v5362
        %v5379 = vand.u32 2147483647, %v5363
        %v5380 = vand.u32 2147483647, %v5364
        %v5381 = vand.u32 2147483647, %v5365
        %v5382 = vand.u32 2147483647, %v5366
        %v5383 = vand.u32 2147483647, %v5367
        %v5384 = vand.u32 2147483647, %v5368
        %v5385 = vadd.f32 %v5293, %v5369
        %v5386 = vadd.f32 %v5294, %v5370
        %v5387 = vadd.f32 %v5295, %v5371
        %v5388 = vadd.f32 %v5296, %v5372
        %v5389 = vadd.f32 %v5297, %v5373
        %v5390 = vadd.f32 %v5298, %v5374
        %v5391 = vadd.f32 %v5299, %v5375
        %v5392 = vadd.f32 %v5300, %v5376
        %v5393 = vadd.f32 %v5301, %v5377
        %v5394 = vadd.f32 %v5302, %v5378
        %v5395 = vadd.f32 %v5303, %v5379
        %v5396 = vadd.f32 %v5304, %v5380
        %v5397 = vadd.f32 %v5305, %v5381
        %v5398 = vadd.f32 %v5306, %v5382
        %v5399 = vadd.f32 %v5307, %v5383
        %v5400 = vadd.f32 %v5308, %v5384
        %v5401 = vld [vmem:[%s2336] ss:$8 sm:$0x3]
        %5402 = vset.pattern.permute.xlu0 23
        %5403 = vperm.xlu0 %5402, %v3269
        %v5404 = vpop.permute.xlu0 %5403
        %5406 = vset.pattern.permute.xlu0 23
        %5407 = vperm.xlu0 %5406, %v3270
        %v5408 = vpop.permute.xlu0 %5407
        %5410 = vset.pattern.permute.xlu0 23
        %5411 = vperm.xlu0 %5410, %v3271
        %v5412 = vpop.permute.xlu0 %5411
        %5414 = vset.pattern.permute.xlu0 23
        %5415 = vperm.xlu0 %5414, %v3272
        %v5416 = vpop.permute.xlu0 %5415
        %5418 = vset.pattern.permute.xlu0 23
        %5419 = vperm.xlu0 %5418, %v3273
        %v5420 = vpop.permute.xlu0 %5419
        %5422 = vset.pattern.permute.xlu0 23
        %5423 = vperm.xlu0 %5422, %v3274
        %v5424 = vpop.permute.xlu0 %5423
        %5426 = vset.pattern.permute.xlu0 23
        %5427 = vperm.xlu0 %5426, %v3275
        %v5428 = vpop.permute.xlu0 %5427
        %5430 = vset.pattern.permute.xlu0 23
        %5431 = vperm.xlu0 %5430, %v3276
        %v5432 = vpop.permute.xlu0 %5431
        %v5435 = vlaneseq
        %v5436 = vshrl.u32 %v5435, 7
        %v5437 = vsub.s32 0, %v5436
        %v5438 = vrot.slane %v5401, %v5437
        %v5439 = vlaneseq
        %v5440 = vshrl.u32 %v5439, 7
        %v5441 = vsub.s32 1, %v5440
        %v5442 = vrot.slane %v5401, %v5441
        %v5445 = vsub.f32 %v5404, %v5438
        %v5446 = vsub.f32 %v5404, %v5442
        %v5447 = vsub.f32 %v5408, %v5438
        %v5448 = vsub.f32 %v5408, %v5442
        %v5449 = vsub.f32 %v5412, %v5438
        %v5450 = vsub.f32 %v5412, %v5442
        %v5451 = vsub.f32 %v5416, %v5438
        %v5452 = vsub.f32 %v5416, %v5442
        %v5453 = vsub.f32 %v5420, %v5438
        %v5454 = vsub.f32 %v5420, %v5442
        %v5455 = vsub.f32 %v5424, %v5438
        %v5456 = vsub.f32 %v5424, %v5442
        %v5457 = vsub.f32 %v5428, %v5438
        %v5458 = vsub.f32 %v5428, %v5442
        %v5459 = vsub.f32 %v5432, %v5438
        %v5460 = vsub.f32 %v5432, %v5442
        %v5461 = vand.u32 2147483647, %v5445
        %v5462 = vand.u32 2147483647, %v5446
        %v5463 = vand.u32 2147483647, %v5447
        %v5464 = vand.u32 2147483647, %v5448
        %v5465 = vand.u32 2147483647, %v5449
        %v5466 = vand.u32 2147483647, %v5450
        %v5467 = vand.u32 2147483647, %v5451
        %v5468 = vand.u32 2147483647, %v5452
        %v5469 = vand.u32 2147483647, %v5453
        %v5470 = vand.u32 2147483647, %v5454
        %v5471 = vand.u32 2147483647, %v5455
        %v5472 = vand.u32 2147483647, %v5456
        %v5473 = vand.u32 2147483647, %v5457
        %v5474 = vand.u32 2147483647, %v5458
        %v5475 = vand.u32 2147483647, %v5459
        %v5476 = vand.u32 2147483647, %v5460
        %v5477 = vadd.f32 %v5385, %v5461
        %v5478 = vadd.f32 %v5386, %v5462
        %v5479 = vadd.f32 %v5387, %v5463
        %v5480 = vadd.f32 %v5388, %v5464
        %v5481 = vadd.f32 %v5389, %v5465
        %v5482 = vadd.f32 %v5390, %v5466
        %v5483 = vadd.f32 %v5391, %v5467
        %v5484 = vadd.f32 %v5392, %v5468
        %v5485 = vadd.f32 %v5393, %v5469
        %v5486 = vadd.f32 %v5394, %v5470
        %v5487 = vadd.f32 %v5395, %v5471
        %v5488 = vadd.f32 %v5396, %v5472
        %v5489 = vadd.f32 %v5397, %v5473
        %v5490 = vadd.f32 %v5398, %v5474
        %v5491 = vadd.f32 %v5399, %v5475
        %v5492 = vadd.f32 %v5400, %v5476
        %v5493 = vld [vmem:[%s2429] ss:$8 sm:$0x3]
        %5494 = vset.pattern.permute.xlu0 24
        %5495 = vperm.xlu0 %5494, %v3269
        %v5496 = vpop.permute.xlu0 %5495
        %5498 = vset.pattern.permute.xlu0 24
        %5499 = vperm.xlu0 %5498, %v3270
        %v5500 = vpop.permute.xlu0 %5499
        %5502 = vset.pattern.permute.xlu0 24
        %5503 = vperm.xlu0 %5502, %v3271
        %v5504 = vpop.permute.xlu0 %5503
        %5506 = vset.pattern.permute.xlu0 24
        %5507 = vperm.xlu0 %5506, %v3272
        %v5508 = vpop.permute.xlu0 %5507
        %5510 = vset.pattern.permute.xlu0 24
        %5511 = vperm.xlu0 %5510, %v3273
        %v5512 = vpop.permute.xlu0 %5511
        %5514 = vset.pattern.permute.xlu0 24
        %5515 = vperm.xlu0 %5514, %v3274
        %v5516 = vpop.permute.xlu0 %5515
        %5518 = vset.pattern.permute.xlu0 24
        %5519 = vperm.xlu0 %5518, %v3275
        %v5520 = vpop.permute.xlu0 %5519
        %5522 = vset.pattern.permute.xlu0 24
        %5523 = vperm.xlu0 %5522, %v3276
        %v5524 = vpop.permute.xlu0 %5523
        %v5527 = vlaneseq
        %v5528 = vshrl.u32 %v5527, 7
        %v5529 = vsub.s32 0, %v5528
        %v5530 = vrot.slane %v5493, %v5529
        %v5531 = vlaneseq
        %v5532 = vshrl.u32 %v5531, 7
        %v5533 = vsub.s32 1, %v5532
        %v5534 = vrot.slane %v5493, %v5533
        %v5537 = vsub.f32 %v5496, %v5530
        %v5538 = vsub.f32 %v5496, %v5534
        %v5539 = vsub.f32 %v5500, %v5530
        %v5540 = vsub.f32 %v5500, %v5534
        %v5541 = vsub.f32 %v5504, %v5530
        %v5542 = vsub.f32 %v5504, %v5534
        %v5543 = vsub.f32 %v5508, %v5530
        %v5544 = vsub.f32 %v5508, %v5534
        %v5545 = vsub.f32 %v5512, %v5530
        %v5546 = vsub.f32 %v5512, %v5534
        %v5547 = vsub.f32 %v5516, %v5530
        %v5548 = vsub.f32 %v5516, %v5534
        %v5549 = vsub.f32 %v5520, %v5530
        %v5550 = vsub.f32 %v5520, %v5534
        %v5551 = vsub.f32 %v5524, %v5530
        %v5552 = vsub.f32 %v5524, %v5534
        %v5553 = vand.u32 2147483647, %v5537
        %v5554 = vand.u32 2147483647, %v5538
        %v5555 = vand.u32 2147483647, %v5539
        %v5556 = vand.u32 2147483647, %v5540
        %v5557 = vand.u32 2147483647, %v5541
        %v5558 = vand.u32 2147483647, %v5542
        %v5559 = vand.u32 2147483647, %v5543
        %v5560 = vand.u32 2147483647, %v5544
        %v5561 = vand.u32 2147483647, %v5545
        %v5562 = vand.u32 2147483647, %v5546
        %v5563 = vand.u32 2147483647, %v5547
        %v5564 = vand.u32 2147483647, %v5548
        %v5565 = vand.u32 2147483647, %v5549
        %v5566 = vand.u32 2147483647, %v5550
        %v5567 = vand.u32 2147483647, %v5551
        %v5568 = vand.u32 2147483647, %v5552
        %v5569 = vadd.f32 %v5477, %v5553
        %v5570 = vadd.f32 %v5478, %v5554
        %v5571 = vadd.f32 %v5479, %v5555
        %v5572 = vadd.f32 %v5480, %v5556
        %v5573 = vadd.f32 %v5481, %v5557
        %v5574 = vadd.f32 %v5482, %v5558
        %v5575 = vadd.f32 %v5483, %v5559
        %v5576 = vadd.f32 %v5484, %v5560
        %v5577 = vadd.f32 %v5485, %v5561
        %v5578 = vadd.f32 %v5486, %v5562
        %v5579 = vadd.f32 %v5487, %v5563
        %v5580 = vadd.f32 %v5488, %v5564
        %v5581 = vadd.f32 %v5489, %v5565
        %v5582 = vadd.f32 %v5490, %v5566
        %v5583 = vadd.f32 %v5491, %v5567
        %v5584 = vadd.f32 %v5492, %v5568
        %v5585 = vld [vmem:[%s2522] ss:$8 sm:$0x3]
        %5586 = vset.pattern.permute.xlu0 25
        %5587 = vperm.xlu0 %5586, %v3269
        %v5588 = vpop.permute.xlu0 %5587
        %5590 = vset.pattern.permute.xlu0 25
        %5591 = vperm.xlu0 %5590, %v3270
        %v5592 = vpop.permute.xlu0 %5591
        %5594 = vset.pattern.permute.xlu0 25
        %5595 = vperm.xlu0 %5594, %v3271
        %v5596 = vpop.permute.xlu0 %5595
        %5598 = vset.pattern.permute.xlu0 25
        %5599 = vperm.xlu0 %5598, %v3272
        %v5600 = vpop.permute.xlu0 %5599
        %5602 = vset.pattern.permute.xlu0 25
        %5603 = vperm.xlu0 %5602, %v3273
        %v5604 = vpop.permute.xlu0 %5603
        %5606 = vset.pattern.permute.xlu0 25
        %5607 = vperm.xlu0 %5606, %v3274
        %v5608 = vpop.permute.xlu0 %5607
        %5610 = vset.pattern.permute.xlu0 25
        %5611 = vperm.xlu0 %5610, %v3275
        %v5612 = vpop.permute.xlu0 %5611
        %5614 = vset.pattern.permute.xlu0 25
        %5615 = vperm.xlu0 %5614, %v3276
        %v5616 = vpop.permute.xlu0 %5615
        %v5619 = vlaneseq
        %v5620 = vshrl.u32 %v5619, 7
        %v5621 = vsub.s32 0, %v5620
        %v5622 = vrot.slane %v5585, %v5621
        %v5623 = vlaneseq
        %v5624 = vshrl.u32 %v5623, 7
        %v5625 = vsub.s32 1, %v5624
        %v5626 = vrot.slane %v5585, %v5625
        %v5629 = vsub.f32 %v5588, %v5622
        %v5630 = vsub.f32 %v5588, %v5626
        %v5631 = vsub.f32 %v5592, %v5622
        %v5632 = vsub.f32 %v5592, %v5626
        %v5633 = vsub.f32 %v5596, %v5622
        %v5634 = vsub.f32 %v5596, %v5626
        %v5635 = vsub.f32 %v5600, %v5622
        %v5636 = vsub.f32 %v5600, %v5626
        %v5637 = vsub.f32 %v5604, %v5622
        %v5638 = vsub.f32 %v5604, %v5626
        %v5639 = vsub.f32 %v5608, %v5622
        %v5640 = vsub.f32 %v5608, %v5626
        %v5641 = vsub.f32 %v5612, %v5622
        %v5642 = vsub.f32 %v5612, %v5626
        %v5643 = vsub.f32 %v5616, %v5622
        %v5644 = vsub.f32 %v5616, %v5626
        %v5645 = vand.u32 2147483647, %v5629
        %v5646 = vand.u32 2147483647, %v5630
        %v5647 = vand.u32 2147483647, %v5631
        %v5648 = vand.u32 2147483647, %v5632
        %v5649 = vand.u32 2147483647, %v5633
        %v5650 = vand.u32 2147483647, %v5634
        %v5651 = vand.u32 2147483647, %v5635
        %v5652 = vand.u32 2147483647, %v5636
        %v5653 = vand.u32 2147483647, %v5637
        %v5654 = vand.u32 2147483647, %v5638
        %v5655 = vand.u32 2147483647, %v5639
        %v5656 = vand.u32 2147483647, %v5640
        %v5657 = vand.u32 2147483647, %v5641
        %v5658 = vand.u32 2147483647, %v5642
        %v5659 = vand.u32 2147483647, %v5643
        %v5660 = vand.u32 2147483647, %v5644
        %v5661 = vadd.f32 %v5569, %v5645
        %v5662 = vadd.f32 %v5570, %v5646
        %v5663 = vadd.f32 %v5571, %v5647
        %v5664 = vadd.f32 %v5572, %v5648
        %v5665 = vadd.f32 %v5573, %v5649
        %v5666 = vadd.f32 %v5574, %v5650
        %v5667 = vadd.f32 %v5575, %v5651
        %v5668 = vadd.f32 %v5576, %v5652
        %v5669 = vadd.f32 %v5577, %v5653
        %v5670 = vadd.f32 %v5578, %v5654
        %v5671 = vadd.f32 %v5579, %v5655
        %v5672 = vadd.f32 %v5580, %v5656
        %v5673 = vadd.f32 %v5581, %v5657
        %v5674 = vadd.f32 %v5582, %v5658
        %v5675 = vadd.f32 %v5583, %v5659
        %v5676 = vadd.f32 %v5584, %v5660
        %v5677 = vld [vmem:[%s2615] ss:$8 sm:$0x3]
        %5678 = vset.pattern.permute.xlu0 26
        %5679 = vperm.xlu0 %5678, %v3269
        %v5680 = vpop.permute.xlu0 %5679
        %5682 = vset.pattern.permute.xlu0 26
        %5683 = vperm.xlu0 %5682, %v3270
        %v5684 = vpop.permute.xlu0 %5683
        %5686 = vset.pattern.permute.xlu0 26
        %5687 = vperm.xlu0 %5686, %v3271
        %v5688 = vpop.permute.xlu0 %5687
        %5690 = vset.pattern.permute.xlu0 26
        %5691 = vperm.xlu0 %5690, %v3272
        %v5692 = vpop.permute.xlu0 %5691
        %5694 = vset.pattern.permute.xlu0 26
        %5695 = vperm.xlu0 %5694, %v3273
        %v5696 = vpop.permute.xlu0 %5695
        %5698 = vset.pattern.permute.xlu0 26
        %5699 = vperm.xlu0 %5698, %v3274
        %v5700 = vpop.permute.xlu0 %5699
        %5702 = vset.pattern.permute.xlu0 26
        %5703 = vperm.xlu0 %5702, %v3275
        %v5704 = vpop.permute.xlu0 %5703
        %5706 = vset.pattern.permute.xlu0 26
        %5707 = vperm.xlu0 %5706, %v3276
        %v5708 = vpop.permute.xlu0 %5707
        %v5711 = vlaneseq
        %v5712 = vshrl.u32 %v5711, 7
        %v5713 = vsub.s32 0, %v5712
        %v5714 = vrot.slane %v5677, %v5713
        %v5715 = vlaneseq
        %v5716 = vshrl.u32 %v5715, 7
        %v5717 = vsub.s32 1, %v5716
        %v5718 = vrot.slane %v5677, %v5717
        %v5721 = vsub.f32 %v5680, %v5714
        %v5722 = vsub.f32 %v5680, %v5718
        %v5723 = vsub.f32 %v5684, %v5714
        %v5724 = vsub.f32 %v5684, %v5718
        %v5725 = vsub.f32 %v5688, %v5714
        %v5726 = vsub.f32 %v5688, %v5718
        %v5727 = vsub.f32 %v5692, %v5714
        %v5728 = vsub.f32 %v5692, %v5718
        %v5729 = vsub.f32 %v5696, %v5714
        %v5730 = vsub.f32 %v5696, %v5718
        %v5731 = vsub.f32 %v5700, %v5714
        %v5732 = vsub.f32 %v5700, %v5718
        %v5733 = vsub.f32 %v5704, %v5714
        %v5734 = vsub.f32 %v5704, %v5718
        %v5735 = vsub.f32 %v5708, %v5714
        %v5736 = vsub.f32 %v5708, %v5718
        %v5737 = vand.u32 2147483647, %v5721
        %v5738 = vand.u32 2147483647, %v5722
        %v5739 = vand.u32 2147483647, %v5723
        %v5740 = vand.u32 2147483647, %v5724
        %v5741 = vand.u32 2147483647, %v5725
        %v5742 = vand.u32 2147483647, %v5726
        %v5743 = vand.u32 2147483647, %v5727
        %v5744 = vand.u32 2147483647, %v5728
        %v5745 = vand.u32 2147483647, %v5729
        %v5746 = vand.u32 2147483647, %v5730
        %v5747 = vand.u32 2147483647, %v5731
        %v5748 = vand.u32 2147483647, %v5732
        %v5749 = vand.u32 2147483647, %v5733
        %v5750 = vand.u32 2147483647, %v5734
        %v5751 = vand.u32 2147483647, %v5735
        %v5752 = vand.u32 2147483647, %v5736
        %v5753 = vadd.f32 %v5661, %v5737
        %v5754 = vadd.f32 %v5662, %v5738
        %v5755 = vadd.f32 %v5663, %v5739
        %v5756 = vadd.f32 %v5664, %v5740
        %v5757 = vadd.f32 %v5665, %v5741
        %v5758 = vadd.f32 %v5666, %v5742
        %v5759 = vadd.f32 %v5667, %v5743
        %v5760 = vadd.f32 %v5668, %v5744
        %v5761 = vadd.f32 %v5669, %v5745
        %v5762 = vadd.f32 %v5670, %v5746
        %v5763 = vadd.f32 %v5671, %v5747
        %v5764 = vadd.f32 %v5672, %v5748
        %v5765 = vadd.f32 %v5673, %v5749
        %v5766 = vadd.f32 %v5674, %v5750
        %v5767 = vadd.f32 %v5675, %v5751
        %v5768 = vadd.f32 %v5676, %v5752
        %v5769 = vld [vmem:[%s2708] ss:$8 sm:$0x3]
        %5770 = vset.pattern.permute.xlu0 27
        %5771 = vperm.xlu0 %5770, %v3269
        %v5772 = vpop.permute.xlu0 %5771
        %5774 = vset.pattern.permute.xlu0 27
        %5775 = vperm.xlu0 %5774, %v3270
        %v5776 = vpop.permute.xlu0 %5775
        %5778 = vset.pattern.permute.xlu0 27
        %5779 = vperm.xlu0 %5778, %v3271
        %v5780 = vpop.permute.xlu0 %5779
        %5782 = vset.pattern.permute.xlu0 27
        %5783 = vperm.xlu0 %5782, %v3272
        %v5784 = vpop.permute.xlu0 %5783
        %5786 = vset.pattern.permute.xlu0 27
        %5787 = vperm.xlu0 %5786, %v3273
        %v5788 = vpop.permute.xlu0 %5787
        %5790 = vset.pattern.permute.xlu0 27
        %5791 = vperm.xlu0 %5790, %v3274
        %v5792 = vpop.permute.xlu0 %5791
        %5794 = vset.pattern.permute.xlu0 27
        %5795 = vperm.xlu0 %5794, %v3275
        %v5796 = vpop.permute.xlu0 %5795
        %5798 = vset.pattern.permute.xlu0 27
        %5799 = vperm.xlu0 %5798, %v3276
        %v5800 = vpop.permute.xlu0 %5799
        %v5803 = vlaneseq
        %v5804 = vshrl.u32 %v5803, 7
        %v5805 = vsub.s32 0, %v5804
        %v5806 = vrot.slane %v5769, %v5805
        %v5807 = vlaneseq
        %v5808 = vshrl.u32 %v5807, 7
        %v5809 = vsub.s32 1, %v5808
        %v5810 = vrot.slane %v5769, %v5809
        %v5813 = vsub.f32 %v5772, %v5806
        %v5814 = vsub.f32 %v5772, %v5810
        %v5815 = vsub.f32 %v5776, %v5806
        %v5816 = vsub.f32 %v5776, %v5810
        %v5817 = vsub.f32 %v5780, %v5806
        %v5818 = vsub.f32 %v5780, %v5810
        %v5819 = vsub.f32 %v5784, %v5806
        %v5820 = vsub.f32 %v5784, %v5810
        %v5821 = vsub.f32 %v5788, %v5806
        %v5822 = vsub.f32 %v5788, %v5810
        %v5823 = vsub.f32 %v5792, %v5806
        %v5824 = vsub.f32 %v5792, %v5810
        %v5825 = vsub.f32 %v5796, %v5806
        %v5826 = vsub.f32 %v5796, %v5810
        %v5827 = vsub.f32 %v5800, %v5806
        %v5828 = vsub.f32 %v5800, %v5810
        %v5829 = vand.u32 2147483647, %v5813
        %v5830 = vand.u32 2147483647, %v5814
        %v5831 = vand.u32 2147483647, %v5815
        %v5832 = vand.u32 2147483647, %v5816
        %v5833 = vand.u32 2147483647, %v5817
        %v5834 = vand.u32 2147483647, %v5818
        %v5835 = vand.u32 2147483647, %v5819
        %v5836 = vand.u32 2147483647, %v5820
        %v5837 = vand.u32 2147483647, %v5821
        %v5838 = vand.u32 2147483647, %v5822
        %v5839 = vand.u32 2147483647, %v5823
        %v5840 = vand.u32 2147483647, %v5824
        %v5841 = vand.u32 2147483647, %v5825
        %v5842 = vand.u32 2147483647, %v5826
        %v5843 = vand.u32 2147483647, %v5827
        %v5844 = vand.u32 2147483647, %v5828
        %v5845 = vadd.f32 %v5753, %v5829
        %v5846 = vadd.f32 %v5754, %v5830
        %v5847 = vadd.f32 %v5755, %v5831
        %v5848 = vadd.f32 %v5756, %v5832
        %v5849 = vadd.f32 %v5757, %v5833
        %v5850 = vadd.f32 %v5758, %v5834
        %v5851 = vadd.f32 %v5759, %v5835
        %v5852 = vadd.f32 %v5760, %v5836
        %v5853 = vadd.f32 %v5761, %v5837
        %v5854 = vadd.f32 %v5762, %v5838
        %v5855 = vadd.f32 %v5763, %v5839
        %v5856 = vadd.f32 %v5764, %v5840
        %v5857 = vadd.f32 %v5765, %v5841
        %v5858 = vadd.f32 %v5766, %v5842
        %v5859 = vadd.f32 %v5767, %v5843
        %v5860 = vadd.f32 %v5768, %v5844
        %v5861 = vld [vmem:[%s2801] ss:$8 sm:$0x3]
        %5862 = vset.pattern.permute.xlu0 28
        %5863 = vperm.xlu0 %5862, %v3269
        %v5864 = vpop.permute.xlu0 %5863
        %5866 = vset.pattern.permute.xlu0 28
        %5867 = vperm.xlu0 %5866, %v3270
        %v5868 = vpop.permute.xlu0 %5867
        %5870 = vset.pattern.permute.xlu0 28
        %5871 = vperm.xlu0 %5870, %v3271
        %v5872 = vpop.permute.xlu0 %5871
        %5874 = vset.pattern.permute.xlu0 28
        %5875 = vperm.xlu0 %5874, %v3272
        %v5876 = vpop.permute.xlu0 %5875
        %5878 = vset.pattern.permute.xlu0 28
        %5879 = vperm.xlu0 %5878, %v3273
        %v5880 = vpop.permute.xlu0 %5879
        %5882 = vset.pattern.permute.xlu0 28
        %5883 = vperm.xlu0 %5882, %v3274
        %v5884 = vpop.permute.xlu0 %5883
        %5886 = vset.pattern.permute.xlu0 28
        %5887 = vperm.xlu0 %5886, %v3275
        %v5888 = vpop.permute.xlu0 %5887
        %5890 = vset.pattern.permute.xlu0 28
        %5891 = vperm.xlu0 %5890, %v3276
        %v5892 = vpop.permute.xlu0 %5891
        %v5895 = vlaneseq
        %v5896 = vshrl.u32 %v5895, 7
        %v5897 = vsub.s32 0, %v5896
        %v5898 = vrot.slane %v5861, %v5897
        %v5899 = vlaneseq
        %v5900 = vshrl.u32 %v5899, 7
        %v5901 = vsub.s32 1, %v5900
        %v5902 = vrot.slane %v5861, %v5901
        %v5905 = vsub.f32 %v5864, %v5898
        %v5906 = vsub.f32 %v5864, %v5902
        %v5907 = vsub.f32 %v5868, %v5898
        %v5908 = vsub.f32 %v5868, %v5902
        %v5909 = vsub.f32 %v5872, %v5898
        %v5910 = vsub.f32 %v5872, %v5902
        %v5911 = vsub.f32 %v5876, %v5898
        %v5912 = vsub.f32 %v5876, %v5902
        %v5913 = vsub.f32 %v5880, %v5898
        %v5914 = vsub.f32 %v5880, %v5902
        %v5915 = vsub.f32 %v5884, %v5898
        %v5916 = vsub.f32 %v5884, %v5902
        %v5917 = vsub.f32 %v5888, %v5898
        %v5918 = vsub.f32 %v5888, %v5902
        %v5919 = vsub.f32 %v5892, %v5898
        %v5920 = vsub.f32 %v5892, %v5902
        %v5921 = vand.u32 2147483647, %v5905
        %v5922 = vand.u32 2147483647, %v5906
        %v5923 = vand.u32 2147483647, %v5907
        %v5924 = vand.u32 2147483647, %v5908
        %v5925 = vand.u32 2147483647, %v5909
        %v5926 = vand.u32 2147483647, %v5910
        %v5927 = vand.u32 2147483647, %v5911
        %v5928 = vand.u32 2147483647, %v5912
        %v5929 = vand.u32 2147483647, %v5913
        %v5930 = vand.u32 2147483647, %v5914
        %v5931 = vand.u32 2147483647, %v5915
        %v5932 = vand.u32 2147483647, %v5916
        %v5933 = vand.u32 2147483647, %v5917
        %v5934 = vand.u32 2147483647, %v5918
        %v5935 = vand.u32 2147483647, %v5919
        %v5936 = vand.u32 2147483647, %v5920
        %v5937 = vadd.f32 %v5845, %v5921
        %v5938 = vadd.f32 %v5846, %v5922
        %v5939 = vadd.f32 %v5847, %v5923
        %v5940 = vadd.f32 %v5848, %v5924
        %v5941 = vadd.f32 %v5849, %v5925
        %v5942 = vadd.f32 %v5850, %v5926
        %v5943 = vadd.f32 %v5851, %v5927
        %v5944 = vadd.f32 %v5852, %v5928
        %v5945 = vadd.f32 %v5853, %v5929
        %v5946 = vadd.f32 %v5854, %v5930
        %v5947 = vadd.f32 %v5855, %v5931
        %v5948 = vadd.f32 %v5856, %v5932
        %v5949 = vadd.f32 %v5857, %v5933
        %v5950 = vadd.f32 %v5858, %v5934
        %v5951 = vadd.f32 %v5859, %v5935
        %v5952 = vadd.f32 %v5860, %v5936
        %v5953 = vld [vmem:[%s2894] ss:$8 sm:$0x3]
        %5954 = vset.pattern.permute.xlu0 29
        %5955 = vperm.xlu0 %5954, %v3269
        %v5956 = vpop.permute.xlu0 %5955
        %5958 = vset.pattern.permute.xlu0 29
        %5959 = vperm.xlu0 %5958, %v3270
        %v5960 = vpop.permute.xlu0 %5959
        %5962 = vset.pattern.permute.xlu0 29
        %5963 = vperm.xlu0 %5962, %v3271
        %v5964 = vpop.permute.xlu0 %5963
        %5966 = vset.pattern.permute.xlu0 29
        %5967 = vperm.xlu0 %5966, %v3272
        %v5968 = vpop.permute.xlu0 %5967
        %5970 = vset.pattern.permute.xlu0 29
        %5971 = vperm.xlu0 %5970, %v3273
        %v5972 = vpop.permute.xlu0 %5971
        %5974 = vset.pattern.permute.xlu0 29
        %5975 = vperm.xlu0 %5974, %v3274
        %v5976 = vpop.permute.xlu0 %5975
        %5978 = vset.pattern.permute.xlu0 29
        %5979 = vperm.xlu0 %5978, %v3275
        %v5980 = vpop.permute.xlu0 %5979
        %5982 = vset.pattern.permute.xlu0 29
        %5983 = vperm.xlu0 %5982, %v3276
        %v5984 = vpop.permute.xlu0 %5983
        %v5987 = vlaneseq
        %v5988 = vshrl.u32 %v5987, 7
        %v5989 = vsub.s32 0, %v5988
        %v5990 = vrot.slane %v5953, %v5989
        %v5991 = vlaneseq
        %v5992 = vshrl.u32 %v5991, 7
        %v5993 = vsub.s32 1, %v5992
        %v5994 = vrot.slane %v5953, %v5993
        %v5997 = vsub.f32 %v5956, %v5990
        %v5998 = vsub.f32 %v5956, %v5994
        %v5999 = vsub.f32 %v5960, %v5990
        %v6000 = vsub.f32 %v5960, %v5994
        %v6001 = vsub.f32 %v5964, %v5990
        %v6002 = vsub.f32 %v5964, %v5994
        %v6003 = vsub.f32 %v5968, %v5990
        %v6004 = vsub.f32 %v5968, %v5994
        %v6005 = vsub.f32 %v5972, %v5990
        %v6006 = vsub.f32 %v5972, %v5994
        %v6007 = vsub.f32 %v5976, %v5990
        %v6008 = vsub.f32 %v5976, %v5994
        %v6009 = vsub.f32 %v5980, %v5990
        %v6010 = vsub.f32 %v5980, %v5994
        %v6011 = vsub.f32 %v5984, %v5990
        %v6012 = vsub.f32 %v5984, %v5994
        %v6013 = vand.u32 2147483647, %v5997
        %v6014 = vand.u32 2147483647, %v5998
        %v6015 = vand.u32 2147483647, %v5999
        %v6016 = vand.u32 2147483647, %v6000
        %v6017 = vand.u32 2147483647, %v6001
        %v6018 = vand.u32 2147483647, %v6002
        %v6019 = vand.u32 2147483647, %v6003
        %v6020 = vand.u32 2147483647, %v6004
        %v6021 = vand.u32 2147483647, %v6005
        %v6022 = vand.u32 2147483647, %v6006
        %v6023 = vand.u32 2147483647, %v6007
        %v6024 = vand.u32 2147483647, %v6008
        %v6025 = vand.u32 2147483647, %v6009
        %v6026 = vand.u32 2147483647, %v6010
        %v6027 = vand.u32 2147483647, %v6011
        %v6028 = vand.u32 2147483647, %v6012
        %v6029 = vadd.f32 %v5937, %v6013
        %v6030 = vadd.f32 %v5938, %v6014
        %v6031 = vadd.f32 %v5939, %v6015
        %v6032 = vadd.f32 %v5940, %v6016
        %v6033 = vadd.f32 %v5941, %v6017
        %v6034 = vadd.f32 %v5942, %v6018
        %v6035 = vadd.f32 %v5943, %v6019
        %v6036 = vadd.f32 %v5944, %v6020
        %v6037 = vadd.f32 %v5945, %v6021
        %v6038 = vadd.f32 %v5946, %v6022
        %v6039 = vadd.f32 %v5947, %v6023
        %v6040 = vadd.f32 %v5948, %v6024
        %v6041 = vadd.f32 %v5949, %v6025
        %v6042 = vadd.f32 %v5950, %v6026
        %v6043 = vadd.f32 %v5951, %v6027
        %v6044 = vadd.f32 %v5952, %v6028
        %v6045 = vld [vmem:[%s2987] ss:$8 sm:$0x3]
        %6046 = vset.pattern.permute.xlu0 30
        %6047 = vperm.xlu0 %6046, %v3269
        %v6048 = vpop.permute.xlu0 %6047
        %6050 = vset.pattern.permute.xlu0 30
        %6051 = vperm.xlu0 %6050, %v3270
        %v6052 = vpop.permute.xlu0 %6051
        %6054 = vset.pattern.permute.xlu0 30
        %6055 = vperm.xlu0 %6054, %v3271
        %v6056 = vpop.permute.xlu0 %6055
        %6058 = vset.pattern.permute.xlu0 30
        %6059 = vperm.xlu0 %6058, %v3272
        %v6060 = vpop.permute.xlu0 %6059
        %6062 = vset.pattern.permute.xlu0 30
        %6063 = vperm.xlu0 %6062, %v3273
        %v6064 = vpop.permute.xlu0 %6063
        %6066 = vset.pattern.permute.xlu0 30
        %6067 = vperm.xlu0 %6066, %v3274
        %v6068 = vpop.permute.xlu0 %6067
        %6070 = vset.pattern.permute.xlu0 30
        %6071 = vperm.xlu0 %6070, %v3275
        %v6072 = vpop.permute.xlu0 %6071
        %6074 = vset.pattern.permute.xlu0 30
        %6075 = vperm.xlu0 %6074, %v3276
        %v6076 = vpop.permute.xlu0 %6075
        %v6079 = vlaneseq
        %v6080 = vshrl.u32 %v6079, 7
        %v6081 = vsub.s32 0, %v6080
        %v6082 = vrot.slane %v6045, %v6081
        %v6083 = vlaneseq
        %v6084 = vshrl.u32 %v6083, 7
        %v6085 = vsub.s32 1, %v6084
        %v6086 = vrot.slane %v6045, %v6085
        %v6089 = vsub.f32 %v6048, %v6082
        %v6090 = vsub.f32 %v6048, %v6086
        %v6091 = vsub.f32 %v6052, %v6082
        %v6092 = vsub.f32 %v6052, %v6086
        %v6093 = vsub.f32 %v6056, %v6082
        %v6094 = vsub.f32 %v6056, %v6086
        %v6095 = vsub.f32 %v6060, %v6082
        %v6096 = vsub.f32 %v6060, %v6086
        %v6097 = vsub.f32 %v6064, %v6082
        %v6098 = vsub.f32 %v6064, %v6086
        %v6099 = vsub.f32 %v6068, %v6082
        %v6100 = vsub.f32 %v6068, %v6086
        %v6101 = vsub.f32 %v6072, %v6082
        %v6102 = vsub.f32 %v6072, %v6086
        %v6103 = vsub.f32 %v6076, %v6082
        %v6104 = vsub.f32 %v6076, %v6086
        %v6105 = vand.u32 2147483647, %v6089
        %v6106 = vand.u32 2147483647, %v6090
        %v6107 = vand.u32 2147483647, %v6091
        %v6108 = vand.u32 2147483647, %v6092
        %v6109 = vand.u32 2147483647, %v6093
        %v6110 = vand.u32 2147483647, %v6094
        %v6111 = vand.u32 2147483647, %v6095
        %v6112 = vand.u32 2147483647, %v6096
        %v6113 = vand.u32 2147483647, %v6097
        %v6114 = vand.u32 2147483647, %v6098
        %v6115 = vand.u32 2147483647, %v6099
        %v6116 = vand.u32 2147483647, %v6100
        %v6117 = vand.u32 2147483647, %v6101
        %v6118 = vand.u32 2147483647, %v6102
        %v6119 = vand.u32 2147483647, %v6103
        %v6120 = vand.u32 2147483647, %v6104
        %v6121 = vadd.f32 %v6029, %v6105
        %v6122 = vadd.f32 %v6030, %v6106
        %v6123 = vadd.f32 %v6031, %v6107
        %v6124 = vadd.f32 %v6032, %v6108
        %v6125 = vadd.f32 %v6033, %v6109
        %v6126 = vadd.f32 %v6034, %v6110
        %v6127 = vadd.f32 %v6035, %v6111
        %v6128 = vadd.f32 %v6036, %v6112
        %v6129 = vadd.f32 %v6037, %v6113
        %v6130 = vadd.f32 %v6038, %v6114
        %v6131 = vadd.f32 %v6039, %v6115
        %v6132 = vadd.f32 %v6040, %v6116
        %v6133 = vadd.f32 %v6041, %v6117
        %v6134 = vadd.f32 %v6042, %v6118
        %v6135 = vadd.f32 %v6043, %v6119
        %v6136 = vadd.f32 %v6044, %v6120
        %v6137 = vld [vmem:[%s3080] ss:$8 sm:$0x3]
        %6138 = vset.pattern.permute.xlu0 31
        %6139 = vperm.xlu0 %6138, %v3269
        %v6140 = vpop.permute.xlu0 %6139
        %6142 = vset.pattern.permute.xlu0 31
        %6143 = vperm.xlu0 %6142, %v3270
        %v6144 = vpop.permute.xlu0 %6143
        %6146 = vset.pattern.permute.xlu0 31
        %6147 = vperm.xlu0 %6146, %v3271
        %v6148 = vpop.permute.xlu0 %6147
        %6150 = vset.pattern.permute.xlu0 31
        %6151 = vperm.xlu0 %6150, %v3272
        %v6152 = vpop.permute.xlu0 %6151
        %6154 = vset.pattern.permute.xlu0 31
        %6155 = vperm.xlu0 %6154, %v3273
        %v6156 = vpop.permute.xlu0 %6155
        %6158 = vset.pattern.permute.xlu0 31
        %6159 = vperm.xlu0 %6158, %v3274
        %v6160 = vpop.permute.xlu0 %6159
        %6162 = vset.pattern.permute.xlu0 31
        %6163 = vperm.xlu0 %6162, %v3275
        %v6164 = vpop.permute.xlu0 %6163
        %6166 = vset.pattern.permute.xlu0 31
        %6167 = vperm.xlu0 %6166, %v3276
        %v6168 = vpop.permute.xlu0 %6167
        %v6171 = vlaneseq
        %v6172 = vshrl.u32 %v6171, 7
        %v6173 = vsub.s32 0, %v6172
        %v6174 = vrot.slane %v6137, %v6173
        %v6175 = vlaneseq
        %v6176 = vshrl.u32 %v6175, 7
        %v6177 = vsub.s32 1, %v6176
        %v6178 = vrot.slane %v6137, %v6177
        %v6181 = vsub.f32 %v6140, %v6174
        %v6182 = vsub.f32 %v6140, %v6178
        %v6183 = vsub.f32 %v6144, %v6174
        %v6184 = vsub.f32 %v6144, %v6178
        %v6185 = vsub.f32 %v6148, %v6174
        %v6186 = vsub.f32 %v6148, %v6178
        %v6187 = vsub.f32 %v6152, %v6174
        %v6188 = vsub.f32 %v6152, %v6178
        %v6189 = vsub.f32 %v6156, %v6174
        %v6190 = vsub.f32 %v6156, %v6178
        %v6191 = vsub.f32 %v6160, %v6174
        %v6192 = vsub.f32 %v6160, %v6178
        %v6193 = vsub.f32 %v6164, %v6174
        %v6194 = vsub.f32 %v6164, %v6178
        %v6195 = vsub.f32 %v6168, %v6174
        %v6196 = vsub.f32 %v6168, %v6178
        %v6197 = vand.u32 2147483647, %v6181
        %v6198 = vand.u32 2147483647, %v6182
        %v6199 = vand.u32 2147483647, %v6183
        %v6200 = vand.u32 2147483647, %v6184
        %v6201 = vand.u32 2147483647, %v6185
        %v6202 = vand.u32 2147483647, %v6186
        %v6203 = vand.u32 2147483647, %v6187
        %v6204 = vand.u32 2147483647, %v6188
        %v6205 = vand.u32 2147483647, %v6189
        %v6206 = vand.u32 2147483647, %v6190
        %v6207 = vand.u32 2147483647, %v6191
        %v6208 = vand.u32 2147483647, %v6192
        %v6209 = vand.u32 2147483647, %v6193
        %v6210 = vand.u32 2147483647, %v6194
        %v6211 = vand.u32 2147483647, %v6195
        %v6212 = vand.u32 2147483647, %v6196
        %v6213 = vadd.f32 %v6121, %v6197
        %v6214 = vadd.f32 %v6122, %v6198
        %v6215 = vadd.f32 %v6123, %v6199
        %v6216 = vadd.f32 %v6124, %v6200
        %v6217 = vadd.f32 %v6125, %v6201
        %v6218 = vadd.f32 %v6126, %v6202
        %v6219 = vadd.f32 %v6127, %v6203
        %v6220 = vadd.f32 %v6128, %v6204
        %v6221 = vadd.f32 %v6129, %v6205
        %v6222 = vadd.f32 %v6130, %v6206
        %v6223 = vadd.f32 %v6131, %v6207
        %v6224 = vadd.f32 %v6132, %v6208
        %v6225 = vadd.f32 %v6133, %v6209
        %v6226 = vadd.f32 %v6134, %v6210
        %v6227 = vadd.f32 %v6135, %v6211
        %v6228 = vadd.f32 %v6136, %v6212
        %v6229 = vsub.f32 0.0, %v6213
        %v6230 = vsub.f32 0.0, %v6214
        %v6231 = vsub.f32 0.0, %v6215
        %v6232 = vsub.f32 0.0, %v6216
        %v6233 = vsub.f32 0.0, %v6217
        %v6234 = vsub.f32 0.0, %v6218
        %v6235 = vsub.f32 0.0, %v6219
        %v6236 = vsub.f32 0.0, %v6220
        %v6237 = vsub.f32 0.0, %v6221
        %v6238 = vsub.f32 0.0, %v6222
        %v6239 = vsub.f32 0.0, %v6223
        %v6240 = vsub.f32 0.0, %v6224
        %v6241 = vsub.f32 0.0, %v6225
        %v6242 = vsub.f32 0.0, %v6226
        %v6243 = vsub.f32 0.0, %v6227
        %v6244 = vsub.f32 0.0, %v6228
        %v6245 = vmul.f32 %v6229, 1.442695
        %v6246 = vpow.pop %v6245
        %v6247 = vmul.f32 %v6230, 1.442695
        %v6248 = vpow.pop %v6247
        %v6249 = vmul.f32 %v6231, 1.442695
        %v6250 = vpow.pop %v6249
        %v6251 = vmul.f32 %v6232, 1.442695
        %v6252 = vpow.pop %v6251
        %v6253 = vmul.f32 %v6233, 1.442695
        %v6254 = vpow.pop %v6253
        %v6255 = vmul.f32 %v6234, 1.442695
        %v6256 = vpow.pop %v6255
        %v6257 = vmul.f32 %v6235, 1.442695
        %v6258 = vpow.pop %v6257
        %v6259 = vmul.f32 %v6236, 1.442695
        %v6260 = vpow.pop %v6259
        %v6261 = vmul.f32 %v6237, 1.442695
        %v6262 = vpow.pop %v6261
        %v6263 = vmul.f32 %v6238, 1.442695
        %v6264 = vpow.pop %v6263
        %v6265 = vmul.f32 %v6239, 1.442695
        %v6266 = vpow.pop %v6265
        %v6267 = vmul.f32 %v6240, 1.442695
        %v6268 = vpow.pop %v6267
        %v6269 = vmul.f32 %v6241, 1.442695
        %v6270 = vpow.pop %v6269
        %v6271 = vmul.f32 %v6242, 1.442695
        %v6272 = vpow.pop %v6271
        %v6273 = vmul.f32 %v6243, 1.442695
        %v6274 = vpow.pop %v6273
        %v6275 = vmul.f32 %v6244, 1.442695
        %v6276 = vpow.pop %v6275
        %v6277 = vadd.f32 %v6246, 1.0
        %v6278 = vadd.f32 %v6248, 1.0
        %v6279 = vadd.f32 %v6250, 1.0
        %v6280 = vadd.f32 %v6252, 1.0
        %v6281 = vadd.f32 %v6254, 1.0
        %v6282 = vadd.f32 %v6256, 1.0
        %v6283 = vadd.f32 %v6258, 1.0
        %v6284 = vadd.f32 %v6260, 1.0
        %v6285 = vadd.f32 %v6262, 1.0
        %v6286 = vadd.f32 %v6264, 1.0
        %v6287 = vadd.f32 %v6266, 1.0
        %v6288 = vadd.f32 %v6268, 1.0
        %v6289 = vadd.f32 %v6270, 1.0
        %v6290 = vadd.f32 %v6272, 1.0
        %v6291 = vadd.f32 %v6274, 1.0
        %v6292 = vadd.f32 %v6276, 1.0
        %v6293 = vrcp.pop %v6277
        %v6294 = vrcp.pop %v6278
        %v6295 = vrcp.pop %v6279
        %v6296 = vrcp.pop %v6280
        %v6297 = vrcp.pop %v6281
        %v6298 = vrcp.pop %v6282
        %v6299 = vrcp.pop %v6283
        %v6300 = vrcp.pop %v6284
        %v6301 = vrcp.pop %v6285
        %v6302 = vrcp.pop %v6286
        %v6303 = vrcp.pop %v6287
        %v6304 = vrcp.pop %v6288
        %v6305 = vrcp.pop %v6289
        %v6306 = vrcp.pop %v6290
        %v6307 = vrcp.pop %v6291
        %v6308 = vrcp.pop %v6292
        %6309 = vst [vmem:[%s167 + $0x80] sm:$0xff] %v6293
        %6310 = vst [vmem:[%s167 + $0x88] sm:$0xff] %v6294
        %6311 = vst [vmem:[%s167 + $0x90] sm:$0xff] %v6295
        %6312 = vst [vmem:[%s167 + $0x98] sm:$0xff] %v6296
        %6313 = vst [vmem:[%s167 + $0xa0] sm:$0xff] %v6297
        %6314 = vst [vmem:[%s167 + $0xa8] sm:$0xff] %v6298
        %6315 = vst [vmem:[%s167 + $0xb0] sm:$0xff] %v6299
        %6316 = vst [vmem:[%s167 + $0xb8] sm:$0xff] %v6300
        %6317 = vst [vmem:[%s167 + $0xc0] sm:$0xff] %v6301
        %6318 = vst [vmem:[%s167 + $0xc8] sm:$0xff] %v6302
        %6319 = vst [vmem:[%s167 + $0xd0] sm:$0xff] %v6303
        %6320 = vst [vmem:[%s167 + $0xd8] sm:$0xff] %v6304
        %6321 = vst [vmem:[%s167 + $0xe0] sm:$0xff] %v6305
        %6322 = vst [vmem:[%s167 + $0xe8] sm:$0xff] %v6306
        %6323 = vst [vmem:[%s167 + $0xf0] sm:$0xff] %v6307
        %6324 = vst [vmem:[%s167 + $0xf8] sm:$0xff] %v6308
        %s6325 = sand.u32 %s90, 1
        %s6326 = scalar_lea.sflag [#allocation3], %s6325
        %s6327 = sand.u32 %s90, 1
        %s6328 = smul.addr %s6327, 256
        %s6329 = scalar_lea.vmem [#allocation2], %s6328
        // Predicated region
        $region29: #{tpu_custom_call.1} parent=27 // pred_check
          %p6330 = pneg %p100
        $region30: #{tpu_custom_call.1} parent=27 // pred_check_branch
          %6332 = sbr.rel (%p6330) target = $region32
        $region31: #{tpu_custom_call.1} parent=27 // pred_region
          %s6333 = smul.u32 16, %s20
          %s6334 = smul.u32 2, %s21
          %s6336 = ssub.s32 4096, 4096
          %6337 = vsyncadd %s6326, %s6336
          %s6338 = smul.addr %s6333, 2
          %s6339 = sadd.s32 %s6334, %s6338
          %s6340 = smul.addr %s6339, 128
          %s6341 = scalar_lea.hbm %s2, %s6340
          %s6342 = sshll.u32 %s6329, 4
          %s6343 = int_to_ptr.vmem [resolvable:$true] %s6342
          %6348 = dma.vmem_to_hbm [thread:$0]  %s6343, 4096, %s6341, %s6326, 256, 256, 16
        $region32: #{tpu_custom_call.1} parent=27 // pred_fallthru
          _
      $region28: #{tpu_custom_call.1} parent=5 // pred_fallthru
        _
      %p6349 = scmp.le.s32.totalorder 2, %s11
      // Predicated region
      $region33: #{tpu_custom_call.1} parent=5 // pred_check
        %p6350 = pneg %p6349
      $region34: #{tpu_custom_call.1} parent=5 // pred_check_branch
        %6352 = sbr.rel (%p6350) target = $region36
      $region35: #{tpu_custom_call.1} parent=5 // pred_region
        %s6353 = ssub.s32 %s11, 2
        // Predicated region
        $region37: #{tpu_custom_call.1} parent=35 // pred_check
          %p6354 = pneg %p106
        $region38: #{tpu_custom_call.1} parent=35 // pred_check_branch
          %6356 = sbr.rel (%p6354) target = $region40
        $region39: #{tpu_custom_call.1} parent=35 // pred_region
          %s6357 = sand.u32 %s91, 1
          %s6358 = scalar_lea.sflag [#allocation3], %s6357
          %s6359 = sand.u32 %s91, 1
          %s6360 = smul.addr %s6359, 256
          %s6361 = scalar_lea.vmem [#allocation2], %s6360
          %6362 = dma.done %s6358, 4096
        $region40: #{tpu_custom_call.1} parent=35 // pred_fallthru
          _
      $region36: #{tpu_custom_call.1} parent=5 // pred_fallthru
        _
    $region6: #{tpu_custom_call.1} parent=1 // loop_footer
      %s15 = sadd.s32 1, %s11
    $region7: #{tpu_custom_call.1} parent=1 // loop_footer_branch
      %10 = sbr.rel target = $region3
    $region8: #{tpu_custom_call.1} parent=1 // loop_exit
      _
    %6363 = vsyncpa [#allocation3], 1
    %s6364 = scalar_lea.sflag [#allocation3], 1
    %6365 = vsyncpa %s6364, 1

</llo_original>
